<compile_context>
chip_gen: v7x
topology: tpu7x:2x2x1
jax: 0.10.0
libtpu: 0.0.40
codegen_flags: <defaults>
</compile_context>

<pallas_src>
import functools

import jax
import jax.numpy as jnp
from jax.experimental import pallas as pl
from jax.experimental.pallas import tpu as pltpu

HG = 64  # per-gate lane padding (half a vreg lane tile); hidden=50 <= 64


def _lstm_fc_kernel(x_ref, wih0_ref, b0_ref, whh_blk_ref, wih1_ref, b1_ref,
                    wfc_ref, bfc_ref, out_ref, *, seq_len, hg):
    BP = out_ref.shape[0]
    NG = 4 * hg

    # Hoisted layer-0 input projection + bias (dependency-free; overlaps the
    # first recurrent matmuls).  x_ref: (T*BP, 1), wih0/b0: (1, NG).
    xw0 = x_ref[...] * wih0_ref[...] + b0_ref[...]          # (T*BP, NG)
    b1 = b1_ref[...]                                        # (1, NG) — tiny

    def gates_to_hc(gates, c_prev):
        # PyTorch gate order i, f, g, o; gate g lives at lane offset g*hg.
        i = jax.nn.sigmoid(gates[:, 0 * hg:1 * hg])
        f = jax.nn.sigmoid(gates[:, 1 * hg:2 * hg])
        g = jnp.tanh(gates[:, 2 * hg:3 * hg])
        o = jax.nn.sigmoid(gates[:, 3 * hg:4 * hg])
        c_new = f * c_prev + i * g
        h_new = o * jnp.tanh(c_new)
        return h_new, c_new

    z = jnp.zeros((BP, hg), jnp.float32)
    h1, c1, h2, c2 = z, z, z, z

    # seq_len is small and static: fully unroll with static indices.
    for t in range(seq_len):
        # Fused block-diagonal recurrent matmul: both operands depend only on
        # step t-1 state -> off the serial chain.  Weights are read at the dot
        # site so Mosaic can stream them from VMEM.
        hh = jnp.concatenate([h1, h2], axis=-1)                   # (BP, 2*hg)
        rec = jnp.dot(hh, whh_blk_ref[...],
                      preferred_element_type=jnp.float32)         # (BP, 2*NG)

        gates0 = xw0[t * BP:(t + 1) * BP, :] + rec[:, :NG]
        h1, c1 = gates_to_hc(gates0, c1)

        # The only dot on the serial chain (depends on the h1 just produced).
        gates1 = (jnp.dot(h1, wih1_ref[...],
                          preferred_element_type=jnp.float32)
                  + rec[:, NG:] + b1)
        h2, c2 = gates_to_hc(gates1, c2)

    # fc on last step's top-layer hidden: lane reduction, not an (H,1) matmul.
    out_ref[...] = (jnp.sum(h2 * wfc_ref[...], axis=-1, keepdims=True)
                    + bfc_ref[...])


def lstm_model_forward(x, params, hidden_size=50):
    """x: (B, T, 1) float32 (batch_first, like PyTorch). Returns (B, 1)."""
    B, T, I = x.shape
    assert I == 1, "module spec has input_size=1"
    H = hidden_size
    assert H <= HG

    wih0, whh0, b0, wih1, whh1, b1, wfc, bfc = params
    NG = 4 * HG

    def pad_gates(w):
        # (in_dim, 4H) -> gate g at lane offset g*HG, columns H..HG-1 zero.
        in_dim = w.shape[0]
        w4 = w.reshape(in_dim, 4, H)
        w4 = jnp.pad(w4, ((0, 0), (0, 0), (0, HG - H)))
        return w4.reshape(in_dim, 4 * HG)

    def pad_rows(w):
        # pad contraction dim (hidden) to HG with zeros
        return jnp.pad(w, ((0, HG - w.shape[0]), (0, 0)))

    wih0_p = pad_gates(wih0)                     # (1, NG)
    b0_p = pad_gates(b0)                         # (1, NG)
    wih1_p = pad_rows(pad_gates(wih1))           # (HG, NG)
    b1_p = pad_gates(b1)                         # (1, NG)

    # Block-diagonal recurrent weight: concat([h1, h2]) @ whh_blk computes both
    # layers' recurrent gate pre-activations in a single K=2*HG dot.
    whh0_p = pad_rows(pad_gates(whh0))           # (HG, NG)
    whh1_p = pad_rows(pad_gates(whh1))           # (HG, NG)
    whh_blk = jnp.zeros((2 * HG, 2 * NG), jnp.float32)
    whh_blk = whh_blk.at[:HG, :NG].set(whh0_p)
    whh_blk = whh_blk.at[HG:, NG:].set(whh1_p)   # (2*HG, 2*NG) = (128, 512)

    wfc_p = jnp.pad(wfc.T, ((0, 0), (0, HG - H)))  # (1, HG)

    # Pad batch to a sublane multiple; time-major, flattened to (T*BP, 1) so
    # the in-kernel hoisted projection is a single 2-D broadcast multiply and
    # the per-step extraction is an aligned sublane slice.
    BP = max(8, ((B + 7) // 8) * 8)
    x_tm = jnp.transpose(x, (1, 0, 2))                      # (T, B, 1)
    x_tm = jnp.pad(x_tm, ((0, 0), (0, BP - B), (0, 0)))     # (T, BP, 1)
    x_flat = x_tm.reshape(T * BP, 1)                        # (T*BP, 1)

    kernel = functools.partial(_lstm_fc_kernel, seq_len=T, hg=HG)
    vmem = pl.BlockSpec(memory_space=pltpu.MemorySpace.VMEM)

    out = pl.pallas_call(
        kernel,
        out_shape=jax.ShapeDtypeStruct((BP, 1), jnp.float32),
        in_specs=[vmem] * 8,
        out_specs=vmem,
    )(x_flat, wih0_p, b0_p, whh_blk, wih1_p, b1_p, wfc_p, bfc)
    return out[:B]


def init_params(key, input_size=1, hidden_size=50):
    """PyTorch-style init: U(-1/sqrt(H), 1/sqrt(H)); weights pre-transposed to (in_dim, 4H)."""
    H = hidden_size
    k = 1.0 / jnp.sqrt(jnp.float32(H))
    keys = jax.random.split(key, 11)
    u = lambda kk, shape: jax.random.uniform(kk, shape, jnp.float32, -k, k)

    # Layer 0
    wih0 = u(keys[0], (input_size, 4 * H))
    whh0 = u(keys[1], (H, 4 * H))
    b0 = u(keys[2], (1, 4 * H)) + u(keys[3], (1, 4 * H))    # b_ih + b_hh
    # Layer 1
    wih1 = u(keys[4], (H, 4 * H))
    whh1 = u(keys[5], (H, 4 * H))
    b1 = u(keys[6], (1, 4 * H)) + u(keys[7], (1, 4 * H))
    # fc: Linear(H, 1)
    wfc = u(keys[8], (H, 1))
    bfc = u(keys[9], (1, 1))
    return (wih0, whh0, b0, wih1, whh1, b1, wfc, bfc)


def reference_forward(x, params, hidden_size=50):
    """Pure-JAX reference (lax.scan) for correctness check."""
    H = hidden_size
    wih0, whh0, b0, wih1, whh1, b1, wfc, bfc = params
    B = x.shape[0]

    def cell(x_in, h, c, wih, whh, b):
        g = x_in @ wih + h @ whh + b
        i = jax.nn.sigmoid(g[:, :H])
        f = jax.nn.sigmoid(g[:, H:2 * H])
        gg = jnp.tanh(g[:, 2 * H:3 * H])
        o = jax.nn.sigmoid(g[:, 3 * H:])
        c_new = f * c + i * gg
        return o * jnp.tanh(c_new), c_new

    def step(carry, x_t):
        h1, c1, h2, c2 = carry
        h1, c1 = cell(x_t, h1, c1, wih0, whh0, b0)
        h2, c2 = cell(h1, h2, c2, wih1, whh1, b1)
        return (h1, c1, h2, c2), h2

    z = jnp.zeros((B, H), jnp.float32)
    (_, _, h2, _), _ = jax.lax.scan(step, (z, z, z, z),
                                    jnp.transpose(x, (1, 0, 2)))
    return h2 @ wfc + bfc


if __name__ == "__main__":
    B, T, I, H = 4, 8, 1, 50

    key = jax.random.PRNGKey(0)
    k_x, k_p = jax.random.split(key)
    x = jax.random.normal(k_x, (B, T, I), dtype=jnp.float32)
    params = init_params(k_p, input_size=I, hidden_size=H)

    out = lstm_model_forward(x, params, hidden_size=H)
    out = jax.block_until_ready(out)

    ref = jax.block_until_ready(reference_forward(x, params, hidden_size=H))
    assert out.shape == (B, 1)
    assert jnp.allclose(out, ref, atol=1e-5, rtol=1e-5), (out, ref)

    print("KERNEL_OK")
</pallas_src>

<mosaic_0001>
module attributes {stable_mosaic.version = 11 : i64} {
  func.func @_lstm_fc_kernel(%arg0: memref<64x1xf32, #tpu.memory_space<vmem>>, %arg1: memref<1x256xf32, #tpu.memory_space<vmem>>, %arg2: memref<1x256xf32, #tpu.memory_space<vmem>>, %arg3: memref<128x512xf32, #tpu.memory_space<vmem>>, %arg4: memref<64x256xf32, #tpu.memory_space<vmem>>, %arg5: memref<1x256xf32, #tpu.memory_space<vmem>>, %arg6: memref<1x64xf32, #tpu.memory_space<vmem>>, %arg7: memref<1x1xf32, #tpu.memory_space<vmem>>, %arg8: memref<8x1xf32, #tpu.memory_space<vmem>>) attributes {dimension_semantics = [], scalar_prefetch = 0 : i64, scratch_operands = 0 : i64, tpu.core_type = #tpu.core_type<tc>} {
    %c0 = arith.constant 0 : index
    %c0_0 = arith.constant 0 : index
    %0 = vector.load %arg0[%c0, %c0_0] : memref<64x1xf32, #tpu.memory_space<vmem>>, vector<64x1xf32>
    %c0_1 = arith.constant 0 : index
    %c0_2 = arith.constant 0 : index
    %1 = vector.load %arg1[%c0_1, %c0_2] : memref<1x256xf32, #tpu.memory_space<vmem>>, vector<1x256xf32>
    %2 = vector.broadcast %0 : vector<64x1xf32> to vector<64x256xf32>
    %3 = vector.broadcast %1 : vector<1x256xf32> to vector<64x256xf32>
    %4 = arith.mulf %2, %3 : vector<64x256xf32>
    %c0_3 = arith.constant 0 : index
    %c0_4 = arith.constant 0 : index
    %5 = vector.load %arg2[%c0_3, %c0_4] : memref<1x256xf32, #tpu.memory_space<vmem>>, vector<1x256xf32>
    %6 = vector.broadcast %5 : vector<1x256xf32> to vector<64x256xf32>
    %7 = arith.addf %4, %6 : vector<64x256xf32>
    %c0_5 = arith.constant 0 : index
    %c0_6 = arith.constant 0 : index
    %8 = vector.load %arg5[%c0_5, %c0_6] : memref<1x256xf32, #tpu.memory_space<vmem>>, vector<1x256xf32>
    %cst = arith.constant 0.000000e+00 : f32
    %9 = vector.broadcast %cst : f32 to vector<8x64xf32>
    %10 = tpu.concatenate %9, %9 in 1 : vector<8x64xf32>, vector<8x64xf32> -> vector<8x128xf32>
    %c0_7 = arith.constant 0 : index
    %c0_8 = arith.constant 0 : index
    %11 = vector.load %arg3[%c0_7, %c0_8] : memref<128x512xf32, #tpu.memory_space<vmem>>, vector<128x512xf32>
    %cst_9 = arith.constant dense<0.000000e+00> : vector<8x512xf32>
    %12 = tpu.matmul %10, %11, %cst_9 {dimension_numbers = #tpu.dot_dimension_numbers<[1], [0], [0], [1], [0, 0, 1, 1], [], []>} : vector<8x128xf32>, vector<128x512xf32>, vector<8x512xf32> -> vector<8x512xf32>
    %13 = vector.extract_strided_slice %7 {offsets = [0, 0], sizes = [8, 256], strides = [1, 1]} : vector<64x256xf32> to vector<8x256xf32>
    %14 = vector.extract_strided_slice %12 {offsets = [0, 0], sizes = [8, 256], strides = [1, 1]} : vector<8x512xf32> to vector<8x256xf32>
    %15 = arith.addf %13, %14 : vector<8x256xf32>
    %16 = vector.extract_strided_slice %15 {offsets = [0, 0], sizes = [8, 64], strides = [1, 1]} : vector<8x256xf32> to vector<8x64xf32>
    %17 = arith.negf %16 : vector<8x64xf32>
    %18 = math.exp %17 : vector<8x64xf32>
    %cst_10 = arith.constant 1.000000e+00 : f32
    %19 = vector.broadcast %cst_10 : f32 to vector<8x64xf32>
    %20 = arith.addf %19, %18 : vector<8x64xf32>
    %21 = arith.divf %19, %20 : vector<8x64xf32>
    %22 = vector.extract_strided_slice %15 {offsets = [0, 64], sizes = [8, 64], strides = [1, 1]} : vector<8x256xf32> to vector<8x64xf32>
    %23 = arith.negf %22 : vector<8x64xf32>
    %24 = math.exp %23 : vector<8x64xf32>
    %cst_11 = arith.constant 1.000000e+00 : f32
    %25 = vector.broadcast %cst_11 : f32 to vector<8x64xf32>
    %26 = arith.addf %25, %24 : vector<8x64xf32>
    %27 = arith.divf %25, %26 : vector<8x64xf32>
    %28 = vector.extract_strided_slice %15 {offsets = [0, 128], sizes = [8, 64], strides = [1, 1]} : vector<8x256xf32> to vector<8x64xf32>
    %29 = math.tanh %28 : vector<8x64xf32>
    %30 = vector.extract_strided_slice %15 {offsets = [0, 192], sizes = [8, 64], strides = [1, 1]} : vector<8x256xf32> to vector<8x64xf32>
    %31 = arith.negf %30 : vector<8x64xf32>
    %32 = math.exp %31 : vector<8x64xf32>
    %cst_12 = arith.constant 1.000000e+00 : f32
    %33 = vector.broadcast %cst_12 : f32 to vector<8x64xf32>
    %34 = arith.addf %33, %32 : vector<8x64xf32>
    %35 = arith.divf %33, %34 : vector<8x64xf32>
    %36 = arith.mulf %27, %9 : vector<8x64xf32>
    %37 = arith.mulf %21, %29 : vector<8x64xf32>
    %38 = arith.addf %36, %37 : vector<8x64xf32>
    %39 = math.tanh %38 : vector<8x64xf32>
    %40 = arith.mulf %35, %39 : vector<8x64xf32>
    %c0_13 = arith.constant 0 : index
    %c0_14 = arith.constant 0 : index
    %41 = vector.load %arg4[%c0_13, %c0_14] : memref<64x256xf32, #tpu.memory_space<vmem>>, vector<64x256xf32>
    %cst_15 = arith.constant dense<0.000000e+00> : vector<8x256xf32>
    %42 = tpu.matmul %40, %41, %cst_15 {dimension_numbers = #tpu.dot_dimension_numbers<[1], [0], [0], [1], [0, 0, 1, 1], [], []>} : vector<8x64xf32>, vector<64x256xf32>, vector<8x256xf32> -> vector<8x256xf32>
    %43 = vector.extract_strided_slice %12 {offsets = [0, 256], sizes = [8, 256], strides = [1, 1]} : vector<8x512xf32> to vector<8x256xf32>
    %44 = arith.addf %42, %43 : vector<8x256xf32>
    %45 = vector.broadcast %8 : vector<1x256xf32> to vector<8x256xf32>
    %46 = arith.addf %44, %45 : vector<8x256xf32>
    %47 = vector.extract_strided_slice %46 {offsets = [0, 0], sizes = [8, 64], strides = [1, 1]} : vector<8x256xf32> to vector<8x64xf32>
    %48 = arith.negf %47 : vector<8x64xf32>
    %49 = math.exp %48 : vector<8x64xf32>
    %cst_16 = arith.constant 1.000000e+00 : f32
    %50 = vector.broadcast %cst_16 : f32 to vector<8x64xf32>
    %51 = arith.addf %50, %49 : vector<8x64xf32>
    %52 = arith.divf %50, %51 : vector<8x64xf32>
    %53 = vector.extract_strided_slice %46 {offsets = [0, 64], sizes = [8, 64], strides = [1, 1]} : vector<8x256xf32> to vector<8x64xf32>
    %54 = arith.negf %53 : vector<8x64xf32>
    %55 = math.exp %54 : vector<8x64xf32>
    %cst_17 = arith.constant 1.000000e+00 : f32
    %56 = vector.broadcast %cst_17 : f32 to vector<8x64xf32>
    %57 = arith.addf %56, %55 : vector<8x64xf32>
    %58 = arith.divf %56, %57 : vector<8x64xf32>
    %59 = vector.extract_strided_slice %46 {offsets = [0, 128], sizes = [8, 64], strides = [1, 1]} : vector<8x256xf32> to vector<8x64xf32>
    %60 = math.tanh %59 : vector<8x64xf32>
    %61 = vector.extract_strided_slice %46 {offsets = [0, 192], sizes = [8, 64], strides = [1, 1]} : vector<8x256xf32> to vector<8x64xf32>
    %62 = arith.negf %61 : vector<8x64xf32>
    %63 = math.exp %62 : vector<8x64xf32>
    %cst_18 = arith.constant 1.000000e+00 : f32
    %64 = vector.broadcast %cst_18 : f32 to vector<8x64xf32>
    %65 = arith.addf %64, %63 : vector<8x64xf32>
    %66 = arith.divf %64, %65 : vector<8x64xf32>
    %67 = arith.mulf %58, %9 : vector<8x64xf32>
    %68 = arith.mulf %52, %60 : vector<8x64xf32>
    %69 = arith.addf %67, %68 : vector<8x64xf32>
    %70 = math.tanh %69 : vector<8x64xf32>
    %71 = arith.mulf %66, %70 : vector<8x64xf32>
    %72 = tpu.concatenate %40, %71 in 1 : vector<8x64xf32>, vector<8x64xf32> -> vector<8x128xf32>
    %c0_19 = arith.constant 0 : index
    %c0_20 = arith.constant 0 : index
    %73 = vector.load %arg3[%c0_19, %c0_20] : memref<128x512xf32, #tpu.memory_space<vmem>>, vector<128x512xf32>
    %cst_21 = arith.constant dense<0.000000e+00> : vector<8x512xf32>
    %74 = tpu.matmul %72, %73, %cst_21 {dimension_numbers = #tpu.dot_dimension_numbers<[1], [0], [0], [1], [0, 0, 1, 1], [], []>} : vector<8x128xf32>, vector<128x512xf32>, vector<8x512xf32> -> vector<8x512xf32>
    %75 = vector.extract_strided_slice %7 {offsets = [8, 0], sizes = [8, 256], strides = [1, 1]} : vector<64x256xf32> to vector<8x256xf32>
    %76 = vector.extract_strided_slice %74 {offsets = [0, 0], sizes = [8, 256], strides = [1, 1]} : vector<8x512xf32> to vector<8x256xf32>
    %77 = arith.addf %75, %76 : vector<8x256xf32>
    %78 = vector.extract_strided_slice %77 {offsets = [0, 0], sizes = [8, 64], strides = [1, 1]} : vector<8x256xf32> to vector<8x64xf32>
    %79 = arith.negf %78 : vector<8x64xf32>
    %80 = math.exp %79 : vector<8x64xf32>
    %cst_22 = arith.constant 1.000000e+00 : f32
    %81 = vector.broadcast %cst_22 : f32 to vector<8x64xf32>
    %82 = arith.addf %81, %80 : vector<8x64xf32>
    %83 = arith.divf %81, %82 : vector<8x64xf32>
    %84 = vector.extract_strided_slice %77 {offsets = [0, 64], sizes = [8, 64], strides = [1, 1]} : vector<8x256xf32> to vector<8x64xf32>
    %85 = arith.negf %84 : vector<8x64xf32>
    %86 = math.exp %85 : vector<8x64xf32>
    %cst_23 = arith.constant 1.000000e+00 : f32
    %87 = vector.broadcast %cst_23 : f32 to vector<8x64xf32>
    %88 = arith.addf %87, %86 : vector<8x64xf32>
    %89 = arith.divf %87, %88 : vector<8x64xf32>
    %90 = vector.extract_strided_slice %77 {offsets = [0, 128], sizes = [8, 64], strides = [1, 1]} : vector<8x256xf32> to vector<8x64xf32>
    %91 = math.tanh %90 : vector<8x64xf32>
    %92 = vector.extract_strided_slice %77 {offsets = [0, 192], sizes = [8, 64], strides = [1, 1]} : vector<8x256xf32> to vector<8x64xf32>
    %93 = arith.negf %92 : vector<8x64xf32>
    %94 = math.exp %93 : vector<8x64xf32>
    %cst_24 = arith.constant 1.000000e+00 : f32
    %95 = vector.broadcast %cst_24 : f32 to vector<8x64xf32>
    %96 = arith.addf %95, %94 : vector<8x64xf32>
    %97 = arith.divf %95, %96 : vector<8x64xf32>
    %98 = arith.mulf %89, %38 : vector<8x64xf32>
    %99 = arith.mulf %83, %91 : vector<8x64xf32>
    %100 = arith.addf %98, %99 : vector<8x64xf32>
    %101 = math.tanh %100 : vector<8x64xf32>
    %102 = arith.mulf %97, %101 : vector<8x64xf32>
    %c0_25 = arith.constant 0 : index
    %c0_26 = arith.constant 0 : index
    %103 = vector.load %arg4[%c0_25, %c0_26] : memref<64x256xf32, #tpu.memory_space<vmem>>, vector<64x256xf32>
    %cst_27 = arith.constant dense<0.000000e+00> : vector<8x256xf32>
    %104 = tpu.matmul %102, %103, %cst_27 {dimension_numbers = #tpu.dot_dimension_numbers<[1], [0], [0], [1], [0, 0, 1, 1], [], []>} : vector<8x64xf32>, vector<64x256xf32>, vector<8x256xf32> -> vector<8x256xf32>
    %105 = vector.extract_strided_slice %74 {offsets = [0, 256], sizes = [8, 256], strides = [1, 1]} : vector<8x512xf32> to vector<8x256xf32>
    %106 = arith.addf %104, %105 : vector<8x256xf32>
    %107 = vector.broadcast %8 : vector<1x256xf32> to vector<8x256xf32>
    %108 = arith.addf %106, %107 : vector<8x256xf32>
    %109 = vector.extract_strided_slice %108 {offsets = [0, 0], sizes = [8, 64], strides = [1, 1]} : vector<8x256xf32> to vector<8x64xf32>
    %110 = arith.negf %109 : vector<8x64xf32>
    %111 = math.exp %110 : vector<8x64xf32>
    %cst_28 = arith.constant 1.000000e+00 : f32
    %112 = vector.broadcast %cst_28 : f32 to vector<8x64xf32>
    %113 = arith.addf %112, %111 : vector<8x64xf32>
    %114 = arith.divf %112, %113 : vector<8x64xf32>
    %115 = vector.extract_strided_slice %108 {offsets = [0, 64], sizes = [8, 64], strides = [1, 1]} : vector<8x256xf32> to vector<8x64xf32>
    %116 = arith.negf %115 : vector<8x64xf32>
    %117 = math.exp %116 : vector<8x64xf32>
    %cst_29 = arith.constant 1.000000e+00 : f32
    %118 = vector.broadcast %cst_29 : f32 to vector<8x64xf32>
    %119 = arith.addf %118, %117 : vector<8x64xf32>
    %120 = arith.divf %118, %119 : vector<8x64xf32>
    %121 = vector.extract_strided_slice %108 {offsets = [0, 128], sizes = [8, 64], strides = [1, 1]} : vector<8x256xf32> to vector<8x64xf32>
    %122 = math.tanh %121 : vector<8x64xf32>
    %123 = vector.extract_strided_slice %108 {offsets = [0, 192], sizes = [8, 64], strides = [1, 1]} : vector<8x256xf32> to vector<8x64xf32>
    %124 = arith.negf %123 : vector<8x64xf32>
    %125 = math.exp %124 : vector<8x64xf32>
    %cst_30 = arith.constant 1.000000e+00 : f32
    %126 = vector.broadcast %cst_30 : f32 to vector<8x64xf32>
    %127 = arith.addf %126, %125 : vector<8x64xf32>
    %128 = arith.divf %126, %127 : vector<8x64xf32>
    %129 = arith.mulf %120, %69 : vector<8x64xf32>
    %130 = arith.mulf %114, %122 : vector<8x64xf32>
    %131 = arith.addf %129, %130 : vector<8x64xf32>
    %132 = math.tanh %131 : vector<8x64xf32>
    %133 = arith.mulf %128, %132 : vector<8x64xf32>
    %134 = tpu.concatenate %102, %133 in 1 : vector<8x64xf32>, vector<8x64xf32> -> vector<8x128xf32>
    %c0_31 = arith.constant 0 : index
    %c0_32 = arith.constant 0 : index
    %135 = vector.load %arg3[%c0_31, %c0_32] : memref<128x512xf32, #tpu.memory_space<vmem>>, vector<128x512xf32>
    %cst_33 = arith.constant dense<0.000000e+00> : vector<8x512xf32>
    %136 = tpu.matmul %134, %135, %cst_33 {dimension_numbers = #tpu.dot_dimension_numbers<[1], [0], [0], [1], [0, 0, 1, 1], [], []>} : vector<8x128xf32>, vector<128x512xf32>, vector<8x512xf32> -> vector<8x512xf32>
    %137 = vector.extract_strided_slice %7 {offsets = [16, 0], sizes = [8, 256], strides = [1, 1]} : vector<64x256xf32> to vector<8x256xf32>
    %138 = vector.extract_strided_slice %136 {offsets = [0, 0], sizes = [8, 256], strides = [1, 1]} : vector<8x512xf32> to vector<8x256xf32>
    %139 = arith.addf %137, %138 : vector<8x256xf32>
    %140 = vector.extract_strided_slice %139 {offsets = [0, 0], sizes = [8, 64], strides = [1, 1]} : vector<8x256xf32> to vector<8x64xf32>
    %141 = arith.negf %140 : vector<8x64xf32>
    %142 = math.exp %141 : vector<8x64xf32>
    %cst_34 = arith.constant 1.000000e+00 : f32
    %143 = vector.broadcast %cst_34 : f32 to vector<8x64xf32>
    %144 = arith.addf %143, %142 : vector<8x64xf32>
    %145 = arith.divf %143, %144 : vector<8x64xf32>
    %146 = vector.extract_strided_slice %139 {offsets = [0, 64], sizes = [8, 64], strides = [1, 1]} : vector<8x256xf32> to vector<8x64xf32>
    %147 = arith.negf %146 : vector<8x64xf32>
    %148 = math.exp %147 : vector<8x64xf32>
    %cst_35 = arith.constant 1.000000e+00 : f32
    %149 = vector.broadcast %cst_35 : f32 to vector<8x64xf32>
    %150 = arith.addf %149, %148 : vector<8x64xf32>
    %151 = arith.divf %149, %150 : vector<8x64xf32>
    %152 = vector.extract_strided_slice %139 {offsets = [0, 128], sizes = [8, 64], strides = [1, 1]} : vector<8x256xf32> to vector<8x64xf32>
    %153 = math.tanh %152 : vector<8x64xf32>
    %154 = vector.extract_strided_slice %139 {offsets = [0, 192], sizes = [8, 64], strides = [1, 1]} : vector<8x256xf32> to vector<8x64xf32>
    %155 = arith.negf %154 : vector<8x64xf32>
    %156 = math.exp %155 : vector<8x64xf32>
    %cst_36 = arith.constant 1.000000e+00 : f32
    %157 = vector.broadcast %cst_36 : f32 to vector<8x64xf32>
    %158 = arith.addf %157, %156 : vector<8x64xf32>
    %159 = arith.divf %157, %158 : vector<8x64xf32>
    %160 = arith.mulf %151, %100 : vector<8x64xf32>
    %161 = arith.mulf %145, %153 : vector<8x64xf32>
    %162 = arith.addf %160, %161 : vector<8x64xf32>
    %163 = math.tanh %162 : vector<8x64xf32>
    %164 = arith.mulf %159, %163 : vector<8x64xf32>
    %c0_37 = arith.constant 0 : index
    %c0_38 = arith.constant 0 : index
    %165 = vector.load %arg4[%c0_37, %c0_38] : memref<64x256xf32, #tpu.memory_space<vmem>>, vector<64x256xf32>
    %cst_39 = arith.constant dense<0.000000e+00> : vector<8x256xf32>
    %166 = tpu.matmul %164, %165, %cst_39 {dimension_numbers = #tpu.dot_dimension_numbers<[1], [0], [0], [1], [0, 0, 1, 1], [], []>} : vector<8x64xf32>, vector<64x256xf32>, vector<8x256xf32> -> vector<8x256xf32>
    %167 = vector.extract_strided_slice %136 {offsets = [0, 256], sizes = [8, 256], strides = [1, 1]} : vector<8x512xf32> to vector<8x256xf32>
    %168 = arith.addf %166, %167 : vector<8x256xf32>
    %169 = vector.broadcast %8 : vector<1x256xf32> to vector<8x256xf32>
    %170 = arith.addf %168, %169 : vector<8x256xf32>
    %171 = vector.extract_strided_slice %170 {offsets = [0, 0], sizes = [8, 64], strides = [1, 1]} : vector<8x256xf32> to vector<8x64xf32>
    %172 = arith.negf %171 : vector<8x64xf32>
    %173 = math.exp %172 : vector<8x64xf32>
    %cst_40 = arith.constant 1.000000e+00 : f32
    %174 = vector.broadcast %cst_40 : f32 to vector<8x64xf32>
    %175 = arith.addf %174, %173 : vector<8x64xf32>
    %176 = arith.divf %174, %175 : vector<8x64xf32>
    %177 = vector.extract_strided_slice %170 {offsets = [0, 64], sizes = [8, 64], strides = [1, 1]} : vector<8x256xf32> to vector<8x64xf32>
    %178 = arith.negf %177 : vector<8x64xf32>
    %179 = math.exp %178 : vector<8x64xf32>
    %cst_41 = arith.constant 1.000000e+00 : f32
    %180 = vector.broadcast %cst_41 : f32 to vector<8x64xf32>
    %181 = arith.addf %180, %179 : vector<8x64xf32>
    %182 = arith.divf %180, %181 : vector<8x64xf32>
    %183 = vector.extract_strided_slice %170 {offsets = [0, 128], sizes = [8, 64], strides = [1, 1]} : vector<8x256xf32> to vector<8x64xf32>
    %184 = math.tanh %183 : vector<8x64xf32>
    %185 = vector.extract_strided_slice %170 {offsets = [0, 192], sizes = [8, 64], strides = [1, 1]} : vector<8x256xf32> to vector<8x64xf32>
    %186 = arith.negf %185 : vector<8x64xf32>
    %187 = math.exp %186 : vector<8x64xf32>
    %cst_42 = arith.constant 1.000000e+00 : f32
    %188 = vector.broadcast %cst_42 : f32 to vector<8x64xf32>
    %189 = arith.addf %188, %187 : vector<8x64xf32>
    %190 = arith.divf %188, %189 : vector<8x64xf32>
    %191 = arith.mulf %182, %131 : vector<8x64xf32>
    %192 = arith.mulf %176, %184 : vector<8x64xf32>
    %193 = arith.addf %191, %192 : vector<8x64xf32>
    %194 = math.tanh %193 : vector<8x64xf32>
    %195 = arith.mulf %190, %194 : vector<8x64xf32>
    %196 = tpu.concatenate %164, %195 in 1 : vector<8x64xf32>, vector<8x64xf32> -> vector<8x128xf32>
    %c0_43 = arith.constant 0 : index
    %c0_44 = arith.constant 0 : index
    %197 = vector.load %arg3[%c0_43, %c0_44] : memref<128x512xf32, #tpu.memory_space<vmem>>, vector<128x512xf32>
    %cst_45 = arith.constant dense<0.000000e+00> : vector<8x512xf32>
    %198 = tpu.matmul %196, %197, %cst_45 {dimension_numbers = #tpu.dot_dimension_numbers<[1], [0], [0], [1], [0, 0, 1, 1], [], []>} : vector<8x128xf32>, vector<128x512xf32>, vector<8x512xf32> -> vector<8x512xf32>
    %199 = vector.extract_strided_slice %7 {offsets = [24, 0], sizes = [8, 256], strides = [1, 1]} : vector<64x256xf32> to vector<8x256xf32>
    %200 = vector.extract_strided_slice %198 {offsets = [0, 0], sizes = [8, 256], strides = [1, 1]} : vector<8x512xf32> to vector<8x256xf32>
    %201 = arith.addf %199, %200 : vector<8x256xf32>
    %202 = vector.extract_strided_slice %201 {offsets = [0, 0], sizes = [8, 64], strides = [1, 1]} : vector<8x256xf32> to vector<8x64xf32>
    %203 = arith.negf %202 : vector<8x64xf32>
    %204 = math.exp %203 : vector<8x64xf32>
    %cst_46 = arith.constant 1.000000e+00 : f32
    %205 = vector.broadcast %cst_46 : f32 to vector<8x64xf32>
    %206 = arith.addf %205, %204 : vector<8x64xf32>
    %207 = arith.divf %205, %206 : vector<8x64xf32>
    %208 = vector.extract_strided_slice %201 {offsets = [0, 64], sizes = [8, 64], strides = [1, 1]} : vector<8x256xf32> to vector<8x64xf32>
    %209 = arith.negf %208 : vector<8x64xf32>
    %210 = math.exp %209 : vector<8x64xf32>
    %cst_47 = arith.constant 1.000000e+00 : f32
    %211 = vector.broadcast %cst_47 : f32 to vector<8x64xf32>
    %212 = arith.addf %211, %210 : vector<8x64xf32>
    %213 = arith.divf %211, %212 : vector<8x64xf32>
    %214 = vector.extract_strided_slice %201 {offsets = [0, 128], sizes = [8, 64], strides = [1, 1]} : vector<8x256xf32> to vector<8x64xf32>
    %215 = math.tanh %214 : vector<8x64xf32>
    %216 = vector.extract_strided_slice %201 {offsets = [0, 192], sizes = [8, 64], strides = [1, 1]} : vector<8x256xf32> to vector<8x64xf32>
    %217 = arith.negf %216 : vector<8x64xf32>
    %218 = math.exp %217 : vector<8x64xf32>
    %cst_48 = arith.constant 1.000000e+00 : f32
    %219 = vector.broadcast %cst_48 : f32 to vector<8x64xf32>
    %220 = arith.addf %219, %218 : vector<8x64xf32>
    %221 = arith.divf %219, %220 : vector<8x64xf32>
    %222 = arith.mulf %213, %162 : vector<8x64xf32>
    %223 = arith.mulf %207, %215 : vector<8x64xf32>
    %224 = arith.addf %222, %223 : vector<8x64xf32>
    %225 = math.tanh %224 : vector<8x64xf32>
    %226 = arith.mulf %221, %225 : vector<8x64xf32>
    %c0_49 = arith.constant 0 : index
    %c0_50 = arith.constant 0 : index
    %227 = vector.load %arg4[%c0_49, %c0_50] : memref<64x256xf32, #tpu.memory_space<vmem>>, vector<64x256xf32>
    %cst_51 = arith.constant dense<0.000000e+00> : vector<8x256xf32>
    %228 = tpu.matmul %226, %227, %cst_51 {dimension_numbers = #tpu.dot_dimension_numbers<[1], [0], [0], [1], [0, 0, 1, 1], [], []>} : vector<8x64xf32>, vector<64x256xf32>, vector<8x256xf32> -> vector<8x256xf32>
    %229 = vector.extract_strided_slice %198 {offsets = [0, 256], sizes = [8, 256], strides = [1, 1]} : vector<8x512xf32> to vector<8x256xf32>
    %230 = arith.addf %228, %229 : vector<8x256xf32>
    %231 = vector.broadcast %8 : vector<1x256xf32> to vector<8x256xf32>
    %232 = arith.addf %230, %231 : vector<8x256xf32>
    %233 = vector.extract_strided_slice %232 {offsets = [0, 0], sizes = [8, 64], strides = [1, 1]} : vector<8x256xf32> to vector<8x64xf32>
    %234 = arith.negf %233 : vector<8x64xf32>
    %235 = math.exp %234 : vector<8x64xf32>
    %cst_52 = arith.constant 1.000000e+00 : f32
    %236 = vector.broadcast %cst_52 : f32 to vector<8x64xf32>
    %237 = arith.addf %236, %235 : vector<8x64xf32>
    %238 = arith.divf %236, %237 : vector<8x64xf32>
    %239 = vector.extract_strided_slice %232 {offsets = [0, 64], sizes = [8, 64], strides = [1, 1]} : vector<8x256xf32> to vector<8x64xf32>
    %240 = arith.negf %239 : vector<8x64xf32>
    %241 = math.exp %240 : vector<8x64xf32>
    %cst_53 = arith.constant 1.000000e+00 : f32
    %242 = vector.broadcast %cst_53 : f32 to vector<8x64xf32>
    %243 = arith.addf %242, %241 : vector<8x64xf32>
    %244 = arith.divf %242, %243 : vector<8x64xf32>
    %245 = vector.extract_strided_slice %232 {offsets = [0, 128], sizes = [8, 64], strides = [1, 1]} : vector<8x256xf32> to vector<8x64xf32>
    %246 = math.tanh %245 : vector<8x64xf32>
    %247 = vector.extract_strided_slice %232 {offsets = [0, 192], sizes = [8, 64], strides = [1, 1]} : vector<8x256xf32> to vector<8x64xf32>
    %248 = arith.negf %247 : vector<8x64xf32>
    %249 = math.exp %248 : vector<8x64xf32>
    %cst_54 = arith.constant 1.000000e+00 : f32
    %250 = vector.broadcast %cst_54 : f32 to vector<8x64xf32>
    %251 = arith.addf %250, %249 : vector<8x64xf32>
    %252 = arith.divf %250, %251 : vector<8x64xf32>
    %253 = arith.mulf %244, %193 : vector<8x64xf32>
    %254 = arith.mulf %238, %246 : vector<8x64xf32>
    %255 = arith.addf %253, %254 : vector<8x64xf32>
    %256 = math.tanh %255 : vector<8x64xf32>
    %257 = arith.mulf %252, %256 : vector<8x64xf32>
    %258 = tpu.concatenate %226, %257 in 1 : vector<8x64xf32>, vector<8x64xf32> -> vector<8x128xf32>
    %c0_55 = arith.constant 0 : index
    %c0_56 = arith.constant 0 : index
    %259 = vector.load %arg3[%c0_55, %c0_56] : memref<128x512xf32, #tpu.memory_space<vmem>>, vector<128x512xf32>
    %cst_57 = arith.constant dense<0.000000e+00> : vector<8x512xf32>
    %260 = tpu.matmul %258, %259, %cst_57 {dimension_numbers = #tpu.dot_dimension_numbers<[1], [0], [0], [1], [0, 0, 1, 1], [], []>} : vector<8x128xf32>, vector<128x512xf32>, vector<8x512xf32> -> vector<8x512xf32>
    %261 = vector.extract_strided_slice %7 {offsets = [32, 0], sizes = [8, 256], strides = [1, 1]} : vector<64x256xf32> to vector<8x256xf32>
    %262 = vector.extract_strided_slice %260 {offsets = [0, 0], sizes = [8, 256], strides = [1, 1]} : vector<8x512xf32> to vector<8x256xf32>
    %263 = arith.addf %261, %262 : vector<8x256xf32>
    %264 = vector.extract_strided_slice %263 {offsets = [0, 0], sizes = [8, 64], strides = [1, 1]} : vector<8x256xf32> to vector<8x64xf32>
    %265 = arith.negf %264 : vector<8x64xf32>
    %266 = math.exp %265 : vector<8x64xf32>
    %cst_58 = arith.constant 1.000000e+00 : f32
    %267 = vector.broadcast %cst_58 : f32 to vector<8x64xf32>
    %268 = arith.addf %267, %266 : vector<8x64xf32>
    %269 = arith.divf %267, %268 : vector<8x64xf32>
    %270 = vector.extract_strided_slice %263 {offsets = [0, 64], sizes = [8, 64], strides = [1, 1]} : vector<8x256xf32> to vector<8x64xf32>
    %271 = arith.negf %270 : vector<8x64xf32>
    %272 = math.exp %271 : vector<8x64xf32>
    %cst_59 = arith.constant 1.000000e+00 : f32
    %273 = vector.broadcast %cst_59 : f32 to vector<8x64xf32>
    %274 = arith.addf %273, %272 : vector<8x64xf32>
    %275 = arith.divf %273, %274 : vector<8x64xf32>
    %276 = vector.extract_strided_slice %263 {offsets = [0, 128], sizes = [8, 64], strides = [1, 1]} : vector<8x256xf32> to vector<8x64xf32>
    %277 = math.tanh %276 : vector<8x64xf32>
    %278 = vector.extract_strided_slice %263 {offsets = [0, 192], sizes = [8, 64], strides = [1, 1]} : vector<8x256xf32> to vector<8x64xf32>
    %279 = arith.negf %278 : vector<8x64xf32>
    %280 = math.exp %279 : vector<8x64xf32>
    %cst_60 = arith.constant 1.000000e+00 : f32
    %281 = vector.broadcast %cst_60 : f32 to vector<8x64xf32>
    %282 = arith.addf %281, %280 : vector<8x64xf32>
    %283 = arith.divf %281, %282 : vector<8x64xf32>
    %284 = arith.mulf %275, %224 : vector<8x64xf32>
    %285 = arith.mulf %269, %277 : vector<8x64xf32>
    %286 = arith.addf %284, %285 : vector<8x64xf32>
    %287 = math.tanh %286 : vector<8x64xf32>
    %288 = arith.mulf %283, %287 : vector<8x64xf32>
    %c0_61 = arith.constant 0 : index
    %c0_62 = arith.constant 0 : index
    %289 = vector.load %arg4[%c0_61, %c0_62] : memref<64x256xf32, #tpu.memory_space<vmem>>, vector<64x256xf32>
    %cst_63 = arith.constant dense<0.000000e+00> : vector<8x256xf32>
    %290 = tpu.matmul %288, %289, %cst_63 {dimension_numbers = #tpu.dot_dimension_numbers<[1], [0], [0], [1], [0, 0, 1, 1], [], []>} : vector<8x64xf32>, vector<64x256xf32>, vector<8x256xf32> -> vector<8x256xf32>
    %291 = vector.extract_strided_slice %260 {offsets = [0, 256], sizes = [8, 256], strides = [1, 1]} : vector<8x512xf32> to vector<8x256xf32>
    %292 = arith.addf %290, %291 : vector<8x256xf32>
    %293 = vector.broadcast %8 : vector<1x256xf32> to vector<8x256xf32>
    %294 = arith.addf %292, %293 : vector<8x256xf32>
    %295 = vector.extract_strided_slice %294 {offsets = [0, 0], sizes = [8, 64], strides = [1, 1]} : vector<8x256xf32> to vector<8x64xf32>
    %296 = arith.negf %295 : vector<8x64xf32>
    %297 = math.exp %296 : vector<8x64xf32>
    %cst_64 = arith.constant 1.000000e+00 : f32
    %298 = vector.broadcast %cst_64 : f32 to vector<8x64xf32>
    %299 = arith.addf %298, %297 : vector<8x64xf32>
    %300 = arith.divf %298, %299 : vector<8x64xf32>
    %301 = vector.extract_strided_slice %294 {offsets = [0, 64], sizes = [8, 64], strides = [1, 1]} : vector<8x256xf32> to vector<8x64xf32>
    %302 = arith.negf %301 : vector<8x64xf32>
    %303 = math.exp %302 : vector<8x64xf32>
    %cst_65 = arith.constant 1.000000e+00 : f32
    %304 = vector.broadcast %cst_65 : f32 to vector<8x64xf32>
    %305 = arith.addf %304, %303 : vector<8x64xf32>
    %306 = arith.divf %304, %305 : vector<8x64xf32>
    %307 = vector.extract_strided_slice %294 {offsets = [0, 128], sizes = [8, 64], strides = [1, 1]} : vector<8x256xf32> to vector<8x64xf32>
    %308 = math.tanh %307 : vector<8x64xf32>
    %309 = vector.extract_strided_slice %294 {offsets = [0, 192], sizes = [8, 64], strides = [1, 1]} : vector<8x256xf32> to vector<8x64xf32>
    %310 = arith.negf %309 : vector<8x64xf32>
    %311 = math.exp %310 : vector<8x64xf32>
    %cst_66 = arith.constant 1.000000e+00 : f32
    %312 = vector.broadcast %cst_66 : f32 to vector<8x64xf32>
    %313 = arith.addf %312, %311 : vector<8x64xf32>
    %314 = arith.divf %312, %313 : vector<8x64xf32>
    %315 = arith.mulf %306, %255 : vector<8x64xf32>
    %316 = arith.mulf %300, %308 : vector<8x64xf32>
    %317 = arith.addf %315, %316 : vector<8x64xf32>
    %318 = math.tanh %317 : vector<8x64xf32>
    %319 = arith.mulf %314, %318 : vector<8x64xf32>
    %320 = tpu.concatenate %288, %319 in 1 : vector<8x64xf32>, vector<8x64xf32> -> vector<8x128xf32>
    %c0_67 = arith.constant 0 : index
    %c0_68 = arith.constant 0 : index
    %321 = vector.load %arg3[%c0_67, %c0_68] : memref<128x512xf32, #tpu.memory_space<vmem>>, vector<128x512xf32>
    %cst_69 = arith.constant dense<0.000000e+00> : vector<8x512xf32>
    %322 = tpu.matmul %320, %321, %cst_69 {dimension_numbers = #tpu.dot_dimension_numbers<[1], [0], [0], [1], [0, 0, 1, 1], [], []>} : vector<8x128xf32>, vector<128x512xf32>, vector<8x512xf32> -> vector<8x512xf32>
    %323 = vector.extract_strided_slice %7 {offsets = [40, 0], sizes = [8, 256], strides = [1, 1]} : vector<64x256xf32> to vector<8x256xf32>
    %324 = vector.extract_strided_slice %322 {offsets = [0, 0], sizes = [8, 256], strides = [1, 1]} : vector<8x512xf32> to vector<8x256xf32>
    %325 = arith.addf %323, %324 : vector<8x256xf32>
    %326 = vector.extract_strided_slice %325 {offsets = [0, 0], sizes = [8, 64], strides = [1, 1]} : vector<8x256xf32> to vector<8x64xf32>
    %327 = arith.negf %326 : vector<8x64xf32>
    %328 = math.exp %327 : vector<8x64xf32>
    %cst_70 = arith.constant 1.000000e+00 : f32
    %329 = vector.broadcast %cst_70 : f32 to vector<8x64xf32>
    %330 = arith.addf %329, %328 : vector<8x64xf32>
    %331 = arith.divf %329, %330 : vector<8x64xf32>
    %332 = vector.extract_strided_slice %325 {offsets = [0, 64], sizes = [8, 64], strides = [1, 1]} : vector<8x256xf32> to vector<8x64xf32>
    %333 = arith.negf %332 : vector<8x64xf32>
    %334 = math.exp %333 : vector<8x64xf32>
    %cst_71 = arith.constant 1.000000e+00 : f32
    %335 = vector.broadcast %cst_71 : f32 to vector<8x64xf32>
    %336 = arith.addf %335, %334 : vector<8x64xf32>
    %337 = arith.divf %335, %336 : vector<8x64xf32>
    %338 = vector.extract_strided_slice %325 {offsets = [0, 128], sizes = [8, 64], strides = [1, 1]} : vector<8x256xf32> to vector<8x64xf32>
    %339 = math.tanh %338 : vector<8x64xf32>
    %340 = vector.extract_strided_slice %325 {offsets = [0, 192], sizes = [8, 64], strides = [1, 1]} : vector<8x256xf32> to vector<8x64xf32>
    %341 = arith.negf %340 : vector<8x64xf32>
    %342 = math.exp %341 : vector<8x64xf32>
    %cst_72 = arith.constant 1.000000e+00 : f32
    %343 = vector.broadcast %cst_72 : f32 to vector<8x64xf32>
    %344 = arith.addf %343, %342 : vector<8x64xf32>
    %345 = arith.divf %343, %344 : vector<8x64xf32>
    %346 = arith.mulf %337, %286 : vector<8x64xf32>
    %347 = arith.mulf %331, %339 : vector<8x64xf32>
    %348 = arith.addf %346, %347 : vector<8x64xf32>
    %349 = math.tanh %348 : vector<8x64xf32>
    %350 = arith.mulf %345, %349 : vector<8x64xf32>
    %c0_73 = arith.constant 0 : index
    %c0_74 = arith.constant 0 : index
    %351 = vector.load %arg4[%c0_73, %c0_74] : memref<64x256xf32, #tpu.memory_space<vmem>>, vector<64x256xf32>
    %cst_75 = arith.constant dense<0.000000e+00> : vector<8x256xf32>
    %352 = tpu.matmul %350, %351, %cst_75 {dimension_numbers = #tpu.dot_dimension_numbers<[1], [0], [0], [1], [0, 0, 1, 1], [], []>} : vector<8x64xf32>, vector<64x256xf32>, vector<8x256xf32> -> vector<8x256xf32>
    %353 = vector.extract_strided_slice %322 {offsets = [0, 256], sizes = [8, 256], strides = [1, 1]} : vector<8x512xf32> to vector<8x256xf32>
    %354 = arith.addf %352, %353 : vector<8x256xf32>
    %355 = vector.broadcast %8 : vector<1x256xf32> to vector<8x256xf32>
    %356 = arith.addf %354, %355 : vector<8x256xf32>
    %357 = vector.extract_strided_slice %356 {offsets = [0, 0], sizes = [8, 64], strides = [1, 1]} : vector<8x256xf32> to vector<8x64xf32>
    %358 = arith.negf %357 : vector<8x64xf32>
    %359 = math.exp %358 : vector<8x64xf32>
    %cst_76 = arith.constant 1.000000e+00 : f32
    %360 = vector.broadcast %cst_76 : f32 to vector<8x64xf32>
    %361 = arith.addf %360, %359 : vector<8x64xf32>
    %362 = arith.divf %360, %361 : vector<8x64xf32>
    %363 = vector.extract_strided_slice %356 {offsets = [0, 64], sizes = [8, 64], strides = [1, 1]} : vector<8x256xf32> to vector<8x64xf32>
    %364 = arith.negf %363 : vector<8x64xf32>
    %365 = math.exp %364 : vector<8x64xf32>
    %cst_77 = arith.constant 1.000000e+00 : f32
    %366 = vector.broadcast %cst_77 : f32 to vector<8x64xf32>
    %367 = arith.addf %366, %365 : vector<8x64xf32>
    %368 = arith.divf %366, %367 : vector<8x64xf32>
    %369 = vector.extract_strided_slice %356 {offsets = [0, 128], sizes = [8, 64], strides = [1, 1]} : vector<8x256xf32> to vector<8x64xf32>
    %370 = math.tanh %369 : vector<8x64xf32>
    %371 = vector.extract_strided_slice %356 {offsets = [0, 192], sizes = [8, 64], strides = [1, 1]} : vector<8x256xf32> to vector<8x64xf32>
    %372 = arith.negf %371 : vector<8x64xf32>
    %373 = math.exp %372 : vector<8x64xf32>
    %cst_78 = arith.constant 1.000000e+00 : f32
    %374 = vector.broadcast %cst_78 : f32 to vector<8x64xf32>
    %375 = arith.addf %374, %373 : vector<8x64xf32>
    %376 = arith.divf %374, %375 : vector<8x64xf32>
    %377 = arith.mulf %368, %317 : vector<8x64xf32>
    %378 = arith.mulf %362, %370 : vector<8x64xf32>
    %379 = arith.addf %377, %378 : vector<8x64xf32>
    %380 = math.tanh %379 : vector<8x64xf32>
    %381 = arith.mulf %376, %380 : vector<8x64xf32>
    %382 = tpu.concatenate %350, %381 in 1 : vector<8x64xf32>, vector<8x64xf32> -> vector<8x128xf32>
    %c0_79 = arith.constant 0 : index
    %c0_80 = arith.constant 0 : index
    %383 = vector.load %arg3[%c0_79, %c0_80] : memref<128x512xf32, #tpu.memory_space<vmem>>, vector<128x512xf32>
    %cst_81 = arith.constant dense<0.000000e+00> : vector<8x512xf32>
    %384 = tpu.matmul %382, %383, %cst_81 {dimension_numbers = #tpu.dot_dimension_numbers<[1], [0], [0], [1], [0, 0, 1, 1], [], []>} : vector<8x128xf32>, vector<128x512xf32>, vector<8x512xf32> -> vector<8x512xf32>
    %385 = vector.extract_strided_slice %7 {offsets = [48, 0], sizes = [8, 256], strides = [1, 1]} : vector<64x256xf32> to vector<8x256xf32>
    %386 = vector.extract_strided_slice %384 {offsets = [0, 0], sizes = [8, 256], strides = [1, 1]} : vector<8x512xf32> to vector<8x256xf32>
    %387 = arith.addf %385, %386 : vector<8x256xf32>
    %388 = vector.extract_strided_slice %387 {offsets = [0, 0], sizes = [8, 64], strides = [1, 1]} : vector<8x256xf32> to vector<8x64xf32>
    %389 = arith.negf %388 : vector<8x64xf32>
    %390 = math.exp %389 : vector<8x64xf32>
    %cst_82 = arith.constant 1.000000e+00 : f32
    %391 = vector.broadcast %cst_82 : f32 to vector<8x64xf32>
    %392 = arith.addf %391, %390 : vector<8x64xf32>
    %393 = arith.divf %391, %392 : vector<8x64xf32>
    %394 = vector.extract_strided_slice %387 {offsets = [0, 64], sizes = [8, 64], strides = [1, 1]} : vector<8x256xf32> to vector<8x64xf32>
    %395 = arith.negf %394 : vector<8x64xf32>
    %396 = math.exp %395 : vector<8x64xf32>
    %cst_83 = arith.constant 1.000000e+00 : f32
    %397 = vector.broadcast %cst_83 : f32 to vector<8x64xf32>
    %398 = arith.addf %397, %396 : vector<8x64xf32>
    %399 = arith.divf %397, %398 : vector<8x64xf32>
    %400 = vector.extract_strided_slice %387 {offsets = [0, 128], sizes = [8, 64], strides = [1, 1]} : vector<8x256xf32> to vector<8x64xf32>
    %401 = math.tanh %400 : vector<8x64xf32>
    %402 = vector.extract_strided_slice %387 {offsets = [0, 192], sizes = [8, 64], strides = [1, 1]} : vector<8x256xf32> to vector<8x64xf32>
    %403 = arith.negf %402 : vector<8x64xf32>
    %404 = math.exp %403 : vector<8x64xf32>
    %cst_84 = arith.constant 1.000000e+00 : f32
    %405 = vector.broadcast %cst_84 : f32 to vector<8x64xf32>
    %406 = arith.addf %405, %404 : vector<8x64xf32>
    %407 = arith.divf %405, %406 : vector<8x64xf32>
    %408 = arith.mulf %399, %348 : vector<8x64xf32>
    %409 = arith.mulf %393, %401 : vector<8x64xf32>
    %410 = arith.addf %408, %409 : vector<8x64xf32>
    %411 = math.tanh %410 : vector<8x64xf32>
    %412 = arith.mulf %407, %411 : vector<8x64xf32>
    %c0_85 = arith.constant 0 : index
    %c0_86 = arith.constant 0 : index
    %413 = vector.load %arg4[%c0_85, %c0_86] : memref<64x256xf32, #tpu.memory_space<vmem>>, vector<64x256xf32>
    %cst_87 = arith.constant dense<0.000000e+00> : vector<8x256xf32>
    %414 = tpu.matmul %412, %413, %cst_87 {dimension_numbers = #tpu.dot_dimension_numbers<[1], [0], [0], [1], [0, 0, 1, 1], [], []>} : vector<8x64xf32>, vector<64x256xf32>, vector<8x256xf32> -> vector<8x256xf32>
    %415 = vector.extract_strided_slice %384 {offsets = [0, 256], sizes = [8, 256], strides = [1, 1]} : vector<8x512xf32> to vector<8x256xf32>
    %416 = arith.addf %414, %415 : vector<8x256xf32>
    %417 = vector.broadcast %8 : vector<1x256xf32> to vector<8x256xf32>
    %418 = arith.addf %416, %417 : vector<8x256xf32>
    %419 = vector.extract_strided_slice %418 {offsets = [0, 0], sizes = [8, 64], strides = [1, 1]} : vector<8x256xf32> to vector<8x64xf32>
    %420 = arith.negf %419 : vector<8x64xf32>
    %421 = math.exp %420 : vector<8x64xf32>
    %cst_88 = arith.constant 1.000000e+00 : f32
    %422 = vector.broadcast %cst_88 : f32 to vector<8x64xf32>
    %423 = arith.addf %422, %421 : vector<8x64xf32>
    %424 = arith.divf %422, %423 : vector<8x64xf32>
    %425 = vector.extract_strided_slice %418 {offsets = [0, 64], sizes = [8, 64], strides = [1, 1]} : vector<8x256xf32> to vector<8x64xf32>
    %426 = arith.negf %425 : vector<8x64xf32>
    %427 = math.exp %426 : vector<8x64xf32>
    %cst_89 = arith.constant 1.000000e+00 : f32
    %428 = vector.broadcast %cst_89 : f32 to vector<8x64xf32>
    %429 = arith.addf %428, %427 : vector<8x64xf32>
    %430 = arith.divf %428, %429 : vector<8x64xf32>
    %431 = vector.extract_strided_slice %418 {offsets = [0, 128], sizes = [8, 64], strides = [1, 1]} : vector<8x256xf32> to vector<8x64xf32>
    %432 = math.tanh %431 : vector<8x64xf32>
    %433 = vector.extract_strided_slice %418 {offsets = [0, 192], sizes = [8, 64], strides = [1, 1]} : vector<8x256xf32> to vector<8x64xf32>
    %434 = arith.negf %433 : vector<8x64xf32>
    %435 = math.exp %434 : vector<8x64xf32>
    %cst_90 = arith.constant 1.000000e+00 : f32
    %436 = vector.broadcast %cst_90 : f32 to vector<8x64xf32>
    %437 = arith.addf %436, %435 : vector<8x64xf32>
    %438 = arith.divf %436, %437 : vector<8x64xf32>
    %439 = arith.mulf %430, %379 : vector<8x64xf32>
    %440 = arith.mulf %424, %432 : vector<8x64xf32>
    %441 = arith.addf %439, %440 : vector<8x64xf32>
    %442 = math.tanh %441 : vector<8x64xf32>
    %443 = arith.mulf %438, %442 : vector<8x64xf32>
    %444 = tpu.concatenate %412, %443 in 1 : vector<8x64xf32>, vector<8x64xf32> -> vector<8x128xf32>
    %c0_91 = arith.constant 0 : index
    %c0_92 = arith.constant 0 : index
    %445 = vector.load %arg3[%c0_91, %c0_92] : memref<128x512xf32, #tpu.memory_space<vmem>>, vector<128x512xf32>
    %cst_93 = arith.constant dense<0.000000e+00> : vector<8x512xf32>
    %446 = tpu.matmul %444, %445, %cst_93 {dimension_numbers = #tpu.dot_dimension_numbers<[1], [0], [0], [1], [0, 0, 1, 1], [], []>} : vector<8x128xf32>, vector<128x512xf32>, vector<8x512xf32> -> vector<8x512xf32>
    %447 = vector.extract_strided_slice %7 {offsets = [56, 0], sizes = [8, 256], strides = [1, 1]} : vector<64x256xf32> to vector<8x256xf32>
    %448 = vector.extract_strided_slice %446 {offsets = [0, 0], sizes = [8, 256], strides = [1, 1]} : vector<8x512xf32> to vector<8x256xf32>
    %449 = arith.addf %447, %448 : vector<8x256xf32>
    %450 = vector.extract_strided_slice %449 {offsets = [0, 0], sizes = [8, 64], strides = [1, 1]} : vector<8x256xf32> to vector<8x64xf32>
    %451 = arith.negf %450 : vector<8x64xf32>
    %452 = math.exp %451 : vector<8x64xf32>
    %cst_94 = arith.constant 1.000000e+00 : f32
    %453 = vector.broadcast %cst_94 : f32 to vector<8x64xf32>
    %454 = arith.addf %453, %452 : vector<8x64xf32>
    %455 = arith.divf %453, %454 : vector<8x64xf32>
    %456 = vector.extract_strided_slice %449 {offsets = [0, 64], sizes = [8, 64], strides = [1, 1]} : vector<8x256xf32> to vector<8x64xf32>
    %457 = arith.negf %456 : vector<8x64xf32>
    %458 = math.exp %457 : vector<8x64xf32>
    %cst_95 = arith.constant 1.000000e+00 : f32
    %459 = vector.broadcast %cst_95 : f32 to vector<8x64xf32>
    %460 = arith.addf %459, %458 : vector<8x64xf32>
    %461 = arith.divf %459, %460 : vector<8x64xf32>
    %462 = vector.extract_strided_slice %449 {offsets = [0, 128], sizes = [8, 64], strides = [1, 1]} : vector<8x256xf32> to vector<8x64xf32>
    %463 = math.tanh %462 : vector<8x64xf32>
    %464 = vector.extract_strided_slice %449 {offsets = [0, 192], sizes = [8, 64], strides = [1, 1]} : vector<8x256xf32> to vector<8x64xf32>
    %465 = arith.negf %464 : vector<8x64xf32>
    %466 = math.exp %465 : vector<8x64xf32>
    %cst_96 = arith.constant 1.000000e+00 : f32
    %467 = vector.broadcast %cst_96 : f32 to vector<8x64xf32>
    %468 = arith.addf %467, %466 : vector<8x64xf32>
    %469 = arith.divf %467, %468 : vector<8x64xf32>
    %470 = arith.mulf %461, %410 : vector<8x64xf32>
    %471 = arith.mulf %455, %463 : vector<8x64xf32>
    %472 = arith.addf %470, %471 : vector<8x64xf32>
    %473 = math.tanh %472 : vector<8x64xf32>
    %474 = arith.mulf %469, %473 : vector<8x64xf32>
    %c0_97 = arith.constant 0 : index
    %c0_98 = arith.constant 0 : index
    %475 = vector.load %arg4[%c0_97, %c0_98] : memref<64x256xf32, #tpu.memory_space<vmem>>, vector<64x256xf32>
    %cst_99 = arith.constant dense<0.000000e+00> : vector<8x256xf32>
    %476 = tpu.matmul %474, %475, %cst_99 {dimension_numbers = #tpu.dot_dimension_numbers<[1], [0], [0], [1], [0, 0, 1, 1], [], []>} : vector<8x64xf32>, vector<64x256xf32>, vector<8x256xf32> -> vector<8x256xf32>
    %477 = vector.extract_strided_slice %446 {offsets = [0, 256], sizes = [8, 256], strides = [1, 1]} : vector<8x512xf32> to vector<8x256xf32>
    %478 = arith.addf %476, %477 : vector<8x256xf32>
    %479 = vector.broadcast %8 : vector<1x256xf32> to vector<8x256xf32>
    %480 = arith.addf %478, %479 : vector<8x256xf32>
    %481 = vector.extract_strided_slice %480 {offsets = [0, 0], sizes = [8, 64], strides = [1, 1]} : vector<8x256xf32> to vector<8x64xf32>
    %482 = arith.negf %481 : vector<8x64xf32>
    %483 = math.exp %482 : vector<8x64xf32>
    %cst_100 = arith.constant 1.000000e+00 : f32
    %484 = vector.broadcast %cst_100 : f32 to vector<8x64xf32>
    %485 = arith.addf %484, %483 : vector<8x64xf32>
    %486 = arith.divf %484, %485 : vector<8x64xf32>
    %487 = vector.extract_strided_slice %480 {offsets = [0, 64], sizes = [8, 64], strides = [1, 1]} : vector<8x256xf32> to vector<8x64xf32>
    %488 = arith.negf %487 : vector<8x64xf32>
    %489 = math.exp %488 : vector<8x64xf32>
    %cst_101 = arith.constant 1.000000e+00 : f32
    %490 = vector.broadcast %cst_101 : f32 to vector<8x64xf32>
    %491 = arith.addf %490, %489 : vector<8x64xf32>
    %492 = arith.divf %490, %491 : vector<8x64xf32>
    %493 = vector.extract_strided_slice %480 {offsets = [0, 128], sizes = [8, 64], strides = [1, 1]} : vector<8x256xf32> to vector<8x64xf32>
    %494 = math.tanh %493 : vector<8x64xf32>
    %495 = vector.extract_strided_slice %480 {offsets = [0, 192], sizes = [8, 64], strides = [1, 1]} : vector<8x256xf32> to vector<8x64xf32>
    %496 = arith.negf %495 : vector<8x64xf32>
    %497 = math.exp %496 : vector<8x64xf32>
    %cst_102 = arith.constant 1.000000e+00 : f32
    %498 = vector.broadcast %cst_102 : f32 to vector<8x64xf32>
    %499 = arith.addf %498, %497 : vector<8x64xf32>
    %500 = arith.divf %498, %499 : vector<8x64xf32>
    %501 = arith.mulf %492, %441 : vector<8x64xf32>
    %502 = arith.mulf %486, %494 : vector<8x64xf32>
    %503 = arith.addf %501, %502 : vector<8x64xf32>
    %504 = math.tanh %503 : vector<8x64xf32>
    %505 = arith.mulf %500, %504 : vector<8x64xf32>
    %c0_103 = arith.constant 0 : index
    %c0_104 = arith.constant 0 : index
    %506 = vector.load %arg6[%c0_103, %c0_104] : memref<1x64xf32, #tpu.memory_space<vmem>>, vector<1x64xf32>
    %507 = vector.broadcast %506 : vector<1x64xf32> to vector<8x64xf32>
    %508 = arith.mulf %505, %507 : vector<8x64xf32>
    %cst_105 = arith.constant dense<0.000000e+00> : vector<8xf32>
    %509 = vector.multi_reduction <add>, %508, %cst_105 [1] : vector<8x64xf32> to vector<8xf32>
    %510 = vector.shape_cast %509 : vector<8xf32> to vector<8x1xf32>
    %c0_106 = arith.constant 0 : index
    %c0_107 = arith.constant 0 : index
    %511 = vector.load %arg7[%c0_106, %c0_107] : memref<1x1xf32, #tpu.memory_space<vmem>>, vector<1x1xf32>
    %512 = vector.broadcast %511 : vector<1x1xf32> to vector<8x1xf32>
    %513 = arith.addf %510, %512 : vector<8x1xf32>
    %c0_108 = arith.constant 0 : index
    %c0_109 = arith.constant 0 : index
    %514 = vector.load %arg8[%c0_108, %c0_109] : memref<8x1xf32, #tpu.memory_space<vmem>>, vector<8x1xf32>
    tpu.vector_store %arg8[%c0_108, %c0_109], %513 {strides = array<i32>} : memref<8x1xf32, #tpu.memory_space<vmem>>, vector<8x1xf32>,
    return
  }
}

</mosaic_0001>

<llo_original>
// kernel: tpu_custom_call.1
$region0: #{tpu_custom_call.1}
  #allocation0 [shape = 'u32[]', space=smem, size = 0x4, offset = 0x4, fixed_abs, tag = 'smem constant byte address 0x4 - core index']
  #allocation1 [shape = 'u32[144,128]{1,0:T(1,128)}', space=vmem, size = 0x12000, scoped, tag = 'internal scratch']
  #allocation2 [shape = 'f32[1,1]{1,0:T(1,128)S(1)}', space=vmem, size = 0x200, scoped, tag = 'scoped memory for tpu_custom_call.1']
  %s0 = inlined_call_operand.vmem [shape: f32[64,1], index: 0, kind: input, shape index: {}]
  %s1 = inlined_call_operand.vmem [shape: f32[1,256], index: 1, kind: input, shape index: {}]
  %s2 = inlined_call_operand.vmem [shape: f32[1,256], index: 2, kind: input, shape index: {}]
  %s3 = inlined_call_operand.hbm [shape: f32[128,512], index: 3, kind: input, shape index: {}]
  %s4 = inlined_call_operand.hbm [shape: f32[64,256], index: 4, kind: input, shape index: {}]
  %s5 = inlined_call_operand.vmem [shape: f32[1,256], index: 5, kind: input, shape index: {}]
  %s6 = inlined_call_operand.vmem [shape: f32[1,64], index: 6, kind: input, shape index: {}]
  %s7 = inlined_call_operand.<no memory space> [shape: f32[1,1], index: 7, kind: input, shape index: {}]
  %s8 = inlined_call_operand.vmem [shape: f32[8,1], index: 8, kind: output, shape index: {}]
  %s9 = sld [smem:[#allocation0]]
  $region50: #{tpu_custom_call.1} parent=0
    _
  %s11 = ssub.s32 1, %s9
  %s12 = scalar_select 0, %s11, %s9
  %v13 = vstv %s7
  %14 = vst [vmem:[#allocation2] sm:$0x1] %v13
  $region1: #{tpu_custom_call.1} parent=0
    #allocation3 [shape = 'u8[262144]{0}', space=vmem, size = 0x40000, scoped, tag = 'input window, operand 3, single buffered']
    #allocation4 [shape = 's32[1]{0}', space=sflag, size = 0x4, scoped, tag = 'scoped memory for tpu_custom_call.1']
    #allocation5 [shape = 'u8[65536]{0}', space=vmem, size = 0x10000, scoped, tag = 'input window, operand 4, single buffered']
    #allocation6 [shape = 's32[1]{0}', space=sflag, size = 0x4, scoped, tag = 'scoped memory for tpu_custom_call.1']
    %15 = vsyncpa [#allocation4], 0
    %16 = vsyncpa [#allocation6], 0
    // Predicated region
    $region2: #{tpu_custom_call.1} parent=1 // pred_check
      _
    $region3: #{tpu_custom_call.1} parent=1 // pred_check_branch
      %18 = sbr.rel (0) target = $region5
    $region4: #{tpu_custom_call.1} parent=1 // pred_region
      _
    $region5: #{tpu_custom_call.1} parent=1 // pred_fallthru
      _
    // Predicated region
    $region6: #{tpu_custom_call.1} parent=1 // pred_check
      _
    $region7: #{tpu_custom_call.1} parent=1 // pred_check_branch
      %20 = sbr.rel (0) target = $region9
    $region8: #{tpu_custom_call.1} parent=1 // pred_region
      _
    $region9: #{tpu_custom_call.1} parent=1 // pred_fallthru
      _
    // Predicated region
    $region10: #{tpu_custom_call.1} parent=1 // pred_check
      _
    $region11: #{tpu_custom_call.1} parent=1 // pred_check_branch
      %22 = sbr.rel (0) target = $region13
    $region12: #{tpu_custom_call.1} parent=1 // pred_region
      _
    $region13: #{tpu_custom_call.1} parent=1 // pred_fallthru
      _
    // Predicated region
    $region14: #{tpu_custom_call.1} parent=1 // pred_check
      _
    $region15: #{tpu_custom_call.1} parent=1 // pred_check_branch
      %24 = sbr.rel (0) target = $region17
    $region16: #{tpu_custom_call.1} parent=1 // pred_region
      %s26 = ssub.s32 8192, 8192
      %27 = vsyncadd [#allocation4], %s26
      %s28 = sshll.u32 [#allocation3], 4
      %s29 = int_to_ptr.vmem [resolvable:$true] %s28
      %34 = dma.hbm_to_vmem [thread:$0]  %s3, 8192, %s29, [#allocation4], 512, 512, 32
    $region17: #{tpu_custom_call.1} parent=1 // pred_fallthru
      _
    // Predicated region
    $region18: #{tpu_custom_call.1} parent=1 // pred_check
      _
    $region19: #{tpu_custom_call.1} parent=1 // pred_check_branch
      %36 = sbr.rel (0) target = $region21
    $region20: #{tpu_custom_call.1} parent=1 // pred_region
      %s38 = ssub.s32 2048, 2048
      %39 = vsyncadd [#allocation6], %s38
      %s40 = sshll.u32 [#allocation5], 4
      %s41 = int_to_ptr.vmem [resolvable:$true] %s40
      %46 = dma.hbm_to_vmem [thread:$0]  %s4, 2048, %s41, [#allocation6], 256, 256, 16
    $region21: #{tpu_custom_call.1} parent=1 // pred_fallthru
      _
    // Predicated region
    $region22: #{tpu_custom_call.1} parent=1 // pred_check
      _
    $region23: #{tpu_custom_call.1} parent=1 // pred_check_branch
      %48 = sbr.rel (0) target = $region25
    $region24: #{tpu_custom_call.1} parent=1 // pred_region
      _
    $region25: #{tpu_custom_call.1} parent=1 // pred_fallthru
      _
    // Predicated region
    $region26: #{tpu_custom_call.1} parent=1 // pred_check
      _
    $region27: #{tpu_custom_call.1} parent=1 // pred_check_branch
      %50 = sbr.rel (0) target = $region29
    $region28: #{tpu_custom_call.1} parent=1 // pred_region
      _
    $region29: #{tpu_custom_call.1} parent=1 // pred_fallthru
      _
    // Predicated region
    $region30: #{tpu_custom_call.1} parent=1 // pred_check
      _
    $region31: #{tpu_custom_call.1} parent=1 // pred_check_branch
      %52 = sbr.rel (0) target = $region33
    $region32: #{tpu_custom_call.1} parent=1 // pred_region
      _
    $region33: #{tpu_custom_call.1} parent=1 // pred_fallthru
      _
    // Predicated region
    $region34: #{tpu_custom_call.1} parent=1 // pred_check
      _
    $region35: #{tpu_custom_call.1} parent=1 // pred_check_branch
      %54 = sbr.rel (0) target = $region37
    $region36: #{tpu_custom_call.1} parent=1 // pred_region
      %55 = dma.done [#allocation4], 8192
    $region37: #{tpu_custom_call.1} parent=1 // pred_fallthru
      _
    // Predicated region
    $region38: #{tpu_custom_call.1} parent=1 // pred_check
      _
    $region39: #{tpu_custom_call.1} parent=1 // pred_check_branch
      %57 = sbr.rel (0) target = $region41
    $region40: #{tpu_custom_call.1} parent=1 // pred_region
      %58 = dma.done [#allocation6], 2048
    $region41: #{tpu_custom_call.1} parent=1 // pred_fallthru
      _
    %v59 = vld [vmem:[%s0] sm:$0xff]
    %v60 = vld [vmem:[%s0 + $0x8] sm:$0xff]
    %v61 = vld [vmem:[%s0 + $0x10] sm:$0xff]
    %v62 = vld [vmem:[%s0 + $0x18] sm:$0xff]
    %v63 = vld [vmem:[%s0 + $0x20] sm:$0xff]
    %v64 = vld [vmem:[%s0 + $0x28] sm:$0xff]
    %v65 = vld [vmem:[%s0 + $0x30] sm:$0xff]
    %v66 = vld [vmem:[%s0 + $0x38] sm:$0xff]
    %v67 = vld [vmem:[%s1] sm:$0x3]
    %69 = vset.pattern.permute.xlu0 0
    %70 = vperm.xlu0 %69, %v59
    %v71 = vpop.permute.xlu0 %70
    %74 = vset.pattern.permute.xlu0 0
    %75 = vperm.xlu0 %74, %v60
    %v76 = vpop.permute.xlu0 %75
    %79 = vset.pattern.permute.xlu0 0
    %80 = vperm.xlu0 %79, %v61
    %v81 = vpop.permute.xlu0 %80
    %84 = vset.pattern.permute.xlu0 0
    %85 = vperm.xlu0 %84, %v62
    %v86 = vpop.permute.xlu0 %85
    %89 = vset.pattern.permute.xlu0 0
    %90 = vperm.xlu0 %89, %v63
    %v91 = vpop.permute.xlu0 %90
    %94 = vset.pattern.permute.xlu0 0
    %95 = vperm.xlu0 %94, %v64
    %v96 = vpop.permute.xlu0 %95
    %99 = vset.pattern.permute.xlu0 0
    %100 = vperm.xlu0 %99, %v65
    %v101 = vpop.permute.xlu0 %100
    %104 = vset.pattern.permute.xlu0 0
    %105 = vperm.xlu0 %104, %v66
    %v106 = vpop.permute.xlu0 %105
    %v109 = vlaneseq
    %v110 = vshrl.u32 %v109, 7
    %v111 = vsub.s32 0, %v110
    %v112 = vrot.slane %v67, %v111
    %v113 = vlaneseq
    %v114 = vshrl.u32 %v113, 7
    %v115 = vsub.s32 1, %v114
    %v116 = vrot.slane %v67, %v115
    %v119 = vmul.f32 %v71, %v112
    %v120 = vmul.f32 %v71, %v116
    %v121 = vmul.f32 %v76, %v112
    %v122 = vmul.f32 %v76, %v116
    %v123 = vmul.f32 %v81, %v112
    %v124 = vmul.f32 %v81, %v116
    %v125 = vmul.f32 %v86, %v112
    %v126 = vmul.f32 %v86, %v116
    %v127 = vmul.f32 %v91, %v112
    %v128 = vmul.f32 %v91, %v116
    %v129 = vmul.f32 %v96, %v112
    %v130 = vmul.f32 %v96, %v116
    %v131 = vmul.f32 %v101, %v112
    %v132 = vmul.f32 %v101, %v116
    %v133 = vmul.f32 %v106, %v112
    %v134 = vmul.f32 %v106, %v116
    %v135 = vld [vmem:[%s2] sm:$0x3]
    %v137 = vlaneseq
    %v138 = vshrl.u32 %v137, 7
    %v139 = vsub.s32 0, %v138
    %v140 = vrot.slane %v135, %v139
    %v141 = vlaneseq
    %v142 = vshrl.u32 %v141, 7
    %v143 = vsub.s32 1, %v142
    %v144 = vrot.slane %v135, %v143
    %v147 = vadd.f32 %v119, %v140
    %v148 = vadd.f32 %v120, %v144
    %v149 = vadd.f32 %v121, %v140
    %v150 = vadd.f32 %v122, %v144
    %v151 = vadd.f32 %v123, %v140
    %v152 = vadd.f32 %v124, %v144
    %v153 = vadd.f32 %v125, %v140
    %v154 = vadd.f32 %v126, %v144
    %v155 = vadd.f32 %v127, %v140
    %v156 = vadd.f32 %v128, %v144
    %v157 = vadd.f32 %v129, %v140
    %v158 = vadd.f32 %v130, %v144
    %v159 = vadd.f32 %v131, %v140
    %v160 = vadd.f32 %v132, %v144
    %v161 = vadd.f32 %v133, %v140
    %v162 = vadd.f32 %v134, %v144
    %v163 = vld [vmem:[%s5] sm:$0x3]
    %v164 = vld [vmem:[#allocation3] sm:$0xff]
    %v165 = vld [vmem:[#allocation3 + $0x8] sm:$0xff]
    %v166 = vld [vmem:[#allocation3 + $0x10] sm:$0xff]
    %v167 = vld [vmem:[#allocation3 + $0x18] sm:$0xff]
    %v168 = vld [vmem:[#allocation3 + $0x20] sm:$0xff]
    %v169 = vld [vmem:[#allocation3 + $0x28] sm:$0xff]
    %v170 = vld [vmem:[#allocation3 + $0x30] sm:$0xff]
    %v171 = vld [vmem:[#allocation3 + $0x38] sm:$0xff]
    %v172 = vld [vmem:[#allocation3 + $0x40] sm:$0xff]
    %v173 = vld [vmem:[#allocation3 + $0x48] sm:$0xff]
    %v174 = vld [vmem:[#allocation3 + $0x50] sm:$0xff]
    %v175 = vld [vmem:[#allocation3 + $0x58] sm:$0xff]
    %v176 = vld [vmem:[#allocation3 + $0x60] sm:$0xff]
    %v177 = vld [vmem:[#allocation3 + $0x68] sm:$0xff]
    %v178 = vld [vmem:[#allocation3 + $0x70] sm:$0xff]
    %v179 = vld [vmem:[#allocation3 + $0x78] sm:$0xff]
    %v180 = vld [vmem:[#allocation3 + $0x80] sm:$0xff]
    %v181 = vld [vmem:[#allocation3 + $0x88] sm:$0xff]
    %v182 = vld [vmem:[#allocation3 + $0x90] sm:$0xff]
    %v183 = vld [vmem:[#allocation3 + $0x98] sm:$0xff]
    %v184 = vld [vmem:[#allocation3 + $0xa0] sm:$0xff]
    %v185 = vld [vmem:[#allocation3 + $0xa8] sm:$0xff]
    %v186 = vld [vmem:[#allocation3 + $0xb0] sm:$0xff]
    %v187 = vld [vmem:[#allocation3 + $0xb8] sm:$0xff]
    %v188 = vld [vmem:[#allocation3 + $0xc0] sm:$0xff]
    %v189 = vld [vmem:[#allocation3 + $0xc8] sm:$0xff]
    %v190 = vld [vmem:[#allocation3 + $0xd0] sm:$0xff]
    %v191 = vld [vmem:[#allocation3 + $0xd8] sm:$0xff]
    %v192 = vld [vmem:[#allocation3 + $0xe0] sm:$0xff]
    %v193 = vld [vmem:[#allocation3 + $0xe8] sm:$0xff]
    %v194 = vld [vmem:[#allocation3 + $0xf0] sm:$0xff]
    %v195 = vld [vmem:[#allocation3 + $0xf8] sm:$0xff]
    %v196 = vld [vmem:[#allocation3 + $0x100] sm:$0xff]
    %v197 = vld [vmem:[#allocation3 + $0x108] sm:$0xff]
    %v198 = vld [vmem:[#allocation3 + $0x110] sm:$0xff]
    %v199 = vld [vmem:[#allocation3 + $0x118] sm:$0xff]
    %v200 = vld [vmem:[#allocation3 + $0x120] sm:$0xff]
    %v201 = vld [vmem:[#allocation3 + $0x128] sm:$0xff]
    %v202 = vld [vmem:[#allocation3 + $0x130] sm:$0xff]
    %v203 = vld [vmem:[#allocation3 + $0x138] sm:$0xff]
    %v204 = vld [vmem:[#allocation3 + $0x140] sm:$0xff]
    %v205 = vld [vmem:[#allocation3 + $0x148] sm:$0xff]
    %v206 = vld [vmem:[#allocation3 + $0x150] sm:$0xff]
    %v207 = vld [vmem:[#allocation3 + $0x158] sm:$0xff]
    %v208 = vld [vmem:[#allocation3 + $0x160] sm:$0xff]
    %v209 = vld [vmem:[#allocation3 + $0x168] sm:$0xff]
    %v210 = vld [vmem:[#allocation3 + $0x170] sm:$0xff]
    %v211 = vld [vmem:[#allocation3 + $0x178] sm:$0xff]
    %v212 = vld [vmem:[#allocation3 + $0x180] sm:$0xff]
    %v213 = vld [vmem:[#allocation3 + $0x188] sm:$0xff]
    %v214 = vld [vmem:[#allocation3 + $0x190] sm:$0xff]
    %v215 = vld [vmem:[#allocation3 + $0x198] sm:$0xff]
    %v216 = vld [vmem:[#allocation3 + $0x1a0] sm:$0xff]
    %v217 = vld [vmem:[#allocation3 + $0x1a8] sm:$0xff]
    %v218 = vld [vmem:[#allocation3 + $0x1b0] sm:$0xff]
    %v219 = vld [vmem:[#allocation3 + $0x1b8] sm:$0xff]
    %v220 = vld [vmem:[#allocation3 + $0x1c0] sm:$0xff]
    %v221 = vld [vmem:[#allocation3 + $0x1c8] sm:$0xff]
    %v222 = vld [vmem:[#allocation3 + $0x1d0] sm:$0xff]
    %v223 = vld [vmem:[#allocation3 + $0x1d8] sm:$0xff]
    %v224 = vld [vmem:[#allocation3 + $0x1e0] sm:$0xff]
    %v225 = vld [vmem:[#allocation3 + $0x1e8] sm:$0xff]
    %v226 = vld [vmem:[#allocation3 + $0x1f0] sm:$0xff]
    %v227 = vld [vmem:[#allocation3 + $0x1f8] sm:$0xff]
    %228 = vmatprep.subr.mxu0 %v165
    %229 = vmatpush1.msra.mxu0 %v164
    %230 = vmatprep.subr.mxu0 %v169
    %231 = vmatpush1.msra.mxu0 %v168
    %232 = vmatprep.subr.mxu0 %v173
    %233 = vmatpush1.msra.mxu0 %v172
    %234 = vmatprep.subr.mxu0 %v177
    %235 = vmatpush1.msra.mxu0 %v176
    %236 = vmatprep.subr.mxu0 %v181
    %237 = vmatpush1.msra.mxu0 %v180
    %238 = vmatprep.subr.mxu0 %v185
    %239 = vmatpush1.msra.mxu0 %v184
    %240 = vmatprep.subr.mxu0 %v189
    %241 = vmatpush1.msra.mxu0 %v188
    %242 = vmatprep.subr.mxu0 %v193
    %243 = vmatpush1.msra.mxu0 %v192
    %244 = vmatprep.subr.mxu0 %v197
    %245 = vmatpush1.msra.mxu0 %v196
    %246 = vmatprep.subr.mxu0 %v201
    %247 = vmatpush1.msra.mxu0 %v200
    %248 = vmatprep.subr.mxu0 %v205
    %249 = vmatpush1.msra.mxu0 %v204
    %250 = vmatprep.subr.mxu0 %v209
    %251 = vmatpush1.msra.mxu0 %v208
    %252 = vmatprep.subr.mxu0 %v213
    %253 = vmatpush1.msra.mxu0 %v212
    %254 = vmatprep.subr.mxu0 %v217
    %255 = vmatpush1.msra.mxu0 %v216
    %256 = vmatprep.subr.mxu0 %v221
    %257 = vmatpush1.msra.mxu0 %v220
    %258 = vmatprep.subr.mxu0 %v225
    %259 = vmatpush1.msra.mxu0 %v224
    %260 = vmatprep.subr.mxu0 0.0
    %261 = vmatpush1.msra.mxu0 0.0
    %262 = vmatprep.subr.mxu0 0.0
    %263 = vmatpush1.msra.mxu0 0.0
    %264 = vmatprep.subr.mxu0 0.0
    %265 = vmatpush1.msra.mxu0 0.0
    %266 = vmatprep.subr.mxu0 0.0
    %267 = vmatpush1.msra.mxu0 0.0
    %268 = vmatprep.subr.mxu0 0.0
    %269 = vmatpush1.msra.mxu0 0.0
    %270 = vmatprep.subr.mxu0 0.0
    %271 = vmatpush1.msra.mxu0 0.0
    %272 = vmatprep.subr.mxu0 0.0
    %273 = vmatpush1.msra.mxu0 0.0
    %274 = vmatprep.subr.mxu0 0.0
    %275 = vmatpush1.msra.mxu0 0.0
    %276 = vmatprep.subr.mxu0 0.0
    %277 = vmatpush1.msra.mxu0 0.0
    %278 = vmatprep.subr.mxu0 0.0
    %279 = vmatpush1.msra.mxu0 0.0
    %280 = vmatprep.subr.mxu0 0.0
    %281 = vmatpush1.msra.mxu0 0.0
    %282 = vmatprep.subr.mxu0 0.0
    %283 = vmatpush1.msra.mxu0 0.0
    %284 = vmatprep.subr.mxu0 0.0
    %285 = vmatpush1.msra.mxu0 0.0
    %286 = vmatprep.subr.mxu0 0.0
    %287 = vmatpush1.msra.mxu0 0.0
    %288 = vmatprep.subr.mxu0 0.0
    %289 = vmatpush1.msra.mxu0 0.0
    %290 = vmatprep.subr.mxu0 0.0
    %291 = vmatpush1.msra.mxu0 0.0
    %292 = vmatprep.mubr.f32.mxu0 0.0
    %293 = vmatmul.mubr.f32.gmra.mrb[0].mxu0 0.0
    %v294 = vpop.f32.mrb[0].mxu0
    %v295 = vadd.f32 0.0, %v294
    %v296 = vpop.f32.mrb[0].mxu0
    %v297 = vadd.f32 0.0, %v296
    %298 = vdwg.mxu0
    %299 = vmatprep.subr.mxu0 %v167
    %300 = vmatpush1.msra.mxu0 %v166
    %301 = vmatprep.subr.mxu0 %v171
    %302 = vmatpush1.msra.mxu0 %v170
    %303 = vmatprep.subr.mxu0 %v175
    %304 = vmatpush1.msra.mxu0 %v174
    %305 = vmatprep.subr.mxu0 %v179
    %306 = vmatpush1.msra.mxu0 %v178
    %307 = vmatprep.subr.mxu0 %v183
    %308 = vmatpush1.msra.mxu0 %v182
    %309 = vmatprep.subr.mxu0 %v187
    %310 = vmatpush1.msra.mxu0 %v186
    %311 = vmatprep.subr.mxu0 %v191
    %312 = vmatpush1.msra.mxu0 %v190
    %313 = vmatprep.subr.mxu0 %v195
    %314 = vmatpush1.msra.mxu0 %v194
    %315 = vmatprep.subr.mxu0 %v199
    %316 = vmatpush1.msra.mxu0 %v198
    %317 = vmatprep.subr.mxu0 %v203
    %318 = vmatpush1.msra.mxu0 %v202
    %319 = vmatprep.subr.mxu0 %v207
    %320 = vmatpush1.msra.mxu0 %v206
    %321 = vmatprep.subr.mxu0 %v211
    %322 = vmatpush1.msra.mxu0 %v210
    %323 = vmatprep.subr.mxu0 %v215
    %324 = vmatpush1.msra.mxu0 %v214
    %325 = vmatprep.subr.mxu0 %v219
    %326 = vmatpush1.msra.mxu0 %v218
    %327 = vmatprep.subr.mxu0 %v223
    %328 = vmatpush1.msra.mxu0 %v222
    %329 = vmatprep.subr.mxu0 %v227
    %330 = vmatpush1.msra.mxu0 %v226
    %331 = vmatprep.subr.mxu0 0.0
    %332 = vmatpush1.msra.mxu0 0.0
    %333 = vmatprep.subr.mxu0 0.0
    %334 = vmatpush1.msra.mxu0 0.0
    %335 = vmatprep.subr.mxu0 0.0
    %336 = vmatpush1.msra.mxu0 0.0
    %337 = vmatprep.subr.mxu0 0.0
    %338 = vmatpush1.msra.mxu0 0.0
    %339 = vmatprep.subr.mxu0 0.0
    %340 = vmatpush1.msra.mxu0 0.0
    %341 = vmatprep.subr.mxu0 0.0
    %342 = vmatpush1.msra.mxu0 0.0
    %343 = vmatprep.subr.mxu0 0.0
    %344 = vmatpush1.msra.mxu0 0.0
    %345 = vmatprep.subr.mxu0 0.0
    %346 = vmatpush1.msra.mxu0 0.0
    %347 = vmatprep.subr.mxu0 0.0
    %348 = vmatpush1.msra.mxu0 0.0
    %349 = vmatprep.subr.mxu0 0.0
    %350 = vmatpush1.msra.mxu0 0.0
    %351 = vmatprep.subr.mxu0 0.0
    %352 = vmatpush1.msra.mxu0 0.0
    %353 = vmatprep.subr.mxu0 0.0
    %354 = vmatpush1.msra.mxu0 0.0
    %355 = vmatprep.subr.mxu0 0.0
    %356 = vmatpush1.msra.mxu0 0.0
    %357 = vmatprep.subr.mxu0 0.0
    %358 = vmatpush1.msra.mxu0 0.0
    %359 = vmatprep.subr.mxu0 0.0
    %360 = vmatpush1.msra.mxu0 0.0
    %361 = vmatprep.subr.mxu0 0.0
    %362 = vmatpush1.msra.mxu0 0.0
    %363 = vmatprep.mubr.f32.mxu0 0.0
    %364 = vmatmul.mubr.f32.gmra.mrb[0].mxu0 0.0
    %v365 = vpop.f32.mrb[0].mxu0
    %v366 = vadd.f32 0.0, %v365
    %v367 = vpop.f32.mrb[0].mxu0
    %v368 = vadd.f32 0.0, %v367
    %369 = vdwg.mxu0
    %v370 = vadd.f32 %v147, %v295
    %v371 = vadd.f32 %v148, %v297
    %v372 = vxor.u32 %v370, 2147483648
    %v373 = vmul.f32 %v372, 1.442695
    %v374 = vpow.pop %v373
    %v375 = vadd.f32 %v374, 1.0
    %v376 = vrcp.pop %v375
    %v377 = vmul.f32 1.0, %v376
    %v378 = vtanh.pop %v371
    %v379 = vxor.u32 %v371, 2147483648
    %v380 = vmul.f32 %v379, 1.442695
    %v381 = vpow.pop %v380
    %v382 = vadd.f32 %v381, 1.0
    %v383 = vrcp.pop %v382
    %v384 = vmul.f32 1.0, %v383
    %v385 = vmul.f32 %v377, 0.0
    %v386 = vmul.f32 %v377, %v378
    %388 = vrot.lane.b32.xlu0 %v386, 64
    %v389 = vpop.permute.xlu0 %388
    %v391 = vadd.f32 %v385, %v389
    %v392 = vtanh.pop %v391
    %v393 = vmul.f32 %v384, %v392
    %v394 = vld [vmem:[#allocation5] sm:$0xff]
    %v395 = vld [vmem:[#allocation5 + $0x8] sm:$0xff]
    %v396 = vld [vmem:[#allocation5 + $0x10] sm:$0xff]
    %v397 = vld [vmem:[#allocation5 + $0x18] sm:$0xff]
    %v398 = vld [vmem:[#allocation5 + $0x20] sm:$0xff]
    %v399 = vld [vmem:[#allocation5 + $0x28] sm:$0xff]
    %v400 = vld [vmem:[#allocation5 + $0x30] sm:$0xff]
    %v401 = vld [vmem:[#allocation5 + $0x38] sm:$0xff]
    %v402 = vld [vmem:[#allocation5 + $0x40] sm:$0xff]
    %v403 = vld [vmem:[#allocation5 + $0x48] sm:$0xff]
    %v404 = vld [vmem:[#allocation5 + $0x50] sm:$0xff]
    %v405 = vld [vmem:[#allocation5 + $0x58] sm:$0xff]
    %v406 = vld [vmem:[#allocation5 + $0x60] sm:$0xff]
    %v407 = vld [vmem:[#allocation5 + $0x68] sm:$0xff]
    %v408 = vld [vmem:[#allocation5 + $0x70] sm:$0xff]
    %v409 = vld [vmem:[#allocation5 + $0x78] sm:$0xff]
    %411 = vrot.lane.b32.xlu0 %v393, 64
    %v412 = vpop.permute.xlu0 %411
    %vm413 = vcmask 523264
    %v414 = vsel %vm413, %v412, 0
    %416 = vmatprep.subr.mxu0 %v395
    %417 = vmatpush1.msra.mxu0 %v394
    %418 = vmatprep.subr.mxu0 %v397
    %419 = vmatpush1.msra.mxu0 %v396
    %420 = vmatprep.subr.mxu0 %v399
    %421 = vmatpush1.msra.mxu0 %v398
    %422 = vmatprep.subr.mxu0 %v401
    %423 = vmatpush1.msra.mxu0 %v400
    %424 = vmatprep.subr.mxu0 %v403
    %425 = vmatpush1.msra.mxu0 %v402
    %426 = vmatprep.subr.mxu0 %v405
    %427 = vmatpush1.msra.mxu0 %v404
    %428 = vmatprep.subr.mxu0 %v407
    %429 = vmatpush1.msra.mxu0 %v406
    %430 = vmatprep.subr.mxu0 %v409
    %431 = vmatpush1.msra.mxu0 %v408
    %432 = vmatprep.subr.mxu0 0.0
    %433 = vmatpush1.msra.mxu0 0.0
    %434 = vmatprep.subr.mxu0 0.0
    %435 = vmatpush1.msra.mxu0 0.0
    %436 = vmatprep.subr.mxu0 0.0
    %437 = vmatpush1.msra.mxu0 0.0
    %438 = vmatprep.subr.mxu0 0.0
    %439 = vmatpush1.msra.mxu0 0.0
    %440 = vmatprep.subr.mxu0 0.0
    %441 = vmatpush1.msra.mxu0 0.0
    %442 = vmatprep.subr.mxu0 0.0
    %443 = vmatpush1.msra.mxu0 0.0
    %444 = vmatprep.subr.mxu0 0.0
    %445 = vmatpush1.msra.mxu0 0.0
    %446 = vmatprep.subr.mxu0 0.0
    %447 = vmatpush1.msra.mxu0 0.0
    %448 = vmatprep.subr.mxu0 0.0
    %449 = vmatpush1.msra.mxu0 0.0
    %450 = vmatprep.subr.mxu0 0.0
    %451 = vmatpush1.msra.mxu0 0.0
    %452 = vmatprep.subr.mxu0 0.0
    %453 = vmatpush1.msra.mxu0 0.0
    %454 = vmatprep.subr.mxu0 0.0
    %455 = vmatpush1.msra.mxu0 0.0
    %456 = vmatprep.subr.mxu0 0.0
    %457 = vmatpush1.msra.mxu0 0.0
    %458 = vmatprep.subr.mxu0 0.0
    %459 = vmatpush1.msra.mxu0 0.0
    %460 = vmatprep.subr.mxu0 0.0
    %461 = vmatpush1.msra.mxu0 0.0
    %462 = vmatprep.subr.mxu0 0.0
    %463 = vmatpush1.msra.mxu0 0.0
    %464 = vmatprep.subr.mxu0 0.0
    %465 = vmatpush1.msra.mxu0 0.0
    %466 = vmatprep.subr.mxu0 0.0
    %467 = vmatpush1.msra.mxu0 0.0
    %468 = vmatprep.subr.mxu0 0.0
    %469 = vmatpush1.msra.mxu0 0.0
    %470 = vmatprep.subr.mxu0 0.0
    %471 = vmatpush1.msra.mxu0 0.0
    %472 = vmatprep.subr.mxu0 0.0
    %473 = vmatpush1.msra.mxu0 0.0
    %474 = vmatprep.subr.mxu0 0.0
    %475 = vmatpush1.msra.mxu0 0.0
    %476 = vmatprep.subr.mxu0 0.0
    %477 = vmatpush1.msra.mxu0 0.0
    %478 = vmatprep.subr.mxu0 0.0
    %479 = vmatpush1.msra.mxu0 0.0
    %480 = vmatprep.mubr.f32.mxu0 0.0
    %481 = vmatmul.mubr.f32.gmra.mrb[0].mxu0 %v414
    %v482 = vpop.f32.mrb[0].mxu0
    %v483 = vadd.f32 %v366, %v482
    %v484 = vpop.f32.mrb[0].mxu0
    %v485 = vadd.f32 %v368, %v484
    %486 = vdwg.mxu0
    %v488 = vlaneseq
    %v489 = vshrl.u32 %v488, 7
    %v490 = vsub.s32 0, %v489
    %v491 = vrot.slane %v163, %v490
    %v492 = vlaneseq
    %v493 = vshrl.u32 %v492, 7
    %v494 = vsub.s32 1, %v493
    %v495 = vrot.slane %v163, %v494
    %v498 = vadd.f32 %v483, %v491
    %v499 = vadd.f32 %v485, %v495
    %v500 = vxor.u32 %v498, 2147483648
    %v501 = vmul.f32 %v500, 1.442695
    %v502 = vpow.pop %v501
    %v503 = vadd.f32 %v502, 1.0
    %v504 = vrcp.pop %v503
    %v505 = vmul.f32 1.0, %v504
    %v506 = vtanh.pop %v499
    %v507 = vxor.u32 %v499, 2147483648
    %v508 = vmul.f32 %v507, 1.442695
    %v509 = vpow.pop %v508
    %v510 = vadd.f32 %v509, 1.0
    %v511 = vrcp.pop %v510
    %v512 = vmul.f32 1.0, %v511
    %v513 = vmul.f32 %v505, 0.0
    %v514 = vmul.f32 %v505, %v506
    %516 = vrot.lane.b32.xlu0 %v514, 64
    %v517 = vpop.permute.xlu0 %516
    %v519 = vadd.f32 %v513, %v517
    %v520 = vtanh.pop %v519
    %v521 = vmul.f32 %v512, %v520
    %v523 = vsel %vm413, %v412, %v521
    %524 = vmatprep.subr.mxu0 %v165
    %525 = vmatpush1.msra.mxu0 %v164
    %526 = vmatprep.subr.mxu0 %v169
    %527 = vmatpush1.msra.mxu0 %v168
    %528 = vmatprep.subr.mxu0 %v173
    %529 = vmatpush1.msra.mxu0 %v172
    %530 = vmatprep.subr.mxu0 %v177
    %531 = vmatpush1.msra.mxu0 %v176
    %532 = vmatprep.subr.mxu0 %v181
    %533 = vmatpush1.msra.mxu0 %v180
    %534 = vmatprep.subr.mxu0 %v185
    %535 = vmatpush1.msra.mxu0 %v184
    %536 = vmatprep.subr.mxu0 %v189
    %537 = vmatpush1.msra.mxu0 %v188
    %538 = vmatprep.subr.mxu0 %v193
    %539 = vmatpush1.msra.mxu0 %v192
    %540 = vmatprep.subr.mxu0 %v197
    %541 = vmatpush1.msra.mxu0 %v196
    %542 = vmatprep.subr.mxu0 %v201
    %543 = vmatpush1.msra.mxu0 %v200
    %544 = vmatprep.subr.mxu0 %v205
    %545 = vmatpush1.msra.mxu0 %v204
    %546 = vmatprep.subr.mxu0 %v209
    %547 = vmatpush1.msra.mxu0 %v208
    %548 = vmatprep.subr.mxu0 %v213
    %549 = vmatpush1.msra.mxu0 %v212
    %550 = vmatprep.subr.mxu0 %v217
    %551 = vmatpush1.msra.mxu0 %v216
    %552 = vmatprep.subr.mxu0 %v221
    %553 = vmatpush1.msra.mxu0 %v220
    %554 = vmatprep.subr.mxu0 %v225
    %555 = vmatpush1.msra.mxu0 %v224
    %556 = vmatprep.subr.mxu0 0.0
    %557 = vmatpush1.msra.mxu0 0.0
    %558 = vmatprep.subr.mxu0 0.0
    %559 = vmatpush1.msra.mxu0 0.0
    %560 = vmatprep.subr.mxu0 0.0
    %561 = vmatpush1.msra.mxu0 0.0
    %562 = vmatprep.subr.mxu0 0.0
    %563 = vmatpush1.msra.mxu0 0.0
    %564 = vmatprep.subr.mxu0 0.0
    %565 = vmatpush1.msra.mxu0 0.0
    %566 = vmatprep.subr.mxu0 0.0
    %567 = vmatpush1.msra.mxu0 0.0
    %568 = vmatprep.subr.mxu0 0.0
    %569 = vmatpush1.msra.mxu0 0.0
    %570 = vmatprep.subr.mxu0 0.0
    %571 = vmatpush1.msra.mxu0 0.0
    %572 = vmatprep.subr.mxu0 0.0
    %573 = vmatpush1.msra.mxu0 0.0
    %574 = vmatprep.subr.mxu0 0.0
    %575 = vmatpush1.msra.mxu0 0.0
    %576 = vmatprep.subr.mxu0 0.0
    %577 = vmatpush1.msra.mxu0 0.0
    %578 = vmatprep.subr.mxu0 0.0
    %579 = vmatpush1.msra.mxu0 0.0
    %580 = vmatprep.subr.mxu0 0.0
    %581 = vmatpush1.msra.mxu0 0.0
    %582 = vmatprep.subr.mxu0 0.0
    %583 = vmatpush1.msra.mxu0 0.0
    %584 = vmatprep.subr.mxu0 0.0
    %585 = vmatpush1.msra.mxu0 0.0
    %586 = vmatprep.subr.mxu0 0.0
    %587 = vmatpush1.msra.mxu0 0.0
    %588 = vmatprep.mubr.f32.mxu0 0.0
    %589 = vmatmul.mubr.f32.gmra.mrb[0].mxu0 %v523
    %v590 = vpop.f32.mrb[0].mxu0
    %v591 = vadd.f32 0.0, %v590
    %v592 = vpop.f32.mrb[0].mxu0
    %v593 = vadd.f32 0.0, %v592
    %594 = vdwg.mxu0
    %595 = vmatprep.subr.mxu0 %v167
    %596 = vmatpush1.msra.mxu0 %v166
    %597 = vmatprep.subr.mxu0 %v171
    %598 = vmatpush1.msra.mxu0 %v170
    %599 = vmatprep.subr.mxu0 %v175
    %600 = vmatpush1.msra.mxu0 %v174
    %601 = vmatprep.subr.mxu0 %v179
    %602 = vmatpush1.msra.mxu0 %v178
    %603 = vmatprep.subr.mxu0 %v183
    %604 = vmatpush1.msra.mxu0 %v182
    %605 = vmatprep.subr.mxu0 %v187
    %606 = vmatpush1.msra.mxu0 %v186
    %607 = vmatprep.subr.mxu0 %v191
    %608 = vmatpush1.msra.mxu0 %v190
    %609 = vmatprep.subr.mxu0 %v195
    %610 = vmatpush1.msra.mxu0 %v194
    %611 = vmatprep.subr.mxu0 %v199
    %612 = vmatpush1.msra.mxu0 %v198
    %613 = vmatprep.subr.mxu0 %v203
    %614 = vmatpush1.msra.mxu0 %v202
    %615 = vmatprep.subr.mxu0 %v207
    %616 = vmatpush1.msra.mxu0 %v206
    %617 = vmatprep.subr.mxu0 %v211
    %618 = vmatpush1.msra.mxu0 %v210
    %619 = vmatprep.subr.mxu0 %v215
    %620 = vmatpush1.msra.mxu0 %v214
    %621 = vmatprep.subr.mxu0 %v219
    %622 = vmatpush1.msra.mxu0 %v218
    %623 = vmatprep.subr.mxu0 %v223
    %624 = vmatpush1.msra.mxu0 %v222
    %625 = vmatprep.subr.mxu0 %v227
    %626 = vmatpush1.msra.mxu0 %v226
    %627 = vmatprep.subr.mxu0 0.0
    %628 = vmatpush1.msra.mxu0 0.0
    %629 = vmatprep.subr.mxu0 0.0
    %630 = vmatpush1.msra.mxu0 0.0
    %631 = vmatprep.subr.mxu0 0.0
    %632 = vmatpush1.msra.mxu0 0.0
    %633 = vmatprep.subr.mxu0 0.0
    %634 = vmatpush1.msra.mxu0 0.0
    %635 = vmatprep.subr.mxu0 0.0
    %636 = vmatpush1.msra.mxu0 0.0
    %637 = vmatprep.subr.mxu0 0.0
    %638 = vmatpush1.msra.mxu0 0.0
    %639 = vmatprep.subr.mxu0 0.0
    %640 = vmatpush1.msra.mxu0 0.0
    %641 = vmatprep.subr.mxu0 0.0
    %642 = vmatpush1.msra.mxu0 0.0
    %643 = vmatprep.subr.mxu0 0.0
    %644 = vmatpush1.msra.mxu0 0.0
    %645 = vmatprep.subr.mxu0 0.0
    %646 = vmatpush1.msra.mxu0 0.0
    %647 = vmatprep.subr.mxu0 0.0
    %648 = vmatpush1.msra.mxu0 0.0
    %649 = vmatprep.subr.mxu0 0.0
    %650 = vmatpush1.msra.mxu0 0.0
    %651 = vmatprep.subr.mxu0 0.0
    %652 = vmatpush1.msra.mxu0 0.0
    %653 = vmatprep.subr.mxu0 0.0
    %654 = vmatpush1.msra.mxu0 0.0
    %655 = vmatprep.subr.mxu0 0.0
    %656 = vmatpush1.msra.mxu0 0.0
    %657 = vmatprep.subr.mxu0 0.0
    %658 = vmatpush1.msra.mxu0 0.0
    %659 = vmatprep.mubr.f32.mxu0 0.0
    %660 = vmatmul.mubr.f32.gmra.mrb[0].mxu0 %v523
    %v661 = vpop.f32.mrb[0].mxu0
    %v662 = vadd.f32 0.0, %v661
    %v663 = vpop.f32.mrb[0].mxu0
    %v664 = vadd.f32 0.0, %v663
    %665 = vdwg.mxu0
    %v666 = vadd.f32 %v149, %v591
    %v667 = vadd.f32 %v150, %v593
    %v668 = vxor.u32 %v666, 2147483648
    %v669 = vmul.f32 %v668, 1.442695
    %v670 = vpow.pop %v669
    %v671 = vadd.f32 %v670, 1.0
    %v672 = vrcp.pop %v671
    %v673 = vmul.f32 1.0, %v672
    %v674 = vtanh.pop %v667
    %v675 = vxor.u32 %v667, 2147483648
    %v676 = vmul.f32 %v675, 1.442695
    %v677 = vpow.pop %v676
    %v678 = vadd.f32 %v677, 1.0
    %v679 = vrcp.pop %v678
    %v680 = vmul.f32 1.0, %v679
    %v681 = vmul.f32 %v673, %v391
    %v682 = vmul.f32 %v673, %v674
    %684 = vrot.lane.b32.xlu0 %v682, 64
    %v685 = vpop.permute.xlu0 %684
    %v687 = vadd.f32 %v681, %v685
    %v688 = vtanh.pop %v687
    %v689 = vmul.f32 %v680, %v688
    %691 = vrot.lane.b32.xlu0 %v689, 64
    %v692 = vpop.permute.xlu0 %691
    %v693 = vsel %vm413, %v692, 0
    %695 = vmatprep.subr.mxu0 %v395
    %696 = vmatpush1.msra.mxu0 %v394
    %697 = vmatprep.subr.mxu0 %v397
    %698 = vmatpush1.msra.mxu0 %v396
    %699 = vmatprep.subr.mxu0 %v399
    %700 = vmatpush1.msra.mxu0 %v398
    %701 = vmatprep.subr.mxu0 %v401
    %702 = vmatpush1.msra.mxu0 %v400
    %703 = vmatprep.subr.mxu0 %v403
    %704 = vmatpush1.msra.mxu0 %v402
    %705 = vmatprep.subr.mxu0 %v405
    %706 = vmatpush1.msra.mxu0 %v404
    %707 = vmatprep.subr.mxu0 %v407
    %708 = vmatpush1.msra.mxu0 %v406
    %709 = vmatprep.subr.mxu0 %v409
    %710 = vmatpush1.msra.mxu0 %v408
    %711 = vmatprep.subr.mxu0 0.0
    %712 = vmatpush1.msra.mxu0 0.0
    %713 = vmatprep.subr.mxu0 0.0
    %714 = vmatpush1.msra.mxu0 0.0
    %715 = vmatprep.subr.mxu0 0.0
    %716 = vmatpush1.msra.mxu0 0.0
    %717 = vmatprep.subr.mxu0 0.0
    %718 = vmatpush1.msra.mxu0 0.0
    %719 = vmatprep.subr.mxu0 0.0
    %720 = vmatpush1.msra.mxu0 0.0
    %721 = vmatprep.subr.mxu0 0.0
    %722 = vmatpush1.msra.mxu0 0.0
    %723 = vmatprep.subr.mxu0 0.0
    %724 = vmatpush1.msra.mxu0 0.0
    %725 = vmatprep.subr.mxu0 0.0
    %726 = vmatpush1.msra.mxu0 0.0
    %727 = vmatprep.subr.mxu0 0.0
    %728 = vmatpush1.msra.mxu0 0.0
    %729 = vmatprep.subr.mxu0 0.0
    %730 = vmatpush1.msra.mxu0 0.0
    %731 = vmatprep.subr.mxu0 0.0
    %732 = vmatpush1.msra.mxu0 0.0
    %733 = vmatprep.subr.mxu0 0.0
    %734 = vmatpush1.msra.mxu0 0.0
    %735 = vmatprep.subr.mxu0 0.0
    %736 = vmatpush1.msra.mxu0 0.0
    %737 = vmatprep.subr.mxu0 0.0
    %738 = vmatpush1.msra.mxu0 0.0
    %739 = vmatprep.subr.mxu0 0.0
    %740 = vmatpush1.msra.mxu0 0.0
    %741 = vmatprep.subr.mxu0 0.0
    %742 = vmatpush1.msra.mxu0 0.0
    %743 = vmatprep.subr.mxu0 0.0
    %744 = vmatpush1.msra.mxu0 0.0
    %745 = vmatprep.subr.mxu0 0.0
    %746 = vmatpush1.msra.mxu0 0.0
    %747 = vmatprep.subr.mxu0 0.0
    %748 = vmatpush1.msra.mxu0 0.0
    %749 = vmatprep.subr.mxu0 0.0
    %750 = vmatpush1.msra.mxu0 0.0
    %751 = vmatprep.subr.mxu0 0.0
    %752 = vmatpush1.msra.mxu0 0.0
    %753 = vmatprep.subr.mxu0 0.0
    %754 = vmatpush1.msra.mxu0 0.0
    %755 = vmatprep.subr.mxu0 0.0
    %756 = vmatpush1.msra.mxu0 0.0
    %757 = vmatprep.subr.mxu0 0.0
    %758 = vmatpush1.msra.mxu0 0.0
    %759 = vmatprep.mubr.f32.mxu0 0.0
    %760 = vmatmul.mubr.f32.gmra.mrb[0].mxu0 %v693
    %v761 = vpop.f32.mrb[0].mxu0
    %v762 = vadd.f32 %v662, %v761
    %v763 = vpop.f32.mrb[0].mxu0
    %v764 = vadd.f32 %v664, %v763
    %765 = vdwg.mxu0
    %v766 = vadd.f32 %v762, %v491
    %v767 = vadd.f32 %v764, %v495
    %v768 = vxor.u32 %v766, 2147483648
    %v769 = vmul.f32 %v768, 1.442695
    %v770 = vpow.pop %v769
    %v771 = vadd.f32 %v770, 1.0
    %v772 = vrcp.pop %v771
    %v773 = vmul.f32 1.0, %v772
    %v774 = vtanh.pop %v767
    %v775 = vxor.u32 %v767, 2147483648
    %v776 = vmul.f32 %v775, 1.442695
    %v777 = vpow.pop %v776
    %v778 = vadd.f32 %v777, 1.0
    %v779 = vrcp.pop %v778
    %v780 = vmul.f32 1.0, %v779
    %v781 = vmul.f32 %v773, %v519
    %v782 = vmul.f32 %v773, %v774
    %784 = vrot.lane.b32.xlu0 %v782, 64
    %v785 = vpop.permute.xlu0 %784
    %v787 = vadd.f32 %v781, %v785
    %v788 = vtanh.pop %v787
    %v789 = vmul.f32 %v780, %v788
    %v791 = vsel %vm413, %v692, %v789
    %792 = vmatprep.subr.mxu0 %v165
    %793 = vmatpush1.msra.mxu0 %v164
    %794 = vmatprep.subr.mxu0 %v169
    %795 = vmatpush1.msra.mxu0 %v168
    %796 = vmatprep.subr.mxu0 %v173
    %797 = vmatpush1.msra.mxu0 %v172
    %798 = vmatprep.subr.mxu0 %v177
    %799 = vmatpush1.msra.mxu0 %v176
    %800 = vmatprep.subr.mxu0 %v181
    %801 = vmatpush1.msra.mxu0 %v180
    %802 = vmatprep.subr.mxu0 %v185
    %803 = vmatpush1.msra.mxu0 %v184
    %804 = vmatprep.subr.mxu0 %v189
    %805 = vmatpush1.msra.mxu0 %v188
    %806 = vmatprep.subr.mxu0 %v193
    %807 = vmatpush1.msra.mxu0 %v192
    %808 = vmatprep.subr.mxu0 %v197
    %809 = vmatpush1.msra.mxu0 %v196
    %810 = vmatprep.subr.mxu0 %v201
    %811 = vmatpush1.msra.mxu0 %v200
    %812 = vmatprep.subr.mxu0 %v205
    %813 = vmatpush1.msra.mxu0 %v204
    %814 = vmatprep.subr.mxu0 %v209
    %815 = vmatpush1.msra.mxu0 %v208
    %816 = vmatprep.subr.mxu0 %v213
    %817 = vmatpush1.msra.mxu0 %v212
    %818 = vmatprep.subr.mxu0 %v217
    %819 = vmatpush1.msra.mxu0 %v216
    %820 = vmatprep.subr.mxu0 %v221
    %821 = vmatpush1.msra.mxu0 %v220
    %822 = vmatprep.subr.mxu0 %v225
    %823 = vmatpush1.msra.mxu0 %v224
    %824 = vmatprep.subr.mxu0 0.0
    %825 = vmatpush1.msra.mxu0 0.0
    %826 = vmatprep.subr.mxu0 0.0
    %827 = vmatpush1.msra.mxu0 0.0
    %828 = vmatprep.subr.mxu0 0.0
    %829 = vmatpush1.msra.mxu0 0.0
    %830 = vmatprep.subr.mxu0 0.0
    %831 = vmatpush1.msra.mxu0 0.0
    %832 = vmatprep.subr.mxu0 0.0
    %833 = vmatpush1.msra.mxu0 0.0
    %834 = vmatprep.subr.mxu0 0.0
    %835 = vmatpush1.msra.mxu0 0.0
    %836 = vmatprep.subr.mxu0 0.0
    %837 = vmatpush1.msra.mxu0 0.0
    %838 = vmatprep.subr.mxu0 0.0
    %839 = vmatpush1.msra.mxu0 0.0
    %840 = vmatprep.subr.mxu0 0.0
    %841 = vmatpush1.msra.mxu0 0.0
    %842 = vmatprep.subr.mxu0 0.0
    %843 = vmatpush1.msra.mxu0 0.0
    %844 = vmatprep.subr.mxu0 0.0
    %845 = vmatpush1.msra.mxu0 0.0
    %846 = vmatprep.subr.mxu0 0.0
    %847 = vmatpush1.msra.mxu0 0.0
    %848 = vmatprep.subr.mxu0 0.0
    %849 = vmatpush1.msra.mxu0 0.0
    %850 = vmatprep.subr.mxu0 0.0
    %851 = vmatpush1.msra.mxu0 0.0
    %852 = vmatprep.subr.mxu0 0.0
    %853 = vmatpush1.msra.mxu0 0.0
    %854 = vmatprep.subr.mxu0 0.0
    %855 = vmatpush1.msra.mxu0 0.0
    %856 = vmatprep.mubr.f32.mxu0 0.0
    %857 = vmatmul.mubr.f32.gmra.mrb[0].mxu0 %v791
    %v858 = vpop.f32.mrb[0].mxu0
    %v859 = vadd.f32 0.0, %v858
    %v860 = vpop.f32.mrb[0].mxu0
    %v861 = vadd.f32 0.0, %v860
    %862 = vdwg.mxu0
    %863 = vmatprep.subr.mxu0 %v167
    %864 = vmatpush1.msra.mxu0 %v166
    %865 = vmatprep.subr.mxu0 %v171
    %866 = vmatpush1.msra.mxu0 %v170
    %867 = vmatprep.subr.mxu0 %v175
    %868 = vmatpush1.msra.mxu0 %v174
    %869 = vmatprep.subr.mxu0 %v179
    %870 = vmatpush1.msra.mxu0 %v178
    %871 = vmatprep.subr.mxu0 %v183
    %872 = vmatpush1.msra.mxu0 %v182
    %873 = vmatprep.subr.mxu0 %v187
    %874 = vmatpush1.msra.mxu0 %v186
    %875 = vmatprep.subr.mxu0 %v191
    %876 = vmatpush1.msra.mxu0 %v190
    %877 = vmatprep.subr.mxu0 %v195
    %878 = vmatpush1.msra.mxu0 %v194
    %879 = vmatprep.subr.mxu0 %v199
    %880 = vmatpush1.msra.mxu0 %v198
    %881 = vmatprep.subr.mxu0 %v203
    %882 = vmatpush1.msra.mxu0 %v202
    %883 = vmatprep.subr.mxu0 %v207
    %884 = vmatpush1.msra.mxu0 %v206
    %885 = vmatprep.subr.mxu0 %v211
    %886 = vmatpush1.msra.mxu0 %v210
    %887 = vmatprep.subr.mxu0 %v215
    %888 = vmatpush1.msra.mxu0 %v214
    %889 = vmatprep.subr.mxu0 %v219
    %890 = vmatpush1.msra.mxu0 %v218
    %891 = vmatprep.subr.mxu0 %v223
    %892 = vmatpush1.msra.mxu0 %v222
    %893 = vmatprep.subr.mxu0 %v227
    %894 = vmatpush1.msra.mxu0 %v226
    %895 = vmatprep.subr.mxu0 0.0
    %896 = vmatpush1.msra.mxu0 0.0
    %897 = vmatprep.subr.mxu0 0.0
    %898 = vmatpush1.msra.mxu0 0.0
    %899 = vmatprep.subr.mxu0 0.0
    %900 = vmatpush1.msra.mxu0 0.0
    %901 = vmatprep.subr.mxu0 0.0
    %902 = vmatpush1.msra.mxu0 0.0
    %903 = vmatprep.subr.mxu0 0.0
    %904 = vmatpush1.msra.mxu0 0.0
    %905 = vmatprep.subr.mxu0 0.0
    %906 = vmatpush1.msra.mxu0 0.0
    %907 = vmatprep.subr.mxu0 0.0
    %908 = vmatpush1.msra.mxu0 0.0
    %909 = vmatprep.subr.mxu0 0.0
    %910 = vmatpush1.msra.mxu0 0.0
    %911 = vmatprep.subr.mxu0 0.0
    %912 = vmatpush1.msra.mxu0 0.0
    %913 = vmatprep.subr.mxu0 0.0
    %914 = vmatpush1.msra.mxu0 0.0
    %915 = vmatprep.subr.mxu0 0.0
    %916 = vmatpush1.msra.mxu0 0.0
    %917 = vmatprep.subr.mxu0 0.0
    %918 = vmatpush1.msra.mxu0 0.0
    %919 = vmatprep.subr.mxu0 0.0
    %920 = vmatpush1.msra.mxu0 0.0
    %921 = vmatprep.subr.mxu0 0.0
    %922 = vmatpush1.msra.mxu0 0.0
    %923 = vmatprep.subr.mxu0 0.0
    %924 = vmatpush1.msra.mxu0 0.0
    %925 = vmatprep.subr.mxu0 0.0
    %926 = vmatpush1.msra.mxu0 0.0
    %927 = vmatprep.mubr.f32.mxu0 0.0
    %928 = vmatmul.mubr.f32.gmra.mrb[0].mxu0 %v791
    %v929 = vpop.f32.mrb[0].mxu0
    %v930 = vadd.f32 0.0, %v929
    %v931 = vpop.f32.mrb[0].mxu0
    %v932 = vadd.f32 0.0, %v931
    %933 = vdwg.mxu0
    %v934 = vadd.f32 %v151, %v859
    %v935 = vadd.f32 %v152, %v861
    %v936 = vxor.u32 %v934, 2147483648
    %v937 = vmul.f32 %v936, 1.442695
    %v938 = vpow.pop %v937
    %v939 = vadd.f32 %v938, 1.0
    %v940 = vrcp.pop %v939
    %v941 = vmul.f32 1.0, %v940
    %v942 = vtanh.pop %v935
    %v943 = vxor.u32 %v935, 2147483648
    %v944 = vmul.f32 %v943, 1.442695
    %v945 = vpow.pop %v944
    %v946 = vadd.f32 %v945, 1.0
    %v947 = vrcp.pop %v946
    %v948 = vmul.f32 1.0, %v947
    %v949 = vmul.f32 %v941, %v687
    %v950 = vmul.f32 %v941, %v942
    %952 = vrot.lane.b32.xlu0 %v950, 64
    %v953 = vpop.permute.xlu0 %952
    %v955 = vadd.f32 %v949, %v953
    %v956 = vtanh.pop %v955
    %v957 = vmul.f32 %v948, %v956
    %959 = vrot.lane.b32.xlu0 %v957, 64
    %v960 = vpop.permute.xlu0 %959
    %v961 = vsel %vm413, %v960, 0
    %963 = vmatprep.subr.mxu0 %v395
    %964 = vmatpush1.msra.mxu0 %v394
    %965 = vmatprep.subr.mxu0 %v397
    %966 = vmatpush1.msra.mxu0 %v396
    %967 = vmatprep.subr.mxu0 %v399
    %968 = vmatpush1.msra.mxu0 %v398
    %969 = vmatprep.subr.mxu0 %v401
    %970 = vmatpush1.msra.mxu0 %v400
    %971 = vmatprep.subr.mxu0 %v403
    %972 = vmatpush1.msra.mxu0 %v402
    %973 = vmatprep.subr.mxu0 %v405
    %974 = vmatpush1.msra.mxu0 %v404
    %975 = vmatprep.subr.mxu0 %v407
    %976 = vmatpush1.msra.mxu0 %v406
    %977 = vmatprep.subr.mxu0 %v409
    %978 = vmatpush1.msra.mxu0 %v408
    %979 = vmatprep.subr.mxu0 0.0
    %980 = vmatpush1.msra.mxu0 0.0
    %981 = vmatprep.subr.mxu0 0.0
    %982 = vmatpush1.msra.mxu0 0.0
    %983 = vmatprep.subr.mxu0 0.0
    %984 = vmatpush1.msra.mxu0 0.0
    %985 = vmatprep.subr.mxu0 0.0
    %986 = vmatpush1.msra.mxu0 0.0
    %987 = vmatprep.subr.mxu0 0.0
    %988 = vmatpush1.msra.mxu0 0.0
    %989 = vmatprep.subr.mxu0 0.0
    %990 = vmatpush1.msra.mxu0 0.0
    %991 = vmatprep.subr.mxu0 0.0
    %992 = vmatpush1.msra.mxu0 0.0
    %993 = vmatprep.subr.mxu0 0.0
    %994 = vmatpush1.msra.mxu0 0.0
    %995 = vmatprep.subr.mxu0 0.0
    %996 = vmatpush1.msra.mxu0 0.0
    %997 = vmatprep.subr.mxu0 0.0
    %998 = vmatpush1.msra.mxu0 0.0
    %999 = vmatprep.subr.mxu0 0.0
    %1000 = vmatpush1.msra.mxu0 0.0
    %1001 = vmatprep.subr.mxu0 0.0
    %1002 = vmatpush1.msra.mxu0 0.0
    %1003 = vmatprep.subr.mxu0 0.0
    %1004 = vmatpush1.msra.mxu0 0.0
    %1005 = vmatprep.subr.mxu0 0.0
    %1006 = vmatpush1.msra.mxu0 0.0
    %1007 = vmatprep.subr.mxu0 0.0
    %1008 = vmatpush1.msra.mxu0 0.0
    %1009 = vmatprep.subr.mxu0 0.0
    %1010 = vmatpush1.msra.mxu0 0.0
    %1011 = vmatprep.subr.mxu0 0.0
    %1012 = vmatpush1.msra.mxu0 0.0
    %1013 = vmatprep.subr.mxu0 0.0
    %1014 = vmatpush1.msra.mxu0 0.0
    %1015 = vmatprep.subr.mxu0 0.0
    %1016 = vmatpush1.msra.mxu0 0.0
    %1017 = vmatprep.subr.mxu0 0.0
    %1018 = vmatpush1.msra.mxu0 0.0
    %1019 = vmatprep.subr.mxu0 0.0
    %1020 = vmatpush1.msra.mxu0 0.0
    %1021 = vmatprep.subr.mxu0 0.0
    %1022 = vmatpush1.msra.mxu0 0.0
    %1023 = vmatprep.subr.mxu0 0.0
    %1024 = vmatpush1.msra.mxu0 0.0
    %1025 = vmatprep.subr.mxu0 0.0
    %1026 = vmatpush1.msra.mxu0 0.0
    %1027 = vmatprep.mubr.f32.mxu0 0.0
    %1028 = vmatmul.mubr.f32.gmra.mrb[0].mxu0 %v961
    %v1029 = vpop.f32.mrb[0].mxu0
    %v1030 = vadd.f32 %v930, %v1029
    %v1031 = vpop.f32.mrb[0].mxu0
    %v1032 = vadd.f32 %v932, %v1031
    %1033 = vdwg.mxu0
    %v1034 = vadd.f32 %v1030, %v491
    %v1035 = vadd.f32 %v1032, %v495
    %v1036 = vxor.u32 %v1034, 2147483648
    %v1037 = vmul.f32 %v1036, 1.442695
    %v1038 = vpow.pop %v1037
    %v1039 = vadd.f32 %v1038, 1.0
    %v1040 = vrcp.pop %v1039
    %v1041 = vmul.f32 1.0, %v1040
    %v1042 = vtanh.pop %v1035
    %v1043 = vxor.u32 %v1035, 2147483648
    %v1044 = vmul.f32 %v1043, 1.442695
    %v1045 = vpow.pop %v1044
    %v1046 = vadd.f32 %v1045, 1.0
    %v1047 = vrcp.pop %v1046
    %v1048 = vmul.f32 1.0, %v1047
    %v1049 = vmul.f32 %v1041, %v787
    %v1050 = vmul.f32 %v1041, %v1042
    %1052 = vrot.lane.b32.xlu0 %v1050, 64
    %v1053 = vpop.permute.xlu0 %1052
    %v1055 = vadd.f32 %v1049, %v1053
    %v1056 = vtanh.pop %v1055
    %v1057 = vmul.f32 %v1048, %v1056
    %v1059 = vsel %vm413, %v960, %v1057
    %1060 = vmatprep.subr.mxu0 %v165
    %1061 = vmatpush1.msra.mxu0 %v164
    %1062 = vmatprep.subr.mxu0 %v169
    %1063 = vmatpush1.msra.mxu0 %v168
    %1064 = vmatprep.subr.mxu0 %v173
    %1065 = vmatpush1.msra.mxu0 %v172
    %1066 = vmatprep.subr.mxu0 %v177
    %1067 = vmatpush1.msra.mxu0 %v176
    %1068 = vmatprep.subr.mxu0 %v181
    %1069 = vmatpush1.msra.mxu0 %v180
    %1070 = vmatprep.subr.mxu0 %v185
    %1071 = vmatpush1.msra.mxu0 %v184
    %1072 = vmatprep.subr.mxu0 %v189
    %1073 = vmatpush1.msra.mxu0 %v188
    %1074 = vmatprep.subr.mxu0 %v193
    %1075 = vmatpush1.msra.mxu0 %v192
    %1076 = vmatprep.subr.mxu0 %v197
    %1077 = vmatpush1.msra.mxu0 %v196
    %1078 = vmatprep.subr.mxu0 %v201
    %1079 = vmatpush1.msra.mxu0 %v200
    %1080 = vmatprep.subr.mxu0 %v205
    %1081 = vmatpush1.msra.mxu0 %v204
    %1082 = vmatprep.subr.mxu0 %v209
    %1083 = vmatpush1.msra.mxu0 %v208
    %1084 = vmatprep.subr.mxu0 %v213
    %1085 = vmatpush1.msra.mxu0 %v212
    %1086 = vmatprep.subr.mxu0 %v217
    %1087 = vmatpush1.msra.mxu0 %v216
    %1088 = vmatprep.subr.mxu0 %v221
    %1089 = vmatpush1.msra.mxu0 %v220
    %1090 = vmatprep.subr.mxu0 %v225
    %1091 = vmatpush1.msra.mxu0 %v224
    %1092 = vmatprep.subr.mxu0 0.0
    %1093 = vmatpush1.msra.mxu0 0.0
    %1094 = vmatprep.subr.mxu0 0.0
    %1095 = vmatpush1.msra.mxu0 0.0
    %1096 = vmatprep.subr.mxu0 0.0
    %1097 = vmatpush1.msra.mxu0 0.0
    %1098 = vmatprep.subr.mxu0 0.0
    %1099 = vmatpush1.msra.mxu0 0.0
    %1100 = vmatprep.subr.mxu0 0.0
    %1101 = vmatpush1.msra.mxu0 0.0
    %1102 = vmatprep.subr.mxu0 0.0
    %1103 = vmatpush1.msra.mxu0 0.0
    %1104 = vmatprep.subr.mxu0 0.0
    %1105 = vmatpush1.msra.mxu0 0.0
    %1106 = vmatprep.subr.mxu0 0.0
    %1107 = vmatpush1.msra.mxu0 0.0
    %1108 = vmatprep.subr.mxu0 0.0
    %1109 = vmatpush1.msra.mxu0 0.0
    %1110 = vmatprep.subr.mxu0 0.0
    %1111 = vmatpush1.msra.mxu0 0.0
    %1112 = vmatprep.subr.mxu0 0.0
    %1113 = vmatpush1.msra.mxu0 0.0
    %1114 = vmatprep.subr.mxu0 0.0
    %1115 = vmatpush1.msra.mxu0 0.0
    %1116 = vmatprep.subr.mxu0 0.0
    %1117 = vmatpush1.msra.mxu0 0.0
    %1118 = vmatprep.subr.mxu0 0.0
    %1119 = vmatpush1.msra.mxu0 0.0
    %1120 = vmatprep.subr.mxu0 0.0
    %1121 = vmatpush1.msra.mxu0 0.0
    %1122 = vmatprep.subr.mxu0 0.0
    %1123 = vmatpush1.msra.mxu0 0.0
    %1124 = vmatprep.mubr.f32.mxu0 0.0
    %1125 = vmatmul.mubr.f32.gmra.mrb[0].mxu0 %v1059
    %v1126 = vpop.f32.mrb[0].mxu0
    %v1127 = vadd.f32 0.0, %v1126
    %v1128 = vpop.f32.mrb[0].mxu0
    %v1129 = vadd.f32 0.0, %v1128
    %1130 = vdwg.mxu0
    %1131 = vmatprep.subr.mxu0 %v167
    %1132 = vmatpush1.msra.mxu0 %v166
    %1133 = vmatprep.subr.mxu0 %v171
    %1134 = vmatpush1.msra.mxu0 %v170
    %1135 = vmatprep.subr.mxu0 %v175
    %1136 = vmatpush1.msra.mxu0 %v174
    %1137 = vmatprep.subr.mxu0 %v179
    %1138 = vmatpush1.msra.mxu0 %v178
    %1139 = vmatprep.subr.mxu0 %v183
    %1140 = vmatpush1.msra.mxu0 %v182
    %1141 = vmatprep.subr.mxu0 %v187
    %1142 = vmatpush1.msra.mxu0 %v186
    %1143 = vmatprep.subr.mxu0 %v191
    %1144 = vmatpush1.msra.mxu0 %v190
    %1145 = vmatprep.subr.mxu0 %v195
    %1146 = vmatpush1.msra.mxu0 %v194
    %1147 = vmatprep.subr.mxu0 %v199
    %1148 = vmatpush1.msra.mxu0 %v198
    %1149 = vmatprep.subr.mxu0 %v203
    %1150 = vmatpush1.msra.mxu0 %v202
    %1151 = vmatprep.subr.mxu0 %v207
    %1152 = vmatpush1.msra.mxu0 %v206
    %1153 = vmatprep.subr.mxu0 %v211
    %1154 = vmatpush1.msra.mxu0 %v210
    %1155 = vmatprep.subr.mxu0 %v215
    %1156 = vmatpush1.msra.mxu0 %v214
    %1157 = vmatprep.subr.mxu0 %v219
    %1158 = vmatpush1.msra.mxu0 %v218
    %1159 = vmatprep.subr.mxu0 %v223
    %1160 = vmatpush1.msra.mxu0 %v222
    %1161 = vmatprep.subr.mxu0 %v227
    %1162 = vmatpush1.msra.mxu0 %v226
    %1163 = vmatprep.subr.mxu0 0.0
    %1164 = vmatpush1.msra.mxu0 0.0
    %1165 = vmatprep.subr.mxu0 0.0
    %1166 = vmatpush1.msra.mxu0 0.0
    %1167 = vmatprep.subr.mxu0 0.0
    %1168 = vmatpush1.msra.mxu0 0.0
    %1169 = vmatprep.subr.mxu0 0.0
    %1170 = vmatpush1.msra.mxu0 0.0
    %1171 = vmatprep.subr.mxu0 0.0
    %1172 = vmatpush1.msra.mxu0 0.0
    %1173 = vmatprep.subr.mxu0 0.0
    %1174 = vmatpush1.msra.mxu0 0.0
    %1175 = vmatprep.subr.mxu0 0.0
    %1176 = vmatpush1.msra.mxu0 0.0
    %1177 = vmatprep.subr.mxu0 0.0
    %1178 = vmatpush1.msra.mxu0 0.0
    %1179 = vmatprep.subr.mxu0 0.0
    %1180 = vmatpush1.msra.mxu0 0.0
    %1181 = vmatprep.subr.mxu0 0.0
    %1182 = vmatpush1.msra.mxu0 0.0
    %1183 = vmatprep.subr.mxu0 0.0
    %1184 = vmatpush1.msra.mxu0 0.0
    %1185 = vmatprep.subr.mxu0 0.0
    %1186 = vmatpush1.msra.mxu0 0.0
    %1187 = vmatprep.subr.mxu0 0.0
    %1188 = vmatpush1.msra.mxu0 0.0
    %1189 = vmatprep.subr.mxu0 0.0
    %1190 = vmatpush1.msra.mxu0 0.0
    %1191 = vmatprep.subr.mxu0 0.0
    %1192 = vmatpush1.msra.mxu0 0.0
    %1193 = vmatprep.subr.mxu0 0.0
    %1194 = vmatpush1.msra.mxu0 0.0
    %1195 = vmatprep.mubr.f32.mxu0 0.0
    %1196 = vmatmul.mubr.f32.gmra.mrb[0].mxu0 %v1059
    %v1197 = vpop.f32.mrb[0].mxu0
    %v1198 = vadd.f32 0.0, %v1197
    %v1199 = vpop.f32.mrb[0].mxu0
    %v1200 = vadd.f32 0.0, %v1199
    %1201 = vdwg.mxu0
    %v1202 = vadd.f32 %v153, %v1127
    %v1203 = vadd.f32 %v154, %v1129
    %v1204 = vxor.u32 %v1202, 2147483648
    %v1205 = vmul.f32 %v1204, 1.442695
    %v1206 = vpow.pop %v1205
    %v1207 = vadd.f32 %v1206, 1.0
    %v1208 = vrcp.pop %v1207
    %v1209 = vmul.f32 1.0, %v1208
    %v1210 = vtanh.pop %v1203
    %v1211 = vxor.u32 %v1203, 2147483648
    %v1212 = vmul.f32 %v1211, 1.442695
    %v1213 = vpow.pop %v1212
    %v1214 = vadd.f32 %v1213, 1.0
    %v1215 = vrcp.pop %v1214
    %v1216 = vmul.f32 1.0, %v1215
    %v1217 = vmul.f32 %v1209, %v955
    %v1218 = vmul.f32 %v1209, %v1210
    %1220 = vrot.lane.b32.xlu0 %v1218, 64
    %v1221 = vpop.permute.xlu0 %1220
    %v1223 = vadd.f32 %v1217, %v1221
    %v1224 = vtanh.pop %v1223
    %v1225 = vmul.f32 %v1216, %v1224
    %1227 = vrot.lane.b32.xlu0 %v1225, 64
    %v1228 = vpop.permute.xlu0 %1227
    %v1229 = vsel %vm413, %v1228, 0
    %1231 = vmatprep.subr.mxu0 %v395
    %1232 = vmatpush1.msra.mxu0 %v394
    %1233 = vmatprep.subr.mxu0 %v397
    %1234 = vmatpush1.msra.mxu0 %v396
    %1235 = vmatprep.subr.mxu0 %v399
    %1236 = vmatpush1.msra.mxu0 %v398
    %1237 = vmatprep.subr.mxu0 %v401
    %1238 = vmatpush1.msra.mxu0 %v400
    %1239 = vmatprep.subr.mxu0 %v403
    %1240 = vmatpush1.msra.mxu0 %v402
    %1241 = vmatprep.subr.mxu0 %v405
    %1242 = vmatpush1.msra.mxu0 %v404
    %1243 = vmatprep.subr.mxu0 %v407
    %1244 = vmatpush1.msra.mxu0 %v406
    %1245 = vmatprep.subr.mxu0 %v409
    %1246 = vmatpush1.msra.mxu0 %v408
    %1247 = vmatprep.subr.mxu0 0.0
    %1248 = vmatpush1.msra.mxu0 0.0
    %1249 = vmatprep.subr.mxu0 0.0
    %1250 = vmatpush1.msra.mxu0 0.0
    %1251 = vmatprep.subr.mxu0 0.0
    %1252 = vmatpush1.msra.mxu0 0.0
    %1253 = vmatprep.subr.mxu0 0.0
    %1254 = vmatpush1.msra.mxu0 0.0
    %1255 = vmatprep.subr.mxu0 0.0
    %1256 = vmatpush1.msra.mxu0 0.0
    %1257 = vmatprep.subr.mxu0 0.0
    %1258 = vmatpush1.msra.mxu0 0.0
    %1259 = vmatprep.subr.mxu0 0.0
    %1260 = vmatpush1.msra.mxu0 0.0
    %1261 = vmatprep.subr.mxu0 0.0
    %1262 = vmatpush1.msra.mxu0 0.0
    %1263 = vmatprep.subr.mxu0 0.0
    %1264 = vmatpush1.msra.mxu0 0.0
    %1265 = vmatprep.subr.mxu0 0.0
    %1266 = vmatpush1.msra.mxu0 0.0
    %1267 = vmatprep.subr.mxu0 0.0
    %1268 = vmatpush1.msra.mxu0 0.0
    %1269 = vmatprep.subr.mxu0 0.0
    %1270 = vmatpush1.msra.mxu0 0.0
    %1271 = vmatprep.subr.mxu0 0.0
    %1272 = vmatpush1.msra.mxu0 0.0
    %1273 = vmatprep.subr.mxu0 0.0
    %1274 = vmatpush1.msra.mxu0 0.0
    %1275 = vmatprep.subr.mxu0 0.0
    %1276 = vmatpush1.msra.mxu0 0.0
    %1277 = vmatprep.subr.mxu0 0.0
    %1278 = vmatpush1.msra.mxu0 0.0
    %1279 = vmatprep.subr.mxu0 0.0
    %1280 = vmatpush1.msra.mxu0 0.0
    %1281 = vmatprep.subr.mxu0 0.0
    %1282 = vmatpush1.msra.mxu0 0.0
    %1283 = vmatprep.subr.mxu0 0.0
    %1284 = vmatpush1.msra.mxu0 0.0
    %1285 = vmatprep.subr.mxu0 0.0
    %1286 = vmatpush1.msra.mxu0 0.0
    %1287 = vmatprep.subr.mxu0 0.0
    %1288 = vmatpush1.msra.mxu0 0.0
    %1289 = vmatprep.subr.mxu0 0.0
    %1290 = vmatpush1.msra.mxu0 0.0
    %1291 = vmatprep.subr.mxu0 0.0
    %1292 = vmatpush1.msra.mxu0 0.0
    %1293 = vmatprep.subr.mxu0 0.0
    %1294 = vmatpush1.msra.mxu0 0.0
    %1295 = vmatprep.mubr.f32.mxu0 0.0
    %1296 = vmatmul.mubr.f32.gmra.mrb[0].mxu0 %v1229
    %v1297 = vpop.f32.mrb[0].mxu0
    %v1298 = vadd.f32 %v1198, %v1297
    %v1299 = vpop.f32.mrb[0].mxu0
    %v1300 = vadd.f32 %v1200, %v1299
    %1301 = vdwg.mxu0
    %v1302 = vadd.f32 %v1298, %v491
    %v1303 = vadd.f32 %v1300, %v495
    %v1304 = vxor.u32 %v1302, 2147483648
    %v1305 = vmul.f32 %v1304, 1.442695
    %v1306 = vpow.pop %v1305
    %v1307 = vadd.f32 %v1306, 1.0
    %v1308 = vrcp.pop %v1307
    %v1309 = vmul.f32 1.0, %v1308
    %v1310 = vtanh.pop %v1303
    %v1311 = vxor.u32 %v1303, 2147483648
    %v1312 = vmul.f32 %v1311, 1.442695
    %v1313 = vpow.pop %v1312
    %v1314 = vadd.f32 %v1313, 1.0
    %v1315 = vrcp.pop %v1314
    %v1316 = vmul.f32 1.0, %v1315
    %v1317 = vmul.f32 %v1309, %v1055
    %v1318 = vmul.f32 %v1309, %v1310
    %1320 = vrot.lane.b32.xlu0 %v1318, 64
    %v1321 = vpop.permute.xlu0 %1320
    %v1323 = vadd.f32 %v1317, %v1321
    %v1324 = vtanh.pop %v1323
    %v1325 = vmul.f32 %v1316, %v1324
    %v1327 = vsel %vm413, %v1228, %v1325
    %1328 = vmatprep.subr.mxu0 %v165
    %1329 = vmatpush1.msra.mxu0 %v164
    %1330 = vmatprep.subr.mxu0 %v169
    %1331 = vmatpush1.msra.mxu0 %v168
    %1332 = vmatprep.subr.mxu0 %v173
    %1333 = vmatpush1.msra.mxu0 %v172
    %1334 = vmatprep.subr.mxu0 %v177
    %1335 = vmatpush1.msra.mxu0 %v176
    %1336 = vmatprep.subr.mxu0 %v181
    %1337 = vmatpush1.msra.mxu0 %v180
    %1338 = vmatprep.subr.mxu0 %v185
    %1339 = vmatpush1.msra.mxu0 %v184
    %1340 = vmatprep.subr.mxu0 %v189
    %1341 = vmatpush1.msra.mxu0 %v188
    %1342 = vmatprep.subr.mxu0 %v193
    %1343 = vmatpush1.msra.mxu0 %v192
    %1344 = vmatprep.subr.mxu0 %v197
    %1345 = vmatpush1.msra.mxu0 %v196
    %1346 = vmatprep.subr.mxu0 %v201
    %1347 = vmatpush1.msra.mxu0 %v200
    %1348 = vmatprep.subr.mxu0 %v205
    %1349 = vmatpush1.msra.mxu0 %v204
    %1350 = vmatprep.subr.mxu0 %v209
    %1351 = vmatpush1.msra.mxu0 %v208
    %1352 = vmatprep.subr.mxu0 %v213
    %1353 = vmatpush1.msra.mxu0 %v212
    %1354 = vmatprep.subr.mxu0 %v217
    %1355 = vmatpush1.msra.mxu0 %v216
    %1356 = vmatprep.subr.mxu0 %v221
    %1357 = vmatpush1.msra.mxu0 %v220
    %1358 = vmatprep.subr.mxu0 %v225
    %1359 = vmatpush1.msra.mxu0 %v224
    %1360 = vmatprep.subr.mxu0 0.0
    %1361 = vmatpush1.msra.mxu0 0.0
    %1362 = vmatprep.subr.mxu0 0.0
    %1363 = vmatpush1.msra.mxu0 0.0
    %1364 = vmatprep.subr.mxu0 0.0
    %1365 = vmatpush1.msra.mxu0 0.0
    %1366 = vmatprep.subr.mxu0 0.0
    %1367 = vmatpush1.msra.mxu0 0.0
    %1368 = vmatprep.subr.mxu0 0.0
    %1369 = vmatpush1.msra.mxu0 0.0
    %1370 = vmatprep.subr.mxu0 0.0
    %1371 = vmatpush1.msra.mxu0 0.0
    %1372 = vmatprep.subr.mxu0 0.0
    %1373 = vmatpush1.msra.mxu0 0.0
    %1374 = vmatprep.subr.mxu0 0.0
    %1375 = vmatpush1.msra.mxu0 0.0
    %1376 = vmatprep.subr.mxu0 0.0
    %1377 = vmatpush1.msra.mxu0 0.0
    %1378 = vmatprep.subr.mxu0 0.0
    %1379 = vmatpush1.msra.mxu0 0.0
    %1380 = vmatprep.subr.mxu0 0.0
    %1381 = vmatpush1.msra.mxu0 0.0
    %1382 = vmatprep.subr.mxu0 0.0
    %1383 = vmatpush1.msra.mxu0 0.0
    %1384 = vmatprep.subr.mxu0 0.0
    %1385 = vmatpush1.msra.mxu0 0.0
    %1386 = vmatprep.subr.mxu0 0.0
    %1387 = vmatpush1.msra.mxu0 0.0
    %1388 = vmatprep.subr.mxu0 0.0
    %1389 = vmatpush1.msra.mxu0 0.0
    %1390 = vmatprep.subr.mxu0 0.0
    %1391 = vmatpush1.msra.mxu0 0.0
    %1392 = vmatprep.mubr.f32.mxu0 0.0
    %1393 = vmatmul.mubr.f32.gmra.mrb[0].mxu0 %v1327
    %v1394 = vpop.f32.mrb[0].mxu0
    %v1395 = vadd.f32 0.0, %v1394
    %v1396 = vpop.f32.mrb[0].mxu0
    %v1397 = vadd.f32 0.0, %v1396
    %1398 = vdwg.mxu0
    %1399 = vmatprep.subr.mxu0 %v167
    %1400 = vmatpush1.msra.mxu0 %v166
    %1401 = vmatprep.subr.mxu0 %v171
    %1402 = vmatpush1.msra.mxu0 %v170
    %1403 = vmatprep.subr.mxu0 %v175
    %1404 = vmatpush1.msra.mxu0 %v174
    %1405 = vmatprep.subr.mxu0 %v179
    %1406 = vmatpush1.msra.mxu0 %v178
    %1407 = vmatprep.subr.mxu0 %v183
    %1408 = vmatpush1.msra.mxu0 %v182
    %1409 = vmatprep.subr.mxu0 %v187
    %1410 = vmatpush1.msra.mxu0 %v186
    %1411 = vmatprep.subr.mxu0 %v191
    %1412 = vmatpush1.msra.mxu0 %v190
    %1413 = vmatprep.subr.mxu0 %v195
    %1414 = vmatpush1.msra.mxu0 %v194
    %1415 = vmatprep.subr.mxu0 %v199
    %1416 = vmatpush1.msra.mxu0 %v198
    %1417 = vmatprep.subr.mxu0 %v203
    %1418 = vmatpush1.msra.mxu0 %v202
    %1419 = vmatprep.subr.mxu0 %v207
    %1420 = vmatpush1.msra.mxu0 %v206
    %1421 = vmatprep.subr.mxu0 %v211
    %1422 = vmatpush1.msra.mxu0 %v210
    %1423 = vmatprep.subr.mxu0 %v215
    %1424 = vmatpush1.msra.mxu0 %v214
    %1425 = vmatprep.subr.mxu0 %v219
    %1426 = vmatpush1.msra.mxu0 %v218
    %1427 = vmatprep.subr.mxu0 %v223
    %1428 = vmatpush1.msra.mxu0 %v222
    %1429 = vmatprep.subr.mxu0 %v227
    %1430 = vmatpush1.msra.mxu0 %v226
    %1431 = vmatprep.subr.mxu0 0.0
    %1432 = vmatpush1.msra.mxu0 0.0
    %1433 = vmatprep.subr.mxu0 0.0
    %1434 = vmatpush1.msra.mxu0 0.0
    %1435 = vmatprep.subr.mxu0 0.0
    %1436 = vmatpush1.msra.mxu0 0.0
    %1437 = vmatprep.subr.mxu0 0.0
    %1438 = vmatpush1.msra.mxu0 0.0
    %1439 = vmatprep.subr.mxu0 0.0
    %1440 = vmatpush1.msra.mxu0 0.0
    %1441 = vmatprep.subr.mxu0 0.0
    %1442 = vmatpush1.msra.mxu0 0.0
    %1443 = vmatprep.subr.mxu0 0.0
    %1444 = vmatpush1.msra.mxu0 0.0
    %1445 = vmatprep.subr.mxu0 0.0
    %1446 = vmatpush1.msra.mxu0 0.0
    %1447 = vmatprep.subr.mxu0 0.0
    %1448 = vmatpush1.msra.mxu0 0.0
    %1449 = vmatprep.subr.mxu0 0.0
    %1450 = vmatpush1.msra.mxu0 0.0
    %1451 = vmatprep.subr.mxu0 0.0
    %1452 = vmatpush1.msra.mxu0 0.0
    %1453 = vmatprep.subr.mxu0 0.0
    %1454 = vmatpush1.msra.mxu0 0.0
    %1455 = vmatprep.subr.mxu0 0.0
    %1456 = vmatpush1.msra.mxu0 0.0
    %1457 = vmatprep.subr.mxu0 0.0
    %1458 = vmatpush1.msra.mxu0 0.0
    %1459 = vmatprep.subr.mxu0 0.0
    %1460 = vmatpush1.msra.mxu0 0.0
    %1461 = vmatprep.subr.mxu0 0.0
    %1462 = vmatpush1.msra.mxu0 0.0
    %1463 = vmatprep.mubr.f32.mxu0 0.0
    %1464 = vmatmul.mubr.f32.gmra.mrb[0].mxu0 %v1327
    %v1465 = vpop.f32.mrb[0].mxu0
    %v1466 = vadd.f32 0.0, %v1465
    %v1467 = vpop.f32.mrb[0].mxu0
    %v1468 = vadd.f32 0.0, %v1467
    %1469 = vdwg.mxu0
    %v1470 = vadd.f32 %v155, %v1395
    %v1471 = vadd.f32 %v156, %v1397
    %v1472 = vxor.u32 %v1470, 2147483648
    %v1473 = vmul.f32 %v1472, 1.442695
    %v1474 = vpow.pop %v1473
    %v1475 = vadd.f32 %v1474, 1.0
    %v1476 = vrcp.pop %v1475
    %v1477 = vmul.f32 1.0, %v1476
    %v1478 = vtanh.pop %v1471
    %v1479 = vxor.u32 %v1471, 2147483648
    %v1480 = vmul.f32 %v1479, 1.442695
    %v1481 = vpow.pop %v1480
    %v1482 = vadd.f32 %v1481, 1.0
    %v1483 = vrcp.pop %v1482
    %v1484 = vmul.f32 1.0, %v1483
    %v1485 = vmul.f32 %v1477, %v1223
    %v1486 = vmul.f32 %v1477, %v1478
    %1488 = vrot.lane.b32.xlu0 %v1486, 64
    %v1489 = vpop.permute.xlu0 %1488
    %v1491 = vadd.f32 %v1485, %v1489
    %v1492 = vtanh.pop %v1491
    %v1493 = vmul.f32 %v1484, %v1492
    %1495 = vrot.lane.b32.xlu0 %v1493, 64
    %v1496 = vpop.permute.xlu0 %1495
    %v1497 = vsel %vm413, %v1496, 0
    %1499 = vmatprep.subr.mxu0 %v395
    %1500 = vmatpush1.msra.mxu0 %v394
    %1501 = vmatprep.subr.mxu0 %v397
    %1502 = vmatpush1.msra.mxu0 %v396
    %1503 = vmatprep.subr.mxu0 %v399
    %1504 = vmatpush1.msra.mxu0 %v398
    %1505 = vmatprep.subr.mxu0 %v401
    %1506 = vmatpush1.msra.mxu0 %v400
    %1507 = vmatprep.subr.mxu0 %v403
    %1508 = vmatpush1.msra.mxu0 %v402
    %1509 = vmatprep.subr.mxu0 %v405
    %1510 = vmatpush1.msra.mxu0 %v404
    %1511 = vmatprep.subr.mxu0 %v407
    %1512 = vmatpush1.msra.mxu0 %v406
    %1513 = vmatprep.subr.mxu0 %v409
    %1514 = vmatpush1.msra.mxu0 %v408
    %1515 = vmatprep.subr.mxu0 0.0
    %1516 = vmatpush1.msra.mxu0 0.0
    %1517 = vmatprep.subr.mxu0 0.0
    %1518 = vmatpush1.msra.mxu0 0.0
    %1519 = vmatprep.subr.mxu0 0.0
    %1520 = vmatpush1.msra.mxu0 0.0
    %1521 = vmatprep.subr.mxu0 0.0
    %1522 = vmatpush1.msra.mxu0 0.0
    %1523 = vmatprep.subr.mxu0 0.0
    %1524 = vmatpush1.msra.mxu0 0.0
    %1525 = vmatprep.subr.mxu0 0.0
    %1526 = vmatpush1.msra.mxu0 0.0
    %1527 = vmatprep.subr.mxu0 0.0
    %1528 = vmatpush1.msra.mxu0 0.0
    %1529 = vmatprep.subr.mxu0 0.0
    %1530 = vmatpush1.msra.mxu0 0.0
    %1531 = vmatprep.subr.mxu0 0.0
    %1532 = vmatpush1.msra.mxu0 0.0
    %1533 = vmatprep.subr.mxu0 0.0
    %1534 = vmatpush1.msra.mxu0 0.0
    %1535 = vmatprep.subr.mxu0 0.0
    %1536 = vmatpush1.msra.mxu0 0.0
    %1537 = vmatprep.subr.mxu0 0.0
    %1538 = vmatpush1.msra.mxu0 0.0
    %1539 = vmatprep.subr.mxu0 0.0
    %1540 = vmatpush1.msra.mxu0 0.0
    %1541 = vmatprep.subr.mxu0 0.0
    %1542 = vmatpush1.msra.mxu0 0.0
    %1543 = vmatprep.subr.mxu0 0.0
    %1544 = vmatpush1.msra.mxu0 0.0
    %1545 = vmatprep.subr.mxu0 0.0
    %1546 = vmatpush1.msra.mxu0 0.0
    %1547 = vmatprep.subr.mxu0 0.0
    %1548 = vmatpush1.msra.mxu0 0.0
    %1549 = vmatprep.subr.mxu0 0.0
    %1550 = vmatpush1.msra.mxu0 0.0
    %1551 = vmatprep.subr.mxu0 0.0
    %1552 = vmatpush1.msra.mxu0 0.0
    %1553 = vmatprep.subr.mxu0 0.0
    %1554 = vmatpush1.msra.mxu0 0.0
    %1555 = vmatprep.subr.mxu0 0.0
    %1556 = vmatpush1.msra.mxu0 0.0
    %1557 = vmatprep.subr.mxu0 0.0
    %1558 = vmatpush1.msra.mxu0 0.0
    %1559 = vmatprep.subr.mxu0 0.0
    %1560 = vmatpush1.msra.mxu0 0.0
    %1561 = vmatprep.subr.mxu0 0.0
    %1562 = vmatpush1.msra.mxu0 0.0
    %1563 = vmatprep.mubr.f32.mxu0 0.0
    %1564 = vmatmul.mubr.f32.gmra.mrb[0].mxu0 %v1497
    %v1565 = vpop.f32.mrb[0].mxu0
    %v1566 = vadd.f32 %v1466, %v1565
    %v1567 = vpop.f32.mrb[0].mxu0
    %v1568 = vadd.f32 %v1468, %v1567
    %1569 = vdwg.mxu0
    %v1570 = vadd.f32 %v1566, %v491
    %v1571 = vadd.f32 %v1568, %v495
    %v1572 = vxor.u32 %v1570, 2147483648
    %v1573 = vmul.f32 %v1572, 1.442695
    %v1574 = vpow.pop %v1573
    %v1575 = vadd.f32 %v1574, 1.0
    %v1576 = vrcp.pop %v1575
    %v1577 = vmul.f32 1.0, %v1576
    %v1578 = vtanh.pop %v1571
    %v1579 = vxor.u32 %v1571, 2147483648
    %v1580 = vmul.f32 %v1579, 1.442695
    %v1581 = vpow.pop %v1580
    %v1582 = vadd.f32 %v1581, 1.0
    %v1583 = vrcp.pop %v1582
    %v1584 = vmul.f32 1.0, %v1583
    %v1585 = vmul.f32 %v1577, %v1323
    %v1586 = vmul.f32 %v1577, %v1578
    %1588 = vrot.lane.b32.xlu0 %v1586, 64
    %v1589 = vpop.permute.xlu0 %1588
    %v1591 = vadd.f32 %v1585, %v1589
    %v1592 = vtanh.pop %v1591
    %v1593 = vmul.f32 %v1584, %v1592
    %v1595 = vsel %vm413, %v1496, %v1593
    %1596 = vmatprep.subr.mxu0 %v165
    %1597 = vmatpush1.msra.mxu0 %v164
    %1598 = vmatprep.subr.mxu0 %v169
    %1599 = vmatpush1.msra.mxu0 %v168
    %1600 = vmatprep.subr.mxu0 %v173
    %1601 = vmatpush1.msra.mxu0 %v172
    %1602 = vmatprep.subr.mxu0 %v177
    %1603 = vmatpush1.msra.mxu0 %v176
    %1604 = vmatprep.subr.mxu0 %v181
    %1605 = vmatpush1.msra.mxu0 %v180
    %1606 = vmatprep.subr.mxu0 %v185
    %1607 = vmatpush1.msra.mxu0 %v184
    %1608 = vmatprep.subr.mxu0 %v189
    %1609 = vmatpush1.msra.mxu0 %v188
    %1610 = vmatprep.subr.mxu0 %v193
    %1611 = vmatpush1.msra.mxu0 %v192
    %1612 = vmatprep.subr.mxu0 %v197
    %1613 = vmatpush1.msra.mxu0 %v196
    %1614 = vmatprep.subr.mxu0 %v201
    %1615 = vmatpush1.msra.mxu0 %v200
    %1616 = vmatprep.subr.mxu0 %v205
    %1617 = vmatpush1.msra.mxu0 %v204
    %1618 = vmatprep.subr.mxu0 %v209
    %1619 = vmatpush1.msra.mxu0 %v208
    %1620 = vmatprep.subr.mxu0 %v213
    %1621 = vmatpush1.msra.mxu0 %v212
    %1622 = vmatprep.subr.mxu0 %v217
    %1623 = vmatpush1.msra.mxu0 %v216
    %1624 = vmatprep.subr.mxu0 %v221
    %1625 = vmatpush1.msra.mxu0 %v220
    %1626 = vmatprep.subr.mxu0 %v225
    %1627 = vmatpush1.msra.mxu0 %v224
    %1628 = vmatprep.subr.mxu0 0.0
    %1629 = vmatpush1.msra.mxu0 0.0
    %1630 = vmatprep.subr.mxu0 0.0
    %1631 = vmatpush1.msra.mxu0 0.0
    %1632 = vmatprep.subr.mxu0 0.0
    %1633 = vmatpush1.msra.mxu0 0.0
    %1634 = vmatprep.subr.mxu0 0.0
    %1635 = vmatpush1.msra.mxu0 0.0
    %1636 = vmatprep.subr.mxu0 0.0
    %1637 = vmatpush1.msra.mxu0 0.0
    %1638 = vmatprep.subr.mxu0 0.0
    %1639 = vmatpush1.msra.mxu0 0.0
    %1640 = vmatprep.subr.mxu0 0.0
    %1641 = vmatpush1.msra.mxu0 0.0
    %1642 = vmatprep.subr.mxu0 0.0
    %1643 = vmatpush1.msra.mxu0 0.0
    %1644 = vmatprep.subr.mxu0 0.0
    %1645 = vmatpush1.msra.mxu0 0.0
    %1646 = vmatprep.subr.mxu0 0.0
    %1647 = vmatpush1.msra.mxu0 0.0
    %1648 = vmatprep.subr.mxu0 0.0
    %1649 = vmatpush1.msra.mxu0 0.0
    %1650 = vmatprep.subr.mxu0 0.0
    %1651 = vmatpush1.msra.mxu0 0.0
    %1652 = vmatprep.subr.mxu0 0.0
    %1653 = vmatpush1.msra.mxu0 0.0
    %1654 = vmatprep.subr.mxu0 0.0
    %1655 = vmatpush1.msra.mxu0 0.0
    %1656 = vmatprep.subr.mxu0 0.0
    %1657 = vmatpush1.msra.mxu0 0.0
    %1658 = vmatprep.subr.mxu0 0.0
    %1659 = vmatpush1.msra.mxu0 0.0
    %1660 = vmatprep.mubr.f32.mxu0 0.0
    %1661 = vmatmul.mubr.f32.gmra.mrb[0].mxu0 %v1595
    %v1662 = vpop.f32.mrb[0].mxu0
    %v1663 = vadd.f32 0.0, %v1662
    %v1664 = vpop.f32.mrb[0].mxu0
    %v1665 = vadd.f32 0.0, %v1664
    %1666 = vdwg.mxu0
    %1667 = vmatprep.subr.mxu0 %v167
    %1668 = vmatpush1.msra.mxu0 %v166
    %1669 = vmatprep.subr.mxu0 %v171
    %1670 = vmatpush1.msra.mxu0 %v170
    %1671 = vmatprep.subr.mxu0 %v175
    %1672 = vmatpush1.msra.mxu0 %v174
    %1673 = vmatprep.subr.mxu0 %v179
    %1674 = vmatpush1.msra.mxu0 %v178
    %1675 = vmatprep.subr.mxu0 %v183
    %1676 = vmatpush1.msra.mxu0 %v182
    %1677 = vmatprep.subr.mxu0 %v187
    %1678 = vmatpush1.msra.mxu0 %v186
    %1679 = vmatprep.subr.mxu0 %v191
    %1680 = vmatpush1.msra.mxu0 %v190
    %1681 = vmatprep.subr.mxu0 %v195
    %1682 = vmatpush1.msra.mxu0 %v194
    %1683 = vmatprep.subr.mxu0 %v199
    %1684 = vmatpush1.msra.mxu0 %v198
    %1685 = vmatprep.subr.mxu0 %v203
    %1686 = vmatpush1.msra.mxu0 %v202
    %1687 = vmatprep.subr.mxu0 %v207
    %1688 = vmatpush1.msra.mxu0 %v206
    %1689 = vmatprep.subr.mxu0 %v211
    %1690 = vmatpush1.msra.mxu0 %v210
    %1691 = vmatprep.subr.mxu0 %v215
    %1692 = vmatpush1.msra.mxu0 %v214
    %1693 = vmatprep.subr.mxu0 %v219
    %1694 = vmatpush1.msra.mxu0 %v218
    %1695 = vmatprep.subr.mxu0 %v223
    %1696 = vmatpush1.msra.mxu0 %v222
    %1697 = vmatprep.subr.mxu0 %v227
    %1698 = vmatpush1.msra.mxu0 %v226
    %1699 = vmatprep.subr.mxu0 0.0
    %1700 = vmatpush1.msra.mxu0 0.0
    %1701 = vmatprep.subr.mxu0 0.0
    %1702 = vmatpush1.msra.mxu0 0.0
    %1703 = vmatprep.subr.mxu0 0.0
    %1704 = vmatpush1.msra.mxu0 0.0
    %1705 = vmatprep.subr.mxu0 0.0
    %1706 = vmatpush1.msra.mxu0 0.0
    %1707 = vmatprep.subr.mxu0 0.0
    %1708 = vmatpush1.msra.mxu0 0.0
    %1709 = vmatprep.subr.mxu0 0.0
    %1710 = vmatpush1.msra.mxu0 0.0
    %1711 = vmatprep.subr.mxu0 0.0
    %1712 = vmatpush1.msra.mxu0 0.0
    %1713 = vmatprep.subr.mxu0 0.0
    %1714 = vmatpush1.msra.mxu0 0.0
    %1715 = vmatprep.subr.mxu0 0.0
    %1716 = vmatpush1.msra.mxu0 0.0
    %1717 = vmatprep.subr.mxu0 0.0
    %1718 = vmatpush1.msra.mxu0 0.0
    %1719 = vmatprep.subr.mxu0 0.0
    %1720 = vmatpush1.msra.mxu0 0.0
    %1721 = vmatprep.subr.mxu0 0.0
    %1722 = vmatpush1.msra.mxu0 0.0
    %1723 = vmatprep.subr.mxu0 0.0
    %1724 = vmatpush1.msra.mxu0 0.0
    %1725 = vmatprep.subr.mxu0 0.0
    %1726 = vmatpush1.msra.mxu0 0.0
    %1727 = vmatprep.subr.mxu0 0.0
    %1728 = vmatpush1.msra.mxu0 0.0
    %1729 = vmatprep.subr.mxu0 0.0
    %1730 = vmatpush1.msra.mxu0 0.0
    %1731 = vmatprep.mubr.f32.mxu0 0.0
    %1732 = vmatmul.mubr.f32.gmra.mrb[0].mxu0 %v1595
    %v1733 = vpop.f32.mrb[0].mxu0
    %v1734 = vadd.f32 0.0, %v1733
    %v1735 = vpop.f32.mrb[0].mxu0
    %v1736 = vadd.f32 0.0, %v1735
    %1737 = vdwg.mxu0
    %v1738 = vadd.f32 %v157, %v1663
    %v1739 = vadd.f32 %v158, %v1665
    %v1740 = vxor.u32 %v1738, 2147483648
    %v1741 = vmul.f32 %v1740, 1.442695
    %v1742 = vpow.pop %v1741
    %v1743 = vadd.f32 %v1742, 1.0
    %v1744 = vrcp.pop %v1743
    %v1745 = vmul.f32 1.0, %v1744
    %v1746 = vtanh.pop %v1739
    %v1747 = vxor.u32 %v1739, 2147483648
    %v1748 = vmul.f32 %v1747, 1.442695
    %v1749 = vpow.pop %v1748
    %v1750 = vadd.f32 %v1749, 1.0
    %v1751 = vrcp.pop %v1750
    %v1752 = vmul.f32 1.0, %v1751
    %v1753 = vmul.f32 %v1745, %v1491
    %v1754 = vmul.f32 %v1745, %v1746
    %1756 = vrot.lane.b32.xlu0 %v1754, 64
    %v1757 = vpop.permute.xlu0 %1756
    %v1759 = vadd.f32 %v1753, %v1757
    %v1760 = vtanh.pop %v1759
    %v1761 = vmul.f32 %v1752, %v1760
    %1763 = vrot.lane.b32.xlu0 %v1761, 64
    %v1764 = vpop.permute.xlu0 %1763
    %v1765 = vsel %vm413, %v1764, 0
    %1767 = vmatprep.subr.mxu0 %v395
    %1768 = vmatpush1.msra.mxu0 %v394
    %1769 = vmatprep.subr.mxu0 %v397
    %1770 = vmatpush1.msra.mxu0 %v396
    %1771 = vmatprep.subr.mxu0 %v399
    %1772 = vmatpush1.msra.mxu0 %v398
    %1773 = vmatprep.subr.mxu0 %v401
    %1774 = vmatpush1.msra.mxu0 %v400
    %1775 = vmatprep.subr.mxu0 %v403
    %1776 = vmatpush1.msra.mxu0 %v402
    %1777 = vmatprep.subr.mxu0 %v405
    %1778 = vmatpush1.msra.mxu0 %v404
    %1779 = vmatprep.subr.mxu0 %v407
    %1780 = vmatpush1.msra.mxu0 %v406
    %1781 = vmatprep.subr.mxu0 %v409
    %1782 = vmatpush1.msra.mxu0 %v408
    %1783 = vmatprep.subr.mxu0 0.0
    %1784 = vmatpush1.msra.mxu0 0.0
    %1785 = vmatprep.subr.mxu0 0.0
    %1786 = vmatpush1.msra.mxu0 0.0
    %1787 = vmatprep.subr.mxu0 0.0
    %1788 = vmatpush1.msra.mxu0 0.0
    %1789 = vmatprep.subr.mxu0 0.0
    %1790 = vmatpush1.msra.mxu0 0.0
    %1791 = vmatprep.subr.mxu0 0.0
    %1792 = vmatpush1.msra.mxu0 0.0
    %1793 = vmatprep.subr.mxu0 0.0
    %1794 = vmatpush1.msra.mxu0 0.0
    %1795 = vmatprep.subr.mxu0 0.0
    %1796 = vmatpush1.msra.mxu0 0.0
    %1797 = vmatprep.subr.mxu0 0.0
    %1798 = vmatpush1.msra.mxu0 0.0
    %1799 = vmatprep.subr.mxu0 0.0
    %1800 = vmatpush1.msra.mxu0 0.0
    %1801 = vmatprep.subr.mxu0 0.0
    %1802 = vmatpush1.msra.mxu0 0.0
    %1803 = vmatprep.subr.mxu0 0.0
    %1804 = vmatpush1.msra.mxu0 0.0
    %1805 = vmatprep.subr.mxu0 0.0
    %1806 = vmatpush1.msra.mxu0 0.0
    %1807 = vmatprep.subr.mxu0 0.0
    %1808 = vmatpush1.msra.mxu0 0.0
    %1809 = vmatprep.subr.mxu0 0.0
    %1810 = vmatpush1.msra.mxu0 0.0
    %1811 = vmatprep.subr.mxu0 0.0
    %1812 = vmatpush1.msra.mxu0 0.0
    %1813 = vmatprep.subr.mxu0 0.0
    %1814 = vmatpush1.msra.mxu0 0.0
    %1815 = vmatprep.subr.mxu0 0.0
    %1816 = vmatpush1.msra.mxu0 0.0
    %1817 = vmatprep.subr.mxu0 0.0
    %1818 = vmatpush1.msra.mxu0 0.0
    %1819 = vmatprep.subr.mxu0 0.0
    %1820 = vmatpush1.msra.mxu0 0.0
    %1821 = vmatprep.subr.mxu0 0.0
    %1822 = vmatpush1.msra.mxu0 0.0
    %1823 = vmatprep.subr.mxu0 0.0
    %1824 = vmatpush1.msra.mxu0 0.0
    %1825 = vmatprep.subr.mxu0 0.0
    %1826 = vmatpush1.msra.mxu0 0.0
    %1827 = vmatprep.subr.mxu0 0.0
    %1828 = vmatpush1.msra.mxu0 0.0
    %1829 = vmatprep.subr.mxu0 0.0
    %1830 = vmatpush1.msra.mxu0 0.0
    %1831 = vmatprep.mubr.f32.mxu0 0.0
    %1832 = vmatmul.mubr.f32.gmra.mrb[0].mxu0 %v1765
    %v1833 = vpop.f32.mrb[0].mxu0
    %v1834 = vadd.f32 %v1734, %v1833
    %v1835 = vpop.f32.mrb[0].mxu0
    %v1836 = vadd.f32 %v1736, %v1835
    %1837 = vdwg.mxu0
    %v1838 = vadd.f32 %v1834, %v491
    %v1839 = vadd.f32 %v1836, %v495
    %v1840 = vxor.u32 %v1838, 2147483648
    %v1841 = vmul.f32 %v1840, 1.442695
    %v1842 = vpow.pop %v1841
    %v1843 = vadd.f32 %v1842, 1.0
    %v1844 = vrcp.pop %v1843
    %v1845 = vmul.f32 1.0, %v1844
    %v1846 = vtanh.pop %v1839
    %v1847 = vxor.u32 %v1839, 2147483648
    %v1848 = vmul.f32 %v1847, 1.442695
    %v1849 = vpow.pop %v1848
    %v1850 = vadd.f32 %v1849, 1.0
    %v1851 = vrcp.pop %v1850
    %v1852 = vmul.f32 1.0, %v1851
    %v1853 = vmul.f32 %v1845, %v1591
    %v1854 = vmul.f32 %v1845, %v1846
    %1856 = vrot.lane.b32.xlu0 %v1854, 64
    %v1857 = vpop.permute.xlu0 %1856
    %v1859 = vadd.f32 %v1853, %v1857
    %v1860 = vtanh.pop %v1859
    %v1861 = vmul.f32 %v1852, %v1860
    %v1863 = vsel %vm413, %v1764, %v1861
    %1864 = vmatprep.subr.mxu0 %v165
    %1865 = vmatpush1.msra.mxu0 %v164
    %1866 = vmatprep.subr.mxu0 %v169
    %1867 = vmatpush1.msra.mxu0 %v168
    %1868 = vmatprep.subr.mxu0 %v173
    %1869 = vmatpush1.msra.mxu0 %v172
    %1870 = vmatprep.subr.mxu0 %v177
    %1871 = vmatpush1.msra.mxu0 %v176
    %1872 = vmatprep.subr.mxu0 %v181
    %1873 = vmatpush1.msra.mxu0 %v180
    %1874 = vmatprep.subr.mxu0 %v185
    %1875 = vmatpush1.msra.mxu0 %v184
    %1876 = vmatprep.subr.mxu0 %v189
    %1877 = vmatpush1.msra.mxu0 %v188
    %1878 = vmatprep.subr.mxu0 %v193
    %1879 = vmatpush1.msra.mxu0 %v192
    %1880 = vmatprep.subr.mxu0 %v197
    %1881 = vmatpush1.msra.mxu0 %v196
    %1882 = vmatprep.subr.mxu0 %v201
    %1883 = vmatpush1.msra.mxu0 %v200
    %1884 = vmatprep.subr.mxu0 %v205
    %1885 = vmatpush1.msra.mxu0 %v204
    %1886 = vmatprep.subr.mxu0 %v209
    %1887 = vmatpush1.msra.mxu0 %v208
    %1888 = vmatprep.subr.mxu0 %v213
    %1889 = vmatpush1.msra.mxu0 %v212
    %1890 = vmatprep.subr.mxu0 %v217
    %1891 = vmatpush1.msra.mxu0 %v216
    %1892 = vmatprep.subr.mxu0 %v221
    %1893 = vmatpush1.msra.mxu0 %v220
    %1894 = vmatprep.subr.mxu0 %v225
    %1895 = vmatpush1.msra.mxu0 %v224
    %1896 = vmatprep.subr.mxu0 0.0
    %1897 = vmatpush1.msra.mxu0 0.0
    %1898 = vmatprep.subr.mxu0 0.0
    %1899 = vmatpush1.msra.mxu0 0.0
    %1900 = vmatprep.subr.mxu0 0.0
    %1901 = vmatpush1.msra.mxu0 0.0
    %1902 = vmatprep.subr.mxu0 0.0
    %1903 = vmatpush1.msra.mxu0 0.0
    %1904 = vmatprep.subr.mxu0 0.0
    %1905 = vmatpush1.msra.mxu0 0.0
    %1906 = vmatprep.subr.mxu0 0.0
    %1907 = vmatpush1.msra.mxu0 0.0
    %1908 = vmatprep.subr.mxu0 0.0
    %1909 = vmatpush1.msra.mxu0 0.0
    %1910 = vmatprep.subr.mxu0 0.0
    %1911 = vmatpush1.msra.mxu0 0.0
    %1912 = vmatprep.subr.mxu0 0.0
    %1913 = vmatpush1.msra.mxu0 0.0
    %1914 = vmatprep.subr.mxu0 0.0
    %1915 = vmatpush1.msra.mxu0 0.0
    %1916 = vmatprep.subr.mxu0 0.0
    %1917 = vmatpush1.msra.mxu0 0.0
    %1918 = vmatprep.subr.mxu0 0.0
    %1919 = vmatpush1.msra.mxu0 0.0
    %1920 = vmatprep.subr.mxu0 0.0
    %1921 = vmatpush1.msra.mxu0 0.0
    %1922 = vmatprep.subr.mxu0 0.0
    %1923 = vmatpush1.msra.mxu0 0.0
    %1924 = vmatprep.subr.mxu0 0.0
    %1925 = vmatpush1.msra.mxu0 0.0
    %1926 = vmatprep.subr.mxu0 0.0
    %1927 = vmatpush1.msra.mxu0 0.0
    %1928 = vmatprep.mubr.f32.mxu0 0.0
    %1929 = vmatmul.mubr.f32.gmra.mrb[0].mxu0 %v1863
    %v1930 = vpop.f32.mrb[0].mxu0
    %v1931 = vadd.f32 0.0, %v1930
    %v1932 = vpop.f32.mrb[0].mxu0
    %v1933 = vadd.f32 0.0, %v1932
    %1934 = vdwg.mxu0
    %1935 = vmatprep.subr.mxu0 %v167
    %1936 = vmatpush1.msra.mxu0 %v166
    %1937 = vmatprep.subr.mxu0 %v171
    %1938 = vmatpush1.msra.mxu0 %v170
    %1939 = vmatprep.subr.mxu0 %v175
    %1940 = vmatpush1.msra.mxu0 %v174
    %1941 = vmatprep.subr.mxu0 %v179
    %1942 = vmatpush1.msra.mxu0 %v178
    %1943 = vmatprep.subr.mxu0 %v183
    %1944 = vmatpush1.msra.mxu0 %v182
    %1945 = vmatprep.subr.mxu0 %v187
    %1946 = vmatpush1.msra.mxu0 %v186
    %1947 = vmatprep.subr.mxu0 %v191
    %1948 = vmatpush1.msra.mxu0 %v190
    %1949 = vmatprep.subr.mxu0 %v195
    %1950 = vmatpush1.msra.mxu0 %v194
    %1951 = vmatprep.subr.mxu0 %v199
    %1952 = vmatpush1.msra.mxu0 %v198
    %1953 = vmatprep.subr.mxu0 %v203
    %1954 = vmatpush1.msra.mxu0 %v202
    %1955 = vmatprep.subr.mxu0 %v207
    %1956 = vmatpush1.msra.mxu0 %v206
    %1957 = vmatprep.subr.mxu0 %v211
    %1958 = vmatpush1.msra.mxu0 %v210
    %1959 = vmatprep.subr.mxu0 %v215
    %1960 = vmatpush1.msra.mxu0 %v214
    %1961 = vmatprep.subr.mxu0 %v219
    %1962 = vmatpush1.msra.mxu0 %v218
    %1963 = vmatprep.subr.mxu0 %v223
    %1964 = vmatpush1.msra.mxu0 %v222
    %1965 = vmatprep.subr.mxu0 %v227
    %1966 = vmatpush1.msra.mxu0 %v226
    %1967 = vmatprep.subr.mxu0 0.0
    %1968 = vmatpush1.msra.mxu0 0.0
    %1969 = vmatprep.subr.mxu0 0.0
    %1970 = vmatpush1.msra.mxu0 0.0
    %1971 = vmatprep.subr.mxu0 0.0
    %1972 = vmatpush1.msra.mxu0 0.0
    %1973 = vmatprep.subr.mxu0 0.0
    %1974 = vmatpush1.msra.mxu0 0.0
    %1975 = vmatprep.subr.mxu0 0.0
    %1976 = vmatpush1.msra.mxu0 0.0
    %1977 = vmatprep.subr.mxu0 0.0
    %1978 = vmatpush1.msra.mxu0 0.0
    %1979 = vmatprep.subr.mxu0 0.0
    %1980 = vmatpush1.msra.mxu0 0.0
    %1981 = vmatprep.subr.mxu0 0.0
    %1982 = vmatpush1.msra.mxu0 0.0
    %1983 = vmatprep.subr.mxu0 0.0
    %1984 = vmatpush1.msra.mxu0 0.0
    %1985 = vmatprep.subr.mxu0 0.0
    %1986 = vmatpush1.msra.mxu0 0.0
    %1987 = vmatprep.subr.mxu0 0.0
    %1988 = vmatpush1.msra.mxu0 0.0
    %1989 = vmatprep.subr.mxu0 0.0
    %1990 = vmatpush1.msra.mxu0 0.0
    %1991 = vmatprep.subr.mxu0 0.0
    %1992 = vmatpush1.msra.mxu0 0.0
    %1993 = vmatprep.subr.mxu0 0.0
    %1994 = vmatpush1.msra.mxu0 0.0
    %1995 = vmatprep.subr.mxu0 0.0
    %1996 = vmatpush1.msra.mxu0 0.0
    %1997 = vmatprep.subr.mxu0 0.0
    %1998 = vmatpush1.msra.mxu0 0.0
    %1999 = vmatprep.mubr.f32.mxu0 0.0
    %2000 = vmatmul.mubr.f32.gmra.mrb[0].mxu0 %v1863
    %v2001 = vpop.f32.mrb[0].mxu0
    %v2002 = vadd.f32 0.0, %v2001
    %v2003 = vpop.f32.mrb[0].mxu0
    %v2004 = vadd.f32 0.0, %v2003
    %2005 = vdwg.mxu0
    %v2006 = vadd.f32 %v159, %v1931
    %v2007 = vadd.f32 %v160, %v1933
    %v2008 = vxor.u32 %v2006, 2147483648
    %v2009 = vmul.f32 %v2008, 1.442695
    %v2010 = vpow.pop %v2009
    %v2011 = vadd.f32 %v2010, 1.0
    %v2012 = vrcp.pop %v2011
    %v2013 = vmul.f32 1.0, %v2012
    %v2014 = vtanh.pop %v2007
    %v2015 = vxor.u32 %v2007, 2147483648
    %v2016 = vmul.f32 %v2015, 1.442695
    %v2017 = vpow.pop %v2016
    %v2018 = vadd.f32 %v2017, 1.0
    %v2019 = vrcp.pop %v2018
    %v2020 = vmul.f32 1.0, %v2019
    %v2021 = vmul.f32 %v2013, %v1759
    %v2022 = vmul.f32 %v2013, %v2014
    %2024 = vrot.lane.b32.xlu0 %v2022, 64
    %v2025 = vpop.permute.xlu0 %2024
    %v2027 = vadd.f32 %v2021, %v2025
    %v2028 = vtanh.pop %v2027
    %v2029 = vmul.f32 %v2020, %v2028
    %2031 = vrot.lane.b32.xlu0 %v2029, 64
    %v2032 = vpop.permute.xlu0 %2031
    %v2033 = vsel %vm413, %v2032, 0
    %2035 = vmatprep.subr.mxu0 %v395
    %2036 = vmatpush1.msra.mxu0 %v394
    %2037 = vmatprep.subr.mxu0 %v397
    %2038 = vmatpush1.msra.mxu0 %v396
    %2039 = vmatprep.subr.mxu0 %v399
    %2040 = vmatpush1.msra.mxu0 %v398
    %2041 = vmatprep.subr.mxu0 %v401
    %2042 = vmatpush1.msra.mxu0 %v400
    %2043 = vmatprep.subr.mxu0 %v403
    %2044 = vmatpush1.msra.mxu0 %v402
    %2045 = vmatprep.subr.mxu0 %v405
    %2046 = vmatpush1.msra.mxu0 %v404
    %2047 = vmatprep.subr.mxu0 %v407
    %2048 = vmatpush1.msra.mxu0 %v406
    %2049 = vmatprep.subr.mxu0 %v409
    %2050 = vmatpush1.msra.mxu0 %v408
    %2051 = vmatprep.subr.mxu0 0.0
    %2052 = vmatpush1.msra.mxu0 0.0
    %2053 = vmatprep.subr.mxu0 0.0
    %2054 = vmatpush1.msra.mxu0 0.0
    %2055 = vmatprep.subr.mxu0 0.0
    %2056 = vmatpush1.msra.mxu0 0.0
    %2057 = vmatprep.subr.mxu0 0.0
    %2058 = vmatpush1.msra.mxu0 0.0
    %2059 = vmatprep.subr.mxu0 0.0
    %2060 = vmatpush1.msra.mxu0 0.0
    %2061 = vmatprep.subr.mxu0 0.0
    %2062 = vmatpush1.msra.mxu0 0.0
    %2063 = vmatprep.subr.mxu0 0.0
    %2064 = vmatpush1.msra.mxu0 0.0
    %2065 = vmatprep.subr.mxu0 0.0
    %2066 = vmatpush1.msra.mxu0 0.0
    %2067 = vmatprep.subr.mxu0 0.0
    %2068 = vmatpush1.msra.mxu0 0.0
    %2069 = vmatprep.subr.mxu0 0.0
    %2070 = vmatpush1.msra.mxu0 0.0
    %2071 = vmatprep.subr.mxu0 0.0
    %2072 = vmatpush1.msra.mxu0 0.0
    %2073 = vmatprep.subr.mxu0 0.0
    %2074 = vmatpush1.msra.mxu0 0.0
    %2075 = vmatprep.subr.mxu0 0.0
    %2076 = vmatpush1.msra.mxu0 0.0
    %2077 = vmatprep.subr.mxu0 0.0
    %2078 = vmatpush1.msra.mxu0 0.0
    %2079 = vmatprep.subr.mxu0 0.0
    %2080 = vmatpush1.msra.mxu0 0.0
    %2081 = vmatprep.subr.mxu0 0.0
    %2082 = vmatpush1.msra.mxu0 0.0
    %2083 = vmatprep.subr.mxu0 0.0
    %2084 = vmatpush1.msra.mxu0 0.0
    %2085 = vmatprep.subr.mxu0 0.0
    %2086 = vmatpush1.msra.mxu0 0.0
    %2087 = vmatprep.subr.mxu0 0.0
    %2088 = vmatpush1.msra.mxu0 0.0
    %2089 = vmatprep.subr.mxu0 0.0
    %2090 = vmatpush1.msra.mxu0 0.0
    %2091 = vmatprep.subr.mxu0 0.0
    %2092 = vmatpush1.msra.mxu0 0.0
    %2093 = vmatprep.subr.mxu0 0.0
    %2094 = vmatpush1.msra.mxu0 0.0
    %2095 = vmatprep.subr.mxu0 0.0
    %2096 = vmatpush1.msra.mxu0 0.0
    %2097 = vmatprep.subr.mxu0 0.0
    %2098 = vmatpush1.msra.mxu0 0.0
    %2099 = vmatprep.mubr.f32.mxu0 0.0
    %2100 = vmatmul.mubr.f32.gmra.mrb[0].mxu0 %v2033
    %v2101 = vpop.f32.mrb[0].mxu0
    %v2102 = vadd.f32 %v2002, %v2101
    %v2103 = vpop.f32.mrb[0].mxu0
    %v2104 = vadd.f32 %v2004, %v2103
    %2105 = vdwg.mxu0
    %v2106 = vadd.f32 %v2102, %v491
    %v2107 = vadd.f32 %v2104, %v495
    %v2108 = vxor.u32 %v2106, 2147483648
    %v2109 = vmul.f32 %v2108, 1.442695
    %v2110 = vpow.pop %v2109
    %v2111 = vadd.f32 %v2110, 1.0
    %v2112 = vrcp.pop %v2111
    %v2113 = vmul.f32 1.0, %v2112
    %v2114 = vtanh.pop %v2107
    %v2115 = vxor.u32 %v2107, 2147483648
    %v2116 = vmul.f32 %v2115, 1.442695
    %v2117 = vpow.pop %v2116
    %v2118 = vadd.f32 %v2117, 1.0
    %v2119 = vrcp.pop %v2118
    %v2120 = vmul.f32 1.0, %v2119
    %v2121 = vmul.f32 %v2113, %v1859
    %v2122 = vmul.f32 %v2113, %v2114
    %2124 = vrot.lane.b32.xlu0 %v2122, 64
    %v2125 = vpop.permute.xlu0 %2124
    %v2127 = vadd.f32 %v2121, %v2125
    %v2128 = vtanh.pop %v2127
    %v2129 = vmul.f32 %v2120, %v2128
    %v2131 = vsel %vm413, %v2032, %v2129
    %2132 = vmatprep.subr.mxu0 %v165
    %2133 = vmatpush1.msra.mxu0 %v164
    %2134 = vmatprep.subr.mxu0 %v169
    %2135 = vmatpush1.msra.mxu0 %v168
    %2136 = vmatprep.subr.mxu0 %v173
    %2137 = vmatpush1.msra.mxu0 %v172
    %2138 = vmatprep.subr.mxu0 %v177
    %2139 = vmatpush1.msra.mxu0 %v176
    %2140 = vmatprep.subr.mxu0 %v181
    %2141 = vmatpush1.msra.mxu0 %v180
    %2142 = vmatprep.subr.mxu0 %v185
    %2143 = vmatpush1.msra.mxu0 %v184
    %2144 = vmatprep.subr.mxu0 %v189
    %2145 = vmatpush1.msra.mxu0 %v188
    %2146 = vmatprep.subr.mxu0 %v193
    %2147 = vmatpush1.msra.mxu0 %v192
    %2148 = vmatprep.subr.mxu0 %v197
    %2149 = vmatpush1.msra.mxu0 %v196
    %2150 = vmatprep.subr.mxu0 %v201
    %2151 = vmatpush1.msra.mxu0 %v200
    %2152 = vmatprep.subr.mxu0 %v205
    %2153 = vmatpush1.msra.mxu0 %v204
    %2154 = vmatprep.subr.mxu0 %v209
    %2155 = vmatpush1.msra.mxu0 %v208
    %2156 = vmatprep.subr.mxu0 %v213
    %2157 = vmatpush1.msra.mxu0 %v212
    %2158 = vmatprep.subr.mxu0 %v217
    %2159 = vmatpush1.msra.mxu0 %v216
    %2160 = vmatprep.subr.mxu0 %v221
    %2161 = vmatpush1.msra.mxu0 %v220
    %2162 = vmatprep.subr.mxu0 %v225
    %2163 = vmatpush1.msra.mxu0 %v224
    %2164 = vmatprep.subr.mxu0 0.0
    %2165 = vmatpush1.msra.mxu0 0.0
    %2166 = vmatprep.subr.mxu0 0.0
    %2167 = vmatpush1.msra.mxu0 0.0
    %2168 = vmatprep.subr.mxu0 0.0
    %2169 = vmatpush1.msra.mxu0 0.0
    %2170 = vmatprep.subr.mxu0 0.0
    %2171 = vmatpush1.msra.mxu0 0.0
    %2172 = vmatprep.subr.mxu0 0.0
    %2173 = vmatpush1.msra.mxu0 0.0
    %2174 = vmatprep.subr.mxu0 0.0
    %2175 = vmatpush1.msra.mxu0 0.0
    %2176 = vmatprep.subr.mxu0 0.0
    %2177 = vmatpush1.msra.mxu0 0.0
    %2178 = vmatprep.subr.mxu0 0.0
    %2179 = vmatpush1.msra.mxu0 0.0
    %2180 = vmatprep.subr.mxu0 0.0
    %2181 = vmatpush1.msra.mxu0 0.0
    %2182 = vmatprep.subr.mxu0 0.0
    %2183 = vmatpush1.msra.mxu0 0.0
    %2184 = vmatprep.subr.mxu0 0.0
    %2185 = vmatpush1.msra.mxu0 0.0
    %2186 = vmatprep.subr.mxu0 0.0
    %2187 = vmatpush1.msra.mxu0 0.0
    %2188 = vmatprep.subr.mxu0 0.0
    %2189 = vmatpush1.msra.mxu0 0.0
    %2190 = vmatprep.subr.mxu0 0.0
    %2191 = vmatpush1.msra.mxu0 0.0
    %2192 = vmatprep.subr.mxu0 0.0
    %2193 = vmatpush1.msra.mxu0 0.0
    %2194 = vmatprep.subr.mxu0 0.0
    %2195 = vmatpush1.msra.mxu0 0.0
    %2196 = vmatprep.mubr.f32.mxu0 0.0
    %2197 = vmatmul.mubr.f32.gmra.mrb[0].mxu0 %v2131
    %v2198 = vpop.f32.mrb[0].mxu0
    %v2199 = vadd.f32 0.0, %v2198
    %v2200 = vpop.f32.mrb[0].mxu0
    %v2201 = vadd.f32 0.0, %v2200
    %2202 = vdwg.mxu0
    %2203 = vmatprep.subr.mxu0 %v167
    %2204 = vmatpush1.msra.mxu0 %v166
    %2205 = vmatprep.subr.mxu0 %v171
    %2206 = vmatpush1.msra.mxu0 %v170
    %2207 = vmatprep.subr.mxu0 %v175
    %2208 = vmatpush1.msra.mxu0 %v174
    %2209 = vmatprep.subr.mxu0 %v179
    %2210 = vmatpush1.msra.mxu0 %v178
    %2211 = vmatprep.subr.mxu0 %v183
    %2212 = vmatpush1.msra.mxu0 %v182
    %2213 = vmatprep.subr.mxu0 %v187
    %2214 = vmatpush1.msra.mxu0 %v186
    %2215 = vmatprep.subr.mxu0 %v191
    %2216 = vmatpush1.msra.mxu0 %v190
    %2217 = vmatprep.subr.mxu0 %v195
    %2218 = vmatpush1.msra.mxu0 %v194
    %2219 = vmatprep.subr.mxu0 %v199
    %2220 = vmatpush1.msra.mxu0 %v198
    %2221 = vmatprep.subr.mxu0 %v203
    %2222 = vmatpush1.msra.mxu0 %v202
    %2223 = vmatprep.subr.mxu0 %v207
    %2224 = vmatpush1.msra.mxu0 %v206
    %2225 = vmatprep.subr.mxu0 %v211
    %2226 = vmatpush1.msra.mxu0 %v210
    %2227 = vmatprep.subr.mxu0 %v215
    %2228 = vmatpush1.msra.mxu0 %v214
    %2229 = vmatprep.subr.mxu0 %v219
    %2230 = vmatpush1.msra.mxu0 %v218
    %2231 = vmatprep.subr.mxu0 %v223
    %2232 = vmatpush1.msra.mxu0 %v222
    %2233 = vmatprep.subr.mxu0 %v227
    %2234 = vmatpush1.msra.mxu0 %v226
    %2235 = vmatprep.subr.mxu0 0.0
    %2236 = vmatpush1.msra.mxu0 0.0
    %2237 = vmatprep.subr.mxu0 0.0
    %2238 = vmatpush1.msra.mxu0 0.0
    %2239 = vmatprep.subr.mxu0 0.0
    %2240 = vmatpush1.msra.mxu0 0.0
    %2241 = vmatprep.subr.mxu0 0.0
    %2242 = vmatpush1.msra.mxu0 0.0
    %2243 = vmatprep.subr.mxu0 0.0
    %2244 = vmatpush1.msra.mxu0 0.0
    %2245 = vmatprep.subr.mxu0 0.0
    %2246 = vmatpush1.msra.mxu0 0.0
    %2247 = vmatprep.subr.mxu0 0.0
    %2248 = vmatpush1.msra.mxu0 0.0
    %2249 = vmatprep.subr.mxu0 0.0
    %2250 = vmatpush1.msra.mxu0 0.0
    %2251 = vmatprep.subr.mxu0 0.0
    %2252 = vmatpush1.msra.mxu0 0.0
    %2253 = vmatprep.subr.mxu0 0.0
    %2254 = vmatpush1.msra.mxu0 0.0
    %2255 = vmatprep.subr.mxu0 0.0
    %2256 = vmatpush1.msra.mxu0 0.0
    %2257 = vmatprep.subr.mxu0 0.0
    %2258 = vmatpush1.msra.mxu0 0.0
    %2259 = vmatprep.subr.mxu0 0.0
    %2260 = vmatpush1.msra.mxu0 0.0
    %2261 = vmatprep.subr.mxu0 0.0
    %2262 = vmatpush1.msra.mxu0 0.0
    %2263 = vmatprep.subr.mxu0 0.0
    %2264 = vmatpush1.msra.mxu0 0.0
    %2265 = vmatprep.subr.mxu0 0.0
    %2266 = vmatpush1.msra.mxu0 0.0
    %2267 = vmatprep.mubr.f32.mxu0 0.0
    %2268 = vmatmul.mubr.f32.gmra.mrb[0].mxu0 %v2131
    %v2269 = vpop.f32.mrb[0].mxu0
    %v2270 = vadd.f32 0.0, %v2269
    %v2271 = vpop.f32.mrb[0].mxu0
    %v2272 = vadd.f32 0.0, %v2271
    %2273 = vdwg.mxu0
    %v2274 = vadd.f32 %v161, %v2199
    %v2275 = vadd.f32 %v162, %v2201
    %v2276 = vxor.u32 %v2274, 2147483648
    %v2277 = vmul.f32 %v2276, 1.442695
    %v2278 = vpow.pop %v2277
    %v2279 = vadd.f32 %v2278, 1.0
    %v2280 = vrcp.pop %v2279
    %v2281 = vmul.f32 1.0, %v2280
    %v2282 = vtanh.pop %v2275
    %v2283 = vxor.u32 %v2275, 2147483648
    %v2284 = vmul.f32 %v2283, 1.442695
    %v2285 = vpow.pop %v2284
    %v2286 = vadd.f32 %v2285, 1.0
    %v2287 = vrcp.pop %v2286
    %v2288 = vmul.f32 1.0, %v2287
    %v2289 = vmul.f32 %v2281, %v2027
    %v2290 = vmul.f32 %v2281, %v2282
    %2292 = vrot.lane.b32.xlu0 %v2290, 64
    %v2293 = vpop.permute.xlu0 %2292
    %v2295 = vadd.f32 %v2289, %v2293
    %v2296 = vtanh.pop %v2295
    %v2297 = vmul.f32 %v2288, %v2296
    %2299 = vrot.lane.b32.xlu0 %v2297, 64
    %v2300 = vpop.permute.xlu0 %2299
    %v2301 = vsel %vm413, %v2300, 0
    %2303 = vmatprep.subr.mxu0 %v395
    %2304 = vmatpush1.msra.mxu0 %v394
    %2305 = vmatprep.subr.mxu0 %v397
    %2306 = vmatpush1.msra.mxu0 %v396
    %2307 = vmatprep.subr.mxu0 %v399
    %2308 = vmatpush1.msra.mxu0 %v398
    %2309 = vmatprep.subr.mxu0 %v401
    %2310 = vmatpush1.msra.mxu0 %v400
    %2311 = vmatprep.subr.mxu0 %v403
    %2312 = vmatpush1.msra.mxu0 %v402
    %2313 = vmatprep.subr.mxu0 %v405
    %2314 = vmatpush1.msra.mxu0 %v404
    %2315 = vmatprep.subr.mxu0 %v407
    %2316 = vmatpush1.msra.mxu0 %v406
    %2317 = vmatprep.subr.mxu0 %v409
    %2318 = vmatpush1.msra.mxu0 %v408
    %2319 = vmatprep.subr.mxu0 0.0
    %2320 = vmatpush1.msra.mxu0 0.0
    %2321 = vmatprep.subr.mxu0 0.0
    %2322 = vmatpush1.msra.mxu0 0.0
    %2323 = vmatprep.subr.mxu0 0.0
    %2324 = vmatpush1.msra.mxu0 0.0
    %2325 = vmatprep.subr.mxu0 0.0
    %2326 = vmatpush1.msra.mxu0 0.0
    %2327 = vmatprep.subr.mxu0 0.0
    %2328 = vmatpush1.msra.mxu0 0.0
    %2329 = vmatprep.subr.mxu0 0.0
    %2330 = vmatpush1.msra.mxu0 0.0
    %2331 = vmatprep.subr.mxu0 0.0
    %2332 = vmatpush1.msra.mxu0 0.0
    %2333 = vmatprep.subr.mxu0 0.0
    %2334 = vmatpush1.msra.mxu0 0.0
    %2335 = vmatprep.subr.mxu0 0.0
    %2336 = vmatpush1.msra.mxu0 0.0
    %2337 = vmatprep.subr.mxu0 0.0
    %2338 = vmatpush1.msra.mxu0 0.0
    %2339 = vmatprep.subr.mxu0 0.0
    %2340 = vmatpush1.msra.mxu0 0.0
    %2341 = vmatprep.subr.mxu0 0.0
    %2342 = vmatpush1.msra.mxu0 0.0
    %2343 = vmatprep.subr.mxu0 0.0
    %2344 = vmatpush1.msra.mxu0 0.0
    %2345 = vmatprep.subr.mxu0 0.0
    %2346 = vmatpush1.msra.mxu0 0.0
    %2347 = vmatprep.subr.mxu0 0.0
    %2348 = vmatpush1.msra.mxu0 0.0
    %2349 = vmatprep.subr.mxu0 0.0
    %2350 = vmatpush1.msra.mxu0 0.0
    %2351 = vmatprep.subr.mxu0 0.0
    %2352 = vmatpush1.msra.mxu0 0.0
    %2353 = vmatprep.subr.mxu0 0.0
    %2354 = vmatpush1.msra.mxu0 0.0
    %2355 = vmatprep.subr.mxu0 0.0
    %2356 = vmatpush1.msra.mxu0 0.0
    %2357 = vmatprep.subr.mxu0 0.0
    %2358 = vmatpush1.msra.mxu0 0.0
    %2359 = vmatprep.subr.mxu0 0.0
    %2360 = vmatpush1.msra.mxu0 0.0
    %2361 = vmatprep.subr.mxu0 0.0
    %2362 = vmatpush1.msra.mxu0 0.0
    %2363 = vmatprep.subr.mxu0 0.0
    %2364 = vmatpush1.msra.mxu0 0.0
    %2365 = vmatprep.subr.mxu0 0.0
    %2366 = vmatpush1.msra.mxu0 0.0
    %2367 = vmatprep.mubr.f32.mxu0 0.0
    %2368 = vmatmul.mubr.f32.gmra.mrb[0].mxu0 %v2301
    %v2369 = vpop.f32.mrb[0].mxu0
    %v2370 = vadd.f32 %v2270, %v2369
    %v2371 = vpop.f32.mrb[0].mxu0
    %v2372 = vadd.f32 %v2272, %v2371
    %2373 = vdwg.mxu0
    %v2374 = vadd.f32 %v2370, %v491
    %v2375 = vadd.f32 %v2372, %v495
    %v2376 = vxor.u32 %v2374, 2147483648
    %v2377 = vmul.f32 %v2376, 1.442695
    %v2378 = vpow.pop %v2377
    %v2379 = vadd.f32 %v2378, 1.0
    %v2380 = vrcp.pop %v2379
    %v2381 = vmul.f32 1.0, %v2380
    %v2382 = vtanh.pop %v2375
    %v2383 = vxor.u32 %v2375, 2147483648
    %v2384 = vmul.f32 %v2383, 1.442695
    %v2385 = vpow.pop %v2384
    %v2386 = vadd.f32 %v2385, 1.0
    %v2387 = vrcp.pop %v2386
    %v2388 = vmul.f32 1.0, %v2387
    %v2389 = vmul.f32 %v2381, %v2127
    %v2390 = vmul.f32 %v2381, %v2382
    %2392 = vrot.lane.b32.xlu0 %v2390, 64
    %v2393 = vpop.permute.xlu0 %2392
    %v2395 = vadd.f32 %v2389, %v2393
    %v2396 = vtanh.pop %v2395
    %v2397 = vmul.f32 %v2388, %v2396
    %v2398 = vld [vmem:[%s6] sm:$0x1]
    %v2400 = vlaneseq
    %v2401 = vshrl.u32 %v2400, 7
    %v2402 = vsub.s32 0, %v2401
    %v2403 = vrot.slane %v2398, %v2402
    %2404 = vrot.lane.b32.xlu0 %v2403, 64
    %v2405 = vpop.permute.xlu0 %2404
    %v2407 = vmul.f32 %v2397, %v2405
    %2409 = vrot.lane.b32.xlu0 %v2407, 64
    %v2410 = vpop.permute.xlu0 %2409
    %v2412 = vsel %vm413, %v2410, 0.0
    %2413 = vadd.xlane.f32.xlu0 %v2412
    %v2414 = vpop.xlane.xlu0 %2413
    %v2415 = vld [vmem:[#allocation2] sm:$0x1]
    %v2417 = vlaneseq
    %v2418 = vshrl.u32 %v2417, 7
    %v2419 = vsub.s32 0, %v2418
    %v2420 = vrot.slane %v2415, %v2419
    %v2422 = vadd.f32 %v2414, %v2420
    %vm2423 = vcmask 7168
    %2424 = vst.msk [vmem:[%s8] sm:$0xff] %vm2423, %v2422
    // Predicated region
    $region42: #{tpu_custom_call.1} parent=1 // pred_check
      _
    $region43: #{tpu_custom_call.1} parent=1 // pred_check_branch
      %2426 = sbr.rel (0) target = $region45
    $region44: #{tpu_custom_call.1} parent=1 // pred_region
      _
    $region45: #{tpu_custom_call.1} parent=1 // pred_fallthru
      _
    // Predicated region
    $region46: #{tpu_custom_call.1} parent=1 // pred_check
      _
    $region47: #{tpu_custom_call.1} parent=1 // pred_check_branch
      %2428 = sbr.rel (0) target = $region49
    $region48: #{tpu_custom_call.1} parent=1 // pred_region
      _
    $region49: #{tpu_custom_call.1} parent=1 // pred_fallthru
      _
    %2429 = vsyncpa [#allocation4], 1
    %2430 = vsyncpa [#allocation6], 1

</llo_original>
